<compile_context>
chip_gen: v5e
topology: v5e:2x2
jax: 0.10.0
libtpu: 0.0.40
codegen_flags: <defaults>
</compile_context>

<pallas_src>
import numpy as np

import jax
import jax.numpy as jnp
from jax.experimental import pallas as pl
from jax.experimental.pallas import tpu as pltpu


# ---------------------------------------------------------------------------
# Fused forward kernel (one image per grid step)
# ---------------------------------------------------------------------------

def _lenet_kernel(x_ref, m1_ref, b1_ref, m2_ref, b2_ref,
                  wf1_ref, bf1_ref, wf2_ref, bf2_ref, wf3_ref, bf3_ref,
                  o_ref, s1_ref, s2_ref):
    f32 = jnp.float32

    # ---- conv1 (5x5, 3->6) + bias + ReLU -> (28, 28*6) in (H, W*C) layout ----
    acc1 = jnp.zeros((28, 168), f32)
    for i in range(5):          # kernel row
        for ci in range(3):     # input channel (input kept in raw NCHW layout)
            acc1 = acc1 + jnp.dot(x_ref[0, ci, i:i + 28, :], m1_ref[i, ci],
                                  preferred_element_type=f32)
    h1 = jnp.maximum(acc1 + b1_ref[...], 0.0)                    # (28, 168)

    # ---- maxpool 2x2 (fused, VPU only) ----
    c1 = jnp.maximum(h1[0:27, :], h1[1:28, :])                   # rows r, r+1
    e1 = jnp.maximum(c1[:, 0:162], c1[:, 6:168])                 # lanes g, g+6
    for t in range(14):                                          # keep even rows
        s1_ref[t:t + 1, :] = e1[2 * t:2 * t + 1, :]              # (14, 162)
    # s1 lane layout: p = w_pooled*12 + c  (odd groups unused; m2 has 0 rows there)

    # ---- conv2 (5x5, 6->16) + bias + ReLU -> (10, 10*16) ----
    acc2 = jnp.zeros((10, 160), f32)
    for i in range(5):
        acc2 = acc2 + jnp.dot(s1_ref[i:i + 10, :], m2_ref[i],
                              preferred_element_type=f32)
    h2 = jnp.maximum(acc2 + b2_ref[...], 0.0)                    # (10, 160)

    # ---- maxpool 2x2 (fused) ----
    c2 = jnp.maximum(h2[0:9, :], h2[1:10, :])
    e2 = jnp.maximum(c2[:, 0:144], c2[:, 16:160])
    for t in range(5):
        s2_ref[t:t + 1, :] = e2[2 * t:2 * t + 1, :]              # (5, 144)
    # s2 lane layout: p = w_pooled*32 + c (odd groups unused; wf1 has 0 rows there)

    # ---- fc1 + ReLU (torch (C,H,W) flatten order folded into wf1 packing) ----
    acc3 = jnp.zeros((1, 120), f32)
    for h in range(5):
        acc3 = acc3 + jnp.dot(s2_ref[h:h + 1, :], wf1_ref[h],
                              preferred_element_type=f32)
    z1 = jnp.maximum(acc3 + bf1_ref[...], 0.0)                   # (1, 120)

    # ---- fc2 + ReLU, fc3 ----
    z2 = jnp.maximum(jnp.dot(z1, wf2_ref[...], preferred_element_type=f32)
                     + bf2_ref[...], 0.0)                        # (1, 84)
    z3 = jnp.dot(z2, wf3_ref[...], preferred_element_type=f32) + bf3_ref[...]
    o_ref[0] = z3                                                # (1, 10)


# ---------------------------------------------------------------------------
# Parameter init (PyTorch-default-like) and one-time packing
# ---------------------------------------------------------------------------

def init_params(key):
    def uniform(k, shape, fan_in):
        bound = 1.0 / float(np.sqrt(float(fan_in)))
        return jax.random.uniform(k, shape, jnp.float32, -bound, bound)

    ks = jax.random.split(key, 10)
    p = {}
    p["conv1_w"] = uniform(ks[0], (6, 3, 5, 5), 3 * 5 * 5)
    p["conv1_b"] = uniform(ks[1], (6,), 3 * 5 * 5)
    p["conv2_w"] = uniform(ks[2], (16, 6, 5, 5), 6 * 5 * 5)
    p["conv2_b"] = uniform(ks[3], (16,), 6 * 5 * 5)
    p["fc1_w"] = uniform(ks[4], (120, 400), 400)   # torch layout (out, in)
    p["fc1_b"] = uniform(ks[5], (120,), 400)
    p["fc2_w"] = uniform(ks[6], (84, 120), 120)
    p["fc2_b"] = uniform(ks[7], (84,), 120)
    p["fc3_w"] = uniform(ks[8], (10, 84), 84)
    p["fc3_b"] = uniform(ks[9], (10,), 84)
    return p


def pack_params(p):
    """Fold im2col / pooling de-interleave / flatten order into the weights."""
    w1 = np.asarray(p["conv1_w"], np.float32); b1 = np.asarray(p["conv1_b"], np.float32)
    w2 = np.asarray(p["conv2_w"], np.float32); b2 = np.asarray(p["conv2_b"], np.float32)
    f1 = np.asarray(p["fc1_w"], np.float32);   g1 = np.asarray(p["fc1_b"], np.float32)
    f2 = np.asarray(p["fc2_w"], np.float32);   g2 = np.asarray(p["fc2_b"], np.float32)
    f3 = np.asarray(p["fc3_w"], np.float32);   g3 = np.asarray(p["fc3_b"], np.float32)

    # conv1: per (kernel-row i, cin) banded matrix  (W_in=32) -> (28*6) lanes.
    m1 = np.zeros((5, 3, 32, 28 * 6), np.float32)
    for i in range(5):
        for ci in range(3):
            for ow in range(28):
                for j in range(5):
                    m1[i, ci, ow + j, ow * 6:(ow + 1) * 6] = w1[:, ci, i, j]
    b1row = np.tile(b1, 28)[None, :]                              # (1, 168)

    # conv2: input lanes are the un-compacted pooled layout p = w*12 + c (162
    # lanes); output lanes ow*16 + cout (160 lanes).
    m2 = np.zeros((5, 162, 10 * 16), np.float32)
    for i in range(5):
        for ow in range(10):
            for j in range(5):
                wcol = ow + j
                for ci in range(6):
                    m2[i, wcol * 12 + ci, ow * 16:(ow + 1) * 16] = w2[:, ci, i, j]
    b2row = np.tile(b2, 10)[None, :]                              # (1, 160)

    # fc1: input rows h (5), lanes p = w*32 + c (144); fold torch flatten order
    # k = c*25 + h*5 + w into the packing.
    wf1 = np.zeros((5, 144, 120), np.float32)
    for h in range(5):
        for w in range(5):
            for c in range(16):
                wf1[h, w * 32 + c, :] = f1[:, c * 25 + h * 5 + w]

    packed = dict(
        m1=m1, b1=b1row, m2=m2, b2=b2row,
        wf1=wf1, bf1=g1[None, :],
        wf2=f2.T.copy(), bf2=g2[None, :],
        wf3=f3.T.copy(), bf3=g3[None, :],
    )
    return {k: jnp.asarray(v) for k, v in packed.items()}


# ---------------------------------------------------------------------------
# Forward pass: one fused pallas_call, grid over batch ("parallel")
# ---------------------------------------------------------------------------

def _whole_spec(shape):
    n = len(shape)
    return pl.BlockSpec(shape, lambda b, _n=n: (0,) * _n)


@jax.jit
def net_forward(packed, x_nchw):
    n = x_nchw.shape[0]
    x = x_nchw.astype(jnp.float32)
    order = ("m1", "b1", "m2", "b2", "wf1", "bf1", "wf2", "bf2", "wf3", "bf3")
    weights = [packed[k] for k in order]

    in_specs = [pl.BlockSpec((1, 3, 32, 32), lambda b: (b, 0, 0, 0))]
    in_specs += [_whole_spec(w.shape) for w in weights]   # resident in VMEM

    out = pl.pallas_call(
        _lenet_kernel,
        out_shape=jax.ShapeDtypeStruct((n, 1, 10), jnp.float32),
        grid_spec=pltpu.PrefetchScalarGridSpec(
            num_scalar_prefetch=0,
            grid=(n,),
            in_specs=in_specs,
            out_specs=pl.BlockSpec((1, 1, 10), lambda b: (b, 0, 0)),
            scratch_shapes=[pltpu.VMEM((14, 162), jnp.float32),   # pooled conv1
                            pltpu.VMEM((5, 144), jnp.float32)],   # pooled conv2
        ),
        compiler_params=pltpu.CompilerParams(
            dimension_semantics=("parallel",),
            vmem_limit_bytes=32 * 1024 * 1024,
        ),
    )(x, *weights)
    return out.reshape(n, 10)


# ---------------------------------------------------------------------------
# Pure-JAX reference (for a correctness sanity check)
# ---------------------------------------------------------------------------

def reference_forward(params, x):
    def conv(x, w, b):
        y = jax.lax.conv_general_dilated(
            x, w, window_strides=(1, 1), padding="VALID",
            dimension_numbers=("NCHW", "OIHW", "NCHW"))
        return y + b[None, :, None, None]

    def pool(x):
        return jax.lax.reduce_window(
            x, -jnp.inf, jax.lax.max, (1, 1, 2, 2), (1, 1, 2, 2), "VALID")

    x = pool(jax.nn.relu(conv(x, params["conv1_w"], params["conv1_b"])))
    x = pool(jax.nn.relu(conv(x, params["conv2_w"], params["conv2_b"])))
    x = x.reshape(x.shape[0], -1)                       # (C,H,W) flatten order
    x = jax.nn.relu(x @ params["fc1_w"].T + params["fc1_b"])
    x = jax.nn.relu(x @ params["fc2_w"].T + params["fc2_b"])
    return x @ params["fc3_w"].T + params["fc3_b"]


if __name__ == "__main__":
    key = jax.random.PRNGKey(0)
    k_param, k_x = jax.random.split(key)
    params = init_params(k_param)
    packed = pack_params(params)

    # CIFAR-10 sized input (required by fc1 = 16*5*5): batch=2, NCHW.
    x = jax.random.normal(k_x, (2, 3, 32, 32), jnp.float32)

    out = jax.block_until_ready(net_forward(packed, x))
    assert out.shape == (2, 10), out.shape

    ref = jax.block_until_ready(reference_forward(params, x))
    assert jnp.allclose(out, ref, rtol=5e-2, atol=5e-2), (out, ref)

    print("KERNEL_OK")
</pallas_src>

<mosaic_0001>
module attributes {stable_mosaic.version = 11 : i64} {
  func.func @_lenet_kernel(%arg0: i32, %arg1: memref<1x3x32x32xf32, #tpu.memory_space<vmem>>, %arg2: memref<5x3x32x168xf32, #tpu.memory_space<vmem>>, %arg3: memref<1x168xf32, #tpu.memory_space<vmem>>, %arg4: memref<5x162x160xf32, #tpu.memory_space<vmem>>, %arg5: memref<1x160xf32, #tpu.memory_space<vmem>>, %arg6: memref<5x144x120xf32, #tpu.memory_space<vmem>>, %arg7: memref<1x120xf32, #tpu.memory_space<vmem>>, %arg8: memref<120x84xf32, #tpu.memory_space<vmem>>, %arg9: memref<1x84xf32, #tpu.memory_space<vmem>>, %arg10: memref<84x10xf32, #tpu.memory_space<vmem>>, %arg11: memref<1x10xf32, #tpu.memory_space<vmem>>, %arg12: memref<1x1x10xf32, #tpu.memory_space<vmem>>, %arg13: memref<14x162xf32, #tpu.memory_space<vmem>>, %arg14: memref<5x144xf32, #tpu.memory_space<vmem>>) attributes {dimension_semantics = [#tpu.dimension_semantics<parallel>], iteration_bounds = array<i64: 2>, scalar_prefetch = 0 : i64, scratch_operands = 2 : i64, tpu.core_type = #tpu.core_type<tc>, window_params = [{transform_indices = @transform_0, window_bounds = array<i64: 1, 3, 32, 32>}, {pipeline_mode = #tpu.pipeline_mode<synchronous>, transform_indices = @transform_1, window_bounds = array<i64: 5, 3, 32, 168>}, {pipeline_mode = #tpu.pipeline_mode<synchronous>, transform_indices = @transform_2, window_bounds = array<i64: 1, 168>}, {pipeline_mode = #tpu.pipeline_mode<synchronous>, transform_indices = @transform_3, window_bounds = array<i64: 5, 162, 160>}, {pipeline_mode = #tpu.pipeline_mode<synchronous>, transform_indices = @transform_4, window_bounds = array<i64: 1, 160>}, {pipeline_mode = #tpu.pipeline_mode<synchronous>, transform_indices = @transform_5, window_bounds = array<i64: 5, 144, 120>}, {pipeline_mode = #tpu.pipeline_mode<synchronous>, transform_indices = @transform_6, window_bounds = array<i64: 1, 120>}, {pipeline_mode = #tpu.pipeline_mode<synchronous>, transform_indices = @transform_7, window_bounds = array<i64: 120, 84>}, {pipeline_mode = #tpu.pipeline_mode<synchronous>, transform_indices = @transform_8, window_bounds = array<i64: 1, 84>}, {pipeline_mode = #tpu.pipeline_mode<synchronous>, transform_indices = @transform_9, window_bounds = array<i64: 84, 10>}, {pipeline_mode = #tpu.pipeline_mode<synchronous>, transform_indices = @transform_10, window_bounds = array<i64: 1, 10>}, {transform_indices = @transform_11, window_bounds = array<i64: 1, 1, 10>}]} {
    %cst = arith.constant 0.000000e+00 : f32
    %0 = vector.broadcast %cst : f32 to vector<28x168xf32>
    %c0 = arith.constant 0 : index
    %c0_0 = arith.constant 0 : index
    %c0_1 = arith.constant 0 : index
    %c0_2 = arith.constant 0 : index
    %1 = vector.load %arg1[%c0, %c0_0, %c0_1, %c0_2] : memref<1x3x32x32xf32, #tpu.memory_space<vmem>>, vector<1x1x28x32xf32>
    %2 = vector.shape_cast %1 : vector<1x1x28x32xf32> to vector<28x32xf32>
    %c0_3 = arith.constant 0 : index
    %c0_4 = arith.constant 0 : index
    %c0_5 = arith.constant 0 : index
    %c0_6 = arith.constant 0 : index
    %3 = vector.load %arg2[%c0_3, %c0_4, %c0_5, %c0_6] : memref<5x3x32x168xf32, #tpu.memory_space<vmem>>, vector<1x1x32x168xf32>
    %4 = vector.shape_cast %3 : vector<1x1x32x168xf32> to vector<32x168xf32>
    %cst_7 = arith.constant dense<0.000000e+00> : vector<28x168xf32>
    %5 = tpu.matmul %2, %4, %cst_7 {dimension_numbers = #tpu.dot_dimension_numbers<[1], [0], [0], [1], [0, 0, 1, 1], [], []>} : vector<28x32xf32>, vector<32x168xf32>, vector<28x168xf32> -> vector<28x168xf32>
    %6 = arith.addf %0, %5 : vector<28x168xf32>
    %c0_8 = arith.constant 0 : index
    %c1 = arith.constant 1 : index
    %c0_9 = arith.constant 0 : index
    %c0_10 = arith.constant 0 : index
    %7 = vector.load %arg1[%c0_8, %c1, %c0_9, %c0_10] : memref<1x3x32x32xf32, #tpu.memory_space<vmem>>, vector<1x1x28x32xf32>
    %8 = vector.shape_cast %7 : vector<1x1x28x32xf32> to vector<28x32xf32>
    %c0_11 = arith.constant 0 : index
    %c1_12 = arith.constant 1 : index
    %c0_13 = arith.constant 0 : index
    %c0_14 = arith.constant 0 : index
    %9 = vector.load %arg2[%c0_11, %c1_12, %c0_13, %c0_14] : memref<5x3x32x168xf32, #tpu.memory_space<vmem>>, vector<1x1x32x168xf32>
    %10 = vector.shape_cast %9 : vector<1x1x32x168xf32> to vector<32x168xf32>
    %cst_15 = arith.constant dense<0.000000e+00> : vector<28x168xf32>
    %11 = tpu.matmul %8, %10, %cst_15 {dimension_numbers = #tpu.dot_dimension_numbers<[1], [0], [0], [1], [0, 0, 1, 1], [], []>} : vector<28x32xf32>, vector<32x168xf32>, vector<28x168xf32> -> vector<28x168xf32>
    %12 = arith.addf %6, %11 : vector<28x168xf32>
    %c0_16 = arith.constant 0 : index
    %c2 = arith.constant 2 : index
    %c0_17 = arith.constant 0 : index
    %c0_18 = arith.constant 0 : index
    %13 = vector.load %arg1[%c0_16, %c2, %c0_17, %c0_18] : memref<1x3x32x32xf32, #tpu.memory_space<vmem>>, vector<1x1x28x32xf32>
    %14 = vector.shape_cast %13 : vector<1x1x28x32xf32> to vector<28x32xf32>
    %c0_19 = arith.constant 0 : index
    %c2_20 = arith.constant 2 : index
    %c0_21 = arith.constant 0 : index
    %c0_22 = arith.constant 0 : index
    %15 = vector.load %arg2[%c0_19, %c2_20, %c0_21, %c0_22] : memref<5x3x32x168xf32, #tpu.memory_space<vmem>>, vector<1x1x32x168xf32>
    %16 = vector.shape_cast %15 : vector<1x1x32x168xf32> to vector<32x168xf32>
    %cst_23 = arith.constant dense<0.000000e+00> : vector<28x168xf32>
    %17 = tpu.matmul %14, %16, %cst_23 {dimension_numbers = #tpu.dot_dimension_numbers<[1], [0], [0], [1], [0, 0, 1, 1], [], []>} : vector<28x32xf32>, vector<32x168xf32>, vector<28x168xf32> -> vector<28x168xf32>
    %18 = arith.addf %12, %17 : vector<28x168xf32>
    %c0_24 = arith.constant 0 : index
    %c0_25 = arith.constant 0 : index
    %c1_26 = arith.constant 1 : index
    %c0_27 = arith.constant 0 : index
    %19 = vector.load %arg1[%c0_24, %c0_25, %c1_26, %c0_27] : memref<1x3x32x32xf32, #tpu.memory_space<vmem>>, vector<1x1x28x32xf32>
    %20 = vector.shape_cast %19 : vector<1x1x28x32xf32> to vector<28x32xf32>
    %c1_28 = arith.constant 1 : index
    %c0_29 = arith.constant 0 : index
    %c0_30 = arith.constant 0 : index
    %c0_31 = arith.constant 0 : index
    %21 = vector.load %arg2[%c1_28, %c0_29, %c0_30, %c0_31] : memref<5x3x32x168xf32, #tpu.memory_space<vmem>>, vector<1x1x32x168xf32>
    %22 = vector.shape_cast %21 : vector<1x1x32x168xf32> to vector<32x168xf32>
    %cst_32 = arith.constant dense<0.000000e+00> : vector<28x168xf32>
    %23 = tpu.matmul %20, %22, %cst_32 {dimension_numbers = #tpu.dot_dimension_numbers<[1], [0], [0], [1], [0, 0, 1, 1], [], []>} : vector<28x32xf32>, vector<32x168xf32>, vector<28x168xf32> -> vector<28x168xf32>
    %24 = arith.addf %18, %23 : vector<28x168xf32>
    %c0_33 = arith.constant 0 : index
    %c1_34 = arith.constant 1 : index
    %c1_35 = arith.constant 1 : index
    %c0_36 = arith.constant 0 : index
    %25 = vector.load %arg1[%c0_33, %c1_34, %c1_35, %c0_36] : memref<1x3x32x32xf32, #tpu.memory_space<vmem>>, vector<1x1x28x32xf32>
    %26 = vector.shape_cast %25 : vector<1x1x28x32xf32> to vector<28x32xf32>
    %c1_37 = arith.constant 1 : index
    %c1_38 = arith.constant 1 : index
    %c0_39 = arith.constant 0 : index
    %c0_40 = arith.constant 0 : index
    %27 = vector.load %arg2[%c1_37, %c1_38, %c0_39, %c0_40] : memref<5x3x32x168xf32, #tpu.memory_space<vmem>>, vector<1x1x32x168xf32>
    %28 = vector.shape_cast %27 : vector<1x1x32x168xf32> to vector<32x168xf32>
    %cst_41 = arith.constant dense<0.000000e+00> : vector<28x168xf32>
    %29 = tpu.matmul %26, %28, %cst_41 {dimension_numbers = #tpu.dot_dimension_numbers<[1], [0], [0], [1], [0, 0, 1, 1], [], []>} : vector<28x32xf32>, vector<32x168xf32>, vector<28x168xf32> -> vector<28x168xf32>
    %30 = arith.addf %24, %29 : vector<28x168xf32>
    %c0_42 = arith.constant 0 : index
    %c2_43 = arith.constant 2 : index
    %c1_44 = arith.constant 1 : index
    %c0_45 = arith.constant 0 : index
    %31 = vector.load %arg1[%c0_42, %c2_43, %c1_44, %c0_45] : memref<1x3x32x32xf32, #tpu.memory_space<vmem>>, vector<1x1x28x32xf32>
    %32 = vector.shape_cast %31 : vector<1x1x28x32xf32> to vector<28x32xf32>
    %c1_46 = arith.constant 1 : index
    %c2_47 = arith.constant 2 : index
    %c0_48 = arith.constant 0 : index
    %c0_49 = arith.constant 0 : index
    %33 = vector.load %arg2[%c1_46, %c2_47, %c0_48, %c0_49] : memref<5x3x32x168xf32, #tpu.memory_space<vmem>>, vector<1x1x32x168xf32>
    %34 = vector.shape_cast %33 : vector<1x1x32x168xf32> to vector<32x168xf32>
    %cst_50 = arith.constant dense<0.000000e+00> : vector<28x168xf32>
    %35 = tpu.matmul %32, %34, %cst_50 {dimension_numbers = #tpu.dot_dimension_numbers<[1], [0], [0], [1], [0, 0, 1, 1], [], []>} : vector<28x32xf32>, vector<32x168xf32>, vector<28x168xf32> -> vector<28x168xf32>
    %36 = arith.addf %30, %35 : vector<28x168xf32>
    %c0_51 = arith.constant 0 : index
    %c0_52 = arith.constant 0 : index
    %c2_53 = arith.constant 2 : index
    %c0_54 = arith.constant 0 : index
    %37 = vector.load %arg1[%c0_51, %c0_52, %c2_53, %c0_54] : memref<1x3x32x32xf32, #tpu.memory_space<vmem>>, vector<1x1x28x32xf32>
    %38 = vector.shape_cast %37 : vector<1x1x28x32xf32> to vector<28x32xf32>
    %c2_55 = arith.constant 2 : index
    %c0_56 = arith.constant 0 : index
    %c0_57 = arith.constant 0 : index
    %c0_58 = arith.constant 0 : index
    %39 = vector.load %arg2[%c2_55, %c0_56, %c0_57, %c0_58] : memref<5x3x32x168xf32, #tpu.memory_space<vmem>>, vector<1x1x32x168xf32>
    %40 = vector.shape_cast %39 : vector<1x1x32x168xf32> to vector<32x168xf32>
    %cst_59 = arith.constant dense<0.000000e+00> : vector<28x168xf32>
    %41 = tpu.matmul %38, %40, %cst_59 {dimension_numbers = #tpu.dot_dimension_numbers<[1], [0], [0], [1], [0, 0, 1, 1], [], []>} : vector<28x32xf32>, vector<32x168xf32>, vector<28x168xf32> -> vector<28x168xf32>
    %42 = arith.addf %36, %41 : vector<28x168xf32>
    %c0_60 = arith.constant 0 : index
    %c1_61 = arith.constant 1 : index
    %c2_62 = arith.constant 2 : index
    %c0_63 = arith.constant 0 : index
    %43 = vector.load %arg1[%c0_60, %c1_61, %c2_62, %c0_63] : memref<1x3x32x32xf32, #tpu.memory_space<vmem>>, vector<1x1x28x32xf32>
    %44 = vector.shape_cast %43 : vector<1x1x28x32xf32> to vector<28x32xf32>
    %c2_64 = arith.constant 2 : index
    %c1_65 = arith.constant 1 : index
    %c0_66 = arith.constant 0 : index
    %c0_67 = arith.constant 0 : index
    %45 = vector.load %arg2[%c2_64, %c1_65, %c0_66, %c0_67] : memref<5x3x32x168xf32, #tpu.memory_space<vmem>>, vector<1x1x32x168xf32>
    %46 = vector.shape_cast %45 : vector<1x1x32x168xf32> to vector<32x168xf32>
    %cst_68 = arith.constant dense<0.000000e+00> : vector<28x168xf32>
    %47 = tpu.matmul %44, %46, %cst_68 {dimension_numbers = #tpu.dot_dimension_numbers<[1], [0], [0], [1], [0, 0, 1, 1], [], []>} : vector<28x32xf32>, vector<32x168xf32>, vector<28x168xf32> -> vector<28x168xf32>
    %48 = arith.addf %42, %47 : vector<28x168xf32>
    %c0_69 = arith.constant 0 : index
    %c2_70 = arith.constant 2 : index
    %c2_71 = arith.constant 2 : index
    %c0_72 = arith.constant 0 : index
    %49 = vector.load %arg1[%c0_69, %c2_70, %c2_71, %c0_72] : memref<1x3x32x32xf32, #tpu.memory_space<vmem>>, vector<1x1x28x32xf32>
    %50 = vector.shape_cast %49 : vector<1x1x28x32xf32> to vector<28x32xf32>
    %c2_73 = arith.constant 2 : index
    %c2_74 = arith.constant 2 : index
    %c0_75 = arith.constant 0 : index
    %c0_76 = arith.constant 0 : index
    %51 = vector.load %arg2[%c2_73, %c2_74, %c0_75, %c0_76] : memref<5x3x32x168xf32, #tpu.memory_space<vmem>>, vector<1x1x32x168xf32>
    %52 = vector.shape_cast %51 : vector<1x1x32x168xf32> to vector<32x168xf32>
    %cst_77 = arith.constant dense<0.000000e+00> : vector<28x168xf32>
    %53 = tpu.matmul %50, %52, %cst_77 {dimension_numbers = #tpu.dot_dimension_numbers<[1], [0], [0], [1], [0, 0, 1, 1], [], []>} : vector<28x32xf32>, vector<32x168xf32>, vector<28x168xf32> -> vector<28x168xf32>
    %54 = arith.addf %48, %53 : vector<28x168xf32>
    %c0_78 = arith.constant 0 : index
    %c0_79 = arith.constant 0 : index
    %c3 = arith.constant 3 : index
    %c0_80 = arith.constant 0 : index
    %55 = vector.load %arg1[%c0_78, %c0_79, %c3, %c0_80] : memref<1x3x32x32xf32, #tpu.memory_space<vmem>>, vector<1x1x28x32xf32>
    %56 = vector.shape_cast %55 : vector<1x1x28x32xf32> to vector<28x32xf32>
    %c3_81 = arith.constant 3 : index
    %c0_82 = arith.constant 0 : index
    %c0_83 = arith.constant 0 : index
    %c0_84 = arith.constant 0 : index
    %57 = vector.load %arg2[%c3_81, %c0_82, %c0_83, %c0_84] : memref<5x3x32x168xf32, #tpu.memory_space<vmem>>, vector<1x1x32x168xf32>
    %58 = vector.shape_cast %57 : vector<1x1x32x168xf32> to vector<32x168xf32>
    %cst_85 = arith.constant dense<0.000000e+00> : vector<28x168xf32>
    %59 = tpu.matmul %56, %58, %cst_85 {dimension_numbers = #tpu.dot_dimension_numbers<[1], [0], [0], [1], [0, 0, 1, 1], [], []>} : vector<28x32xf32>, vector<32x168xf32>, vector<28x168xf32> -> vector<28x168xf32>
    %60 = arith.addf %54, %59 : vector<28x168xf32>
    %c0_86 = arith.constant 0 : index
    %c1_87 = arith.constant 1 : index
    %c3_88 = arith.constant 3 : index
    %c0_89 = arith.constant 0 : index
    %61 = vector.load %arg1[%c0_86, %c1_87, %c3_88, %c0_89] : memref<1x3x32x32xf32, #tpu.memory_space<vmem>>, vector<1x1x28x32xf32>
    %62 = vector.shape_cast %61 : vector<1x1x28x32xf32> to vector<28x32xf32>
    %c3_90 = arith.constant 3 : index
    %c1_91 = arith.constant 1 : index
    %c0_92 = arith.constant 0 : index
    %c0_93 = arith.constant 0 : index
    %63 = vector.load %arg2[%c3_90, %c1_91, %c0_92, %c0_93] : memref<5x3x32x168xf32, #tpu.memory_space<vmem>>, vector<1x1x32x168xf32>
    %64 = vector.shape_cast %63 : vector<1x1x32x168xf32> to vector<32x168xf32>
    %cst_94 = arith.constant dense<0.000000e+00> : vector<28x168xf32>
    %65 = tpu.matmul %62, %64, %cst_94 {dimension_numbers = #tpu.dot_dimension_numbers<[1], [0], [0], [1], [0, 0, 1, 1], [], []>} : vector<28x32xf32>, vector<32x168xf32>, vector<28x168xf32> -> vector<28x168xf32>
    %66 = arith.addf %60, %65 : vector<28x168xf32>
    %c0_95 = arith.constant 0 : index
    %c2_96 = arith.constant 2 : index
    %c3_97 = arith.constant 3 : index
    %c0_98 = arith.constant 0 : index
    %67 = vector.load %arg1[%c0_95, %c2_96, %c3_97, %c0_98] : memref<1x3x32x32xf32, #tpu.memory_space<vmem>>, vector<1x1x28x32xf32>
    %68 = vector.shape_cast %67 : vector<1x1x28x32xf32> to vector<28x32xf32>
    %c3_99 = arith.constant 3 : index
    %c2_100 = arith.constant 2 : index
    %c0_101 = arith.constant 0 : index
    %c0_102 = arith.constant 0 : index
    %69 = vector.load %arg2[%c3_99, %c2_100, %c0_101, %c0_102] : memref<5x3x32x168xf32, #tpu.memory_space<vmem>>, vector<1x1x32x168xf32>
    %70 = vector.shape_cast %69 : vector<1x1x32x168xf32> to vector<32x168xf32>
    %cst_103 = arith.constant dense<0.000000e+00> : vector<28x168xf32>
    %71 = tpu.matmul %68, %70, %cst_103 {dimension_numbers = #tpu.dot_dimension_numbers<[1], [0], [0], [1], [0, 0, 1, 1], [], []>} : vector<28x32xf32>, vector<32x168xf32>, vector<28x168xf32> -> vector<28x168xf32>
    %72 = arith.addf %66, %71 : vector<28x168xf32>
    %c0_104 = arith.constant 0 : index
    %c0_105 = arith.constant 0 : index
    %c4 = arith.constant 4 : index
    %c0_106 = arith.constant 0 : index
    %73 = vector.load %arg1[%c0_104, %c0_105, %c4, %c0_106] : memref<1x3x32x32xf32, #tpu.memory_space<vmem>>, vector<1x1x28x32xf32>
    %74 = vector.shape_cast %73 : vector<1x1x28x32xf32> to vector<28x32xf32>
    %c4_107 = arith.constant 4 : index
    %c0_108 = arith.constant 0 : index
    %c0_109 = arith.constant 0 : index
    %c0_110 = arith.constant 0 : index
    %75 = vector.load %arg2[%c4_107, %c0_108, %c0_109, %c0_110] : memref<5x3x32x168xf32, #tpu.memory_space<vmem>>, vector<1x1x32x168xf32>
    %76 = vector.shape_cast %75 : vector<1x1x32x168xf32> to vector<32x168xf32>
    %cst_111 = arith.constant dense<0.000000e+00> : vector<28x168xf32>
    %77 = tpu.matmul %74, %76, %cst_111 {dimension_numbers = #tpu.dot_dimension_numbers<[1], [0], [0], [1], [0, 0, 1, 1], [], []>} : vector<28x32xf32>, vector<32x168xf32>, vector<28x168xf32> -> vector<28x168xf32>
    %78 = arith.addf %72, %77 : vector<28x168xf32>
    %c0_112 = arith.constant 0 : index
    %c1_113 = arith.constant 1 : index
    %c4_114 = arith.constant 4 : index
    %c0_115 = arith.constant 0 : index
    %79 = vector.load %arg1[%c0_112, %c1_113, %c4_114, %c0_115] : memref<1x3x32x32xf32, #tpu.memory_space<vmem>>, vector<1x1x28x32xf32>
    %80 = vector.shape_cast %79 : vector<1x1x28x32xf32> to vector<28x32xf32>
    %c4_116 = arith.constant 4 : index
    %c1_117 = arith.constant 1 : index
    %c0_118 = arith.constant 0 : index
    %c0_119 = arith.constant 0 : index
    %81 = vector.load %arg2[%c4_116, %c1_117, %c0_118, %c0_119] : memref<5x3x32x168xf32, #tpu.memory_space<vmem>>, vector<1x1x32x168xf32>
    %82 = vector.shape_cast %81 : vector<1x1x32x168xf32> to vector<32x168xf32>
    %cst_120 = arith.constant dense<0.000000e+00> : vector<28x168xf32>
    %83 = tpu.matmul %80, %82, %cst_120 {dimension_numbers = #tpu.dot_dimension_numbers<[1], [0], [0], [1], [0, 0, 1, 1], [], []>} : vector<28x32xf32>, vector<32x168xf32>, vector<28x168xf32> -> vector<28x168xf32>
    %84 = arith.addf %78, %83 : vector<28x168xf32>
    %c0_121 = arith.constant 0 : index
    %c2_122 = arith.constant 2 : index
    %c4_123 = arith.constant 4 : index
    %c0_124 = arith.constant 0 : index
    %85 = vector.load %arg1[%c0_121, %c2_122, %c4_123, %c0_124] : memref<1x3x32x32xf32, #tpu.memory_space<vmem>>, vector<1x1x28x32xf32>
    %86 = vector.shape_cast %85 : vector<1x1x28x32xf32> to vector<28x32xf32>
    %c4_125 = arith.constant 4 : index
    %c2_126 = arith.constant 2 : index
    %c0_127 = arith.constant 0 : index
    %c0_128 = arith.constant 0 : index
    %87 = vector.load %arg2[%c4_125, %c2_126, %c0_127, %c0_128] : memref<5x3x32x168xf32, #tpu.memory_space<vmem>>, vector<1x1x32x168xf32>
    %88 = vector.shape_cast %87 : vector<1x1x32x168xf32> to vector<32x168xf32>
    %cst_129 = arith.constant dense<0.000000e+00> : vector<28x168xf32>
    %89 = tpu.matmul %86, %88, %cst_129 {dimension_numbers = #tpu.dot_dimension_numbers<[1], [0], [0], [1], [0, 0, 1, 1], [], []>} : vector<28x32xf32>, vector<32x168xf32>, vector<28x168xf32> -> vector<28x168xf32>
    %90 = arith.addf %84, %89 : vector<28x168xf32>
    %c0_130 = arith.constant 0 : index
    %c0_131 = arith.constant 0 : index
    %91 = vector.load %arg3[%c0_130, %c0_131] : memref<1x168xf32, #tpu.memory_space<vmem>>, vector<1x168xf32>
    %92 = vector.broadcast %91 : vector<1x168xf32> to vector<28x168xf32>
    %93 = arith.addf %90, %92 : vector<28x168xf32>
    %cst_132 = arith.constant 0.000000e+00 : f32
    %94 = vector.broadcast %cst_132 : f32 to vector<28x168xf32>
    %95 = arith.maximumf %93, %94 : vector<28x168xf32>
    %96 = vector.extract_strided_slice %95 {offsets = [0, 0], sizes = [27, 168], strides = [1, 1]} : vector<28x168xf32> to vector<27x168xf32>
    %97 = vector.extract_strided_slice %95 {offsets = [1, 0], sizes = [27, 168], strides = [1, 1]} : vector<28x168xf32> to vector<27x168xf32>
    %98 = arith.maximumf %96, %97 : vector<27x168xf32>
    %99 = vector.extract_strided_slice %98 {offsets = [0, 0], sizes = [27, 162], strides = [1, 1]} : vector<27x168xf32> to vector<27x162xf32>
    %100 = vector.extract_strided_slice %98 {offsets = [0, 6], sizes = [27, 162], strides = [1, 1]} : vector<27x168xf32> to vector<27x162xf32>
    %101 = arith.maximumf %99, %100 : vector<27x162xf32>
    %102 = vector.extract_strided_slice %101 {offsets = [0, 0], sizes = [1, 162], strides = [1, 1]} : vector<27x162xf32> to vector<1x162xf32>
    %c0_133 = arith.constant 0 : index
    %c0_134 = arith.constant 0 : index
    %103 = vector.load %arg13[%c0_133, %c0_134] : memref<14x162xf32, #tpu.memory_space<vmem>>, vector<1x162xf32>
    tpu.vector_store %arg13[%c0_133, %c0_134], %102 {strides = array<i32>} : memref<14x162xf32, #tpu.memory_space<vmem>>, vector<1x162xf32>,
    %104 = vector.extract_strided_slice %101 {offsets = [2, 0], sizes = [1, 162], strides = [1, 1]} : vector<27x162xf32> to vector<1x162xf32>
    %c1_135 = arith.constant 1 : index
    %c0_136 = arith.constant 0 : index
    %105 = vector.load %arg13[%c1_135, %c0_136] : memref<14x162xf32, #tpu.memory_space<vmem>>, vector<1x162xf32>
    tpu.vector_store %arg13[%c1_135, %c0_136], %104 {strides = array<i32>} : memref<14x162xf32, #tpu.memory_space<vmem>>, vector<1x162xf32>,
    %106 = vector.extract_strided_slice %101 {offsets = [4, 0], sizes = [1, 162], strides = [1, 1]} : vector<27x162xf32> to vector<1x162xf32>
    %c2_137 = arith.constant 2 : index
    %c0_138 = arith.constant 0 : index
    %107 = vector.load %arg13[%c2_137, %c0_138] : memref<14x162xf32, #tpu.memory_space<vmem>>, vector<1x162xf32>
    tpu.vector_store %arg13[%c2_137, %c0_138], %106 {strides = array<i32>} : memref<14x162xf32, #tpu.memory_space<vmem>>, vector<1x162xf32>,
    %108 = vector.extract_strided_slice %101 {offsets = [6, 0], sizes = [1, 162], strides = [1, 1]} : vector<27x162xf32> to vector<1x162xf32>
    %c3_139 = arith.constant 3 : index
    %c0_140 = arith.constant 0 : index
    %109 = vector.load %arg13[%c3_139, %c0_140] : memref<14x162xf32, #tpu.memory_space<vmem>>, vector<1x162xf32>
    tpu.vector_store %arg13[%c3_139, %c0_140], %108 {strides = array<i32>} : memref<14x162xf32, #tpu.memory_space<vmem>>, vector<1x162xf32>,
    %110 = vector.extract_strided_slice %101 {offsets = [8, 0], sizes = [1, 162], strides = [1, 1]} : vector<27x162xf32> to vector<1x162xf32>
    %c4_141 = arith.constant 4 : index
    %c0_142 = arith.constant 0 : index
    %111 = vector.load %arg13[%c4_141, %c0_142] : memref<14x162xf32, #tpu.memory_space<vmem>>, vector<1x162xf32>
    tpu.vector_store %arg13[%c4_141, %c0_142], %110 {strides = array<i32>} : memref<14x162xf32, #tpu.memory_space<vmem>>, vector<1x162xf32>,
    %112 = vector.extract_strided_slice %101 {offsets = [10, 0], sizes = [1, 162], strides = [1, 1]} : vector<27x162xf32> to vector<1x162xf32>
    %c5 = arith.constant 5 : index
    %c0_143 = arith.constant 0 : index
    %113 = vector.load %arg13[%c5, %c0_143] : memref<14x162xf32, #tpu.memory_space<vmem>>, vector<1x162xf32>
    tpu.vector_store %arg13[%c5, %c0_143], %112 {strides = array<i32>} : memref<14x162xf32, #tpu.memory_space<vmem>>, vector<1x162xf32>,
    %114 = vector.extract_strided_slice %101 {offsets = [12, 0], sizes = [1, 162], strides = [1, 1]} : vector<27x162xf32> to vector<1x162xf32>
    %c6 = arith.constant 6 : index
    %c0_144 = arith.constant 0 : index
    %115 = vector.load %arg13[%c6, %c0_144] : memref<14x162xf32, #tpu.memory_space<vmem>>, vector<1x162xf32>
    tpu.vector_store %arg13[%c6, %c0_144], %114 {strides = array<i32>} : memref<14x162xf32, #tpu.memory_space<vmem>>, vector<1x162xf32>,
    %116 = vector.extract_strided_slice %101 {offsets = [14, 0], sizes = [1, 162], strides = [1, 1]} : vector<27x162xf32> to vector<1x162xf32>
    %c7 = arith.constant 7 : index
    %c0_145 = arith.constant 0 : index
    %117 = vector.load %arg13[%c7, %c0_145] : memref<14x162xf32, #tpu.memory_space<vmem>>, vector<1x162xf32>
    tpu.vector_store %arg13[%c7, %c0_145], %116 {strides = array<i32>} : memref<14x162xf32, #tpu.memory_space<vmem>>, vector<1x162xf32>,
    %118 = vector.extract_strided_slice %101 {offsets = [16, 0], sizes = [1, 162], strides = [1, 1]} : vector<27x162xf32> to vector<1x162xf32>
    %c8 = arith.constant 8 : index
    %c0_146 = arith.constant 0 : index
    %119 = vector.load %arg13[%c8, %c0_146] : memref<14x162xf32, #tpu.memory_space<vmem>>, vector<1x162xf32>
    tpu.vector_store %arg13[%c8, %c0_146], %118 {strides = array<i32>} : memref<14x162xf32, #tpu.memory_space<vmem>>, vector<1x162xf32>,
    %120 = vector.extract_strided_slice %101 {offsets = [18, 0], sizes = [1, 162], strides = [1, 1]} : vector<27x162xf32> to vector<1x162xf32>
    %c9 = arith.constant 9 : index
    %c0_147 = arith.constant 0 : index
    %121 = vector.load %arg13[%c9, %c0_147] : memref<14x162xf32, #tpu.memory_space<vmem>>, vector<1x162xf32>
    tpu.vector_store %arg13[%c9, %c0_147], %120 {strides = array<i32>} : memref<14x162xf32, #tpu.memory_space<vmem>>, vector<1x162xf32>,
    %122 = vector.extract_strided_slice %101 {offsets = [20, 0], sizes = [1, 162], strides = [1, 1]} : vector<27x162xf32> to vector<1x162xf32>
    %c10 = arith.constant 10 : index
    %c0_148 = arith.constant 0 : index
    %123 = vector.load %arg13[%c10, %c0_148] : memref<14x162xf32, #tpu.memory_space<vmem>>, vector<1x162xf32>
    tpu.vector_store %arg13[%c10, %c0_148], %122 {strides = array<i32>} : memref<14x162xf32, #tpu.memory_space<vmem>>, vector<1x162xf32>,
    %124 = vector.extract_strided_slice %101 {offsets = [22, 0], sizes = [1, 162], strides = [1, 1]} : vector<27x162xf32> to vector<1x162xf32>
    %c11 = arith.constant 11 : index
    %c0_149 = arith.constant 0 : index
    %125 = vector.load %arg13[%c11, %c0_149] : memref<14x162xf32, #tpu.memory_space<vmem>>, vector<1x162xf32>
    tpu.vector_store %arg13[%c11, %c0_149], %124 {strides = array<i32>} : memref<14x162xf32, #tpu.memory_space<vmem>>, vector<1x162xf32>,
    %126 = vector.extract_strided_slice %101 {offsets = [24, 0], sizes = [1, 162], strides = [1, 1]} : vector<27x162xf32> to vector<1x162xf32>
    %c12 = arith.constant 12 : index
    %c0_150 = arith.constant 0 : index
    %127 = vector.load %arg13[%c12, %c0_150] : memref<14x162xf32, #tpu.memory_space<vmem>>, vector<1x162xf32>
    tpu.vector_store %arg13[%c12, %c0_150], %126 {strides = array<i32>} : memref<14x162xf32, #tpu.memory_space<vmem>>, vector<1x162xf32>,
    %128 = vector.extract_strided_slice %101 {offsets = [26, 0], sizes = [1, 162], strides = [1, 1]} : vector<27x162xf32> to vector<1x162xf32>
    %c13 = arith.constant 13 : index
    %c0_151 = arith.constant 0 : index
    %129 = vector.load %arg13[%c13, %c0_151] : memref<14x162xf32, #tpu.memory_space<vmem>>, vector<1x162xf32>
    tpu.vector_store %arg13[%c13, %c0_151], %128 {strides = array<i32>} : memref<14x162xf32, #tpu.memory_space<vmem>>, vector<1x162xf32>,
    %cst_152 = arith.constant 0.000000e+00 : f32
    %130 = vector.broadcast %cst_152 : f32 to vector<10x160xf32>
    %c0_153 = arith.constant 0 : index
    %c0_154 = arith.constant 0 : index
    %131 = vector.load %arg13[%c0_153, %c0_154] : memref<14x162xf32, #tpu.memory_space<vmem>>, vector<10x162xf32>
    %c0_155 = arith.constant 0 : index
    %c0_156 = arith.constant 0 : index
    %c0_157 = arith.constant 0 : index
    %132 = vector.load %arg4[%c0_155, %c0_156, %c0_157] : memref<5x162x160xf32, #tpu.memory_space<vmem>>, vector<1x162x160xf32>
    %133 = vector.shape_cast %132 : vector<1x162x160xf32> to vector<162x160xf32>
    %cst_158 = arith.constant dense<0.000000e+00> : vector<10x160xf32>
    %134 = tpu.matmul %131, %133, %cst_158 {dimension_numbers = #tpu.dot_dimension_numbers<[1], [0], [0], [1], [0, 0, 1, 1], [], []>} : vector<10x162xf32>, vector<162x160xf32>, vector<10x160xf32> -> vector<10x160xf32>
    %135 = arith.addf %130, %134 : vector<10x160xf32>
    %c1_159 = arith.constant 1 : index
    %c0_160 = arith.constant 0 : index
    %136 = vector.load %arg13[%c1_159, %c0_160] : memref<14x162xf32, #tpu.memory_space<vmem>>, vector<10x162xf32>
    %c1_161 = arith.constant 1 : index
    %c0_162 = arith.constant 0 : index
    %c0_163 = arith.constant 0 : index
    %137 = vector.load %arg4[%c1_161, %c0_162, %c0_163] : memref<5x162x160xf32, #tpu.memory_space<vmem>>, vector<1x162x160xf32>
    %138 = vector.shape_cast %137 : vector<1x162x160xf32> to vector<162x160xf32>
    %cst_164 = arith.constant dense<0.000000e+00> : vector<10x160xf32>
    %139 = tpu.matmul %136, %138, %cst_164 {dimension_numbers = #tpu.dot_dimension_numbers<[1], [0], [0], [1], [0, 0, 1, 1], [], []>} : vector<10x162xf32>, vector<162x160xf32>, vector<10x160xf32> -> vector<10x160xf32>
    %140 = arith.addf %135, %139 : vector<10x160xf32>
    %c2_165 = arith.constant 2 : index
    %c0_166 = arith.constant 0 : index
    %141 = vector.load %arg13[%c2_165, %c0_166] : memref<14x162xf32, #tpu.memory_space<vmem>>, vector<10x162xf32>
    %c2_167 = arith.constant 2 : index
    %c0_168 = arith.constant 0 : index
    %c0_169 = arith.constant 0 : index
    %142 = vector.load %arg4[%c2_167, %c0_168, %c0_169] : memref<5x162x160xf32, #tpu.memory_space<vmem>>, vector<1x162x160xf32>
    %143 = vector.shape_cast %142 : vector<1x162x160xf32> to vector<162x160xf32>
    %cst_170 = arith.constant dense<0.000000e+00> : vector<10x160xf32>
    %144 = tpu.matmul %141, %143, %cst_170 {dimension_numbers = #tpu.dot_dimension_numbers<[1], [0], [0], [1], [0, 0, 1, 1], [], []>} : vector<10x162xf32>, vector<162x160xf32>, vector<10x160xf32> -> vector<10x160xf32>
    %145 = arith.addf %140, %144 : vector<10x160xf32>
    %c3_171 = arith.constant 3 : index
    %c0_172 = arith.constant 0 : index
    %146 = vector.load %arg13[%c3_171, %c0_172] : memref<14x162xf32, #tpu.memory_space<vmem>>, vector<10x162xf32>
    %c3_173 = arith.constant 3 : index
    %c0_174 = arith.constant 0 : index
    %c0_175 = arith.constant 0 : index
    %147 = vector.load %arg4[%c3_173, %c0_174, %c0_175] : memref<5x162x160xf32, #tpu.memory_space<vmem>>, vector<1x162x160xf32>
    %148 = vector.shape_cast %147 : vector<1x162x160xf32> to vector<162x160xf32>
    %cst_176 = arith.constant dense<0.000000e+00> : vector<10x160xf32>
    %149 = tpu.matmul %146, %148, %cst_176 {dimension_numbers = #tpu.dot_dimension_numbers<[1], [0], [0], [1], [0, 0, 1, 1], [], []>} : vector<10x162xf32>, vector<162x160xf32>, vector<10x160xf32> -> vector<10x160xf32>
    %150 = arith.addf %145, %149 : vector<10x160xf32>
    %c4_177 = arith.constant 4 : index
    %c0_178 = arith.constant 0 : index
    %151 = vector.load %arg13[%c4_177, %c0_178] : memref<14x162xf32, #tpu.memory_space<vmem>>, vector<10x162xf32>
    %c4_179 = arith.constant 4 : index
    %c0_180 = arith.constant 0 : index
    %c0_181 = arith.constant 0 : index
    %152 = vector.load %arg4[%c4_179, %c0_180, %c0_181] : memref<5x162x160xf32, #tpu.memory_space<vmem>>, vector<1x162x160xf32>
    %153 = vector.shape_cast %152 : vector<1x162x160xf32> to vector<162x160xf32>
    %cst_182 = arith.constant dense<0.000000e+00> : vector<10x160xf32>
    %154 = tpu.matmul %151, %153, %cst_182 {dimension_numbers = #tpu.dot_dimension_numbers<[1], [0], [0], [1], [0, 0, 1, 1], [], []>} : vector<10x162xf32>, vector<162x160xf32>, vector<10x160xf32> -> vector<10x160xf32>
    %155 = arith.addf %150, %154 : vector<10x160xf32>
    %c0_183 = arith.constant 0 : index
    %c0_184 = arith.constant 0 : index
    %156 = vector.load %arg5[%c0_183, %c0_184] : memref<1x160xf32, #tpu.memory_space<vmem>>, vector<1x160xf32>
    %157 = vector.broadcast %156 : vector<1x160xf32> to vector<10x160xf32>
    %158 = arith.addf %155, %157 : vector<10x160xf32>
    %cst_185 = arith.constant 0.000000e+00 : f32
    %159 = vector.broadcast %cst_185 : f32 to vector<10x160xf32>
    %160 = arith.maximumf %158, %159 : vector<10x160xf32>
    %161 = vector.extract_strided_slice %160 {offsets = [0, 0], sizes = [9, 160], strides = [1, 1]} : vector<10x160xf32> to vector<9x160xf32>
    %162 = vector.extract_strided_slice %160 {offsets = [1, 0], sizes = [9, 160], strides = [1, 1]} : vector<10x160xf32> to vector<9x160xf32>
    %163 = arith.maximumf %161, %162 : vector<9x160xf32>
    %164 = vector.extract_strided_slice %163 {offsets = [0, 0], sizes = [9, 144], strides = [1, 1]} : vector<9x160xf32> to vector<9x144xf32>
    %165 = vector.extract_strided_slice %163 {offsets = [0, 16], sizes = [9, 144], strides = [1, 1]} : vector<9x160xf32> to vector<9x144xf32>
    %166 = arith.maximumf %164, %165 : vector<9x144xf32>
    %167 = vector.extract_strided_slice %166 {offsets = [0, 0], sizes = [1, 144], strides = [1, 1]} : vector<9x144xf32> to vector<1x144xf32>
    %c0_186 = arith.constant 0 : index
    %c0_187 = arith.constant 0 : index
    %168 = vector.load %arg14[%c0_186, %c0_187] : memref<5x144xf32, #tpu.memory_space<vmem>>, vector<1x144xf32>
    tpu.vector_store %arg14[%c0_186, %c0_187], %167 {strides = array<i32>} : memref<5x144xf32, #tpu.memory_space<vmem>>, vector<1x144xf32>,
    %169 = vector.extract_strided_slice %166 {offsets = [2, 0], sizes = [1, 144], strides = [1, 1]} : vector<9x144xf32> to vector<1x144xf32>
    %c1_188 = arith.constant 1 : index
    %c0_189 = arith.constant 0 : index
    %170 = vector.load %arg14[%c1_188, %c0_189] : memref<5x144xf32, #tpu.memory_space<vmem>>, vector<1x144xf32>
    tpu.vector_store %arg14[%c1_188, %c0_189], %169 {strides = array<i32>} : memref<5x144xf32, #tpu.memory_space<vmem>>, vector<1x144xf32>,
    %171 = vector.extract_strided_slice %166 {offsets = [4, 0], sizes = [1, 144], strides = [1, 1]} : vector<9x144xf32> to vector<1x144xf32>
    %c2_190 = arith.constant 2 : index
    %c0_191 = arith.constant 0 : index
    %172 = vector.load %arg14[%c2_190, %c0_191] : memref<5x144xf32, #tpu.memory_space<vmem>>, vector<1x144xf32>
    tpu.vector_store %arg14[%c2_190, %c0_191], %171 {strides = array<i32>} : memref<5x144xf32, #tpu.memory_space<vmem>>, vector<1x144xf32>,
    %173 = vector.extract_strided_slice %166 {offsets = [6, 0], sizes = [1, 144], strides = [1, 1]} : vector<9x144xf32> to vector<1x144xf32>
    %c3_192 = arith.constant 3 : index
    %c0_193 = arith.constant 0 : index
    %174 = vector.load %arg14[%c3_192, %c0_193] : memref<5x144xf32, #tpu.memory_space<vmem>>, vector<1x144xf32>
    tpu.vector_store %arg14[%c3_192, %c0_193], %173 {strides = array<i32>} : memref<5x144xf32, #tpu.memory_space<vmem>>, vector<1x144xf32>,
    %175 = vector.extract_strided_slice %166 {offsets = [8, 0], sizes = [1, 144], strides = [1, 1]} : vector<9x144xf32> to vector<1x144xf32>
    %c4_194 = arith.constant 4 : index
    %c0_195 = arith.constant 0 : index
    %176 = vector.load %arg14[%c4_194, %c0_195] : memref<5x144xf32, #tpu.memory_space<vmem>>, vector<1x144xf32>
    tpu.vector_store %arg14[%c4_194, %c0_195], %175 {strides = array<i32>} : memref<5x144xf32, #tpu.memory_space<vmem>>, vector<1x144xf32>,
    %cst_196 = arith.constant 0.000000e+00 : f32
    %177 = vector.broadcast %cst_196 : f32 to vector<1x120xf32>
    %c0_197 = arith.constant 0 : index
    %c0_198 = arith.constant 0 : index
    %178 = vector.load %arg14[%c0_197, %c0_198] : memref<5x144xf32, #tpu.memory_space<vmem>>, vector<1x144xf32>
    %c0_199 = arith.constant 0 : index
    %c0_200 = arith.constant 0 : index
    %c0_201 = arith.constant 0 : index
    %179 = vector.load %arg6[%c0_199, %c0_200, %c0_201] : memref<5x144x120xf32, #tpu.memory_space<vmem>>, vector<1x144x120xf32>
    %180 = vector.shape_cast %179 : vector<1x144x120xf32> to vector<144x120xf32>
    %cst_202 = arith.constant dense<0.000000e+00> : vector<1x120xf32>
    %181 = tpu.matmul %178, %180, %cst_202 {dimension_numbers = #tpu.dot_dimension_numbers<[1], [0], [0], [1], [0, 0, 1, 1], [], []>} : vector<1x144xf32>, vector<144x120xf32>, vector<1x120xf32> -> vector<1x120xf32>
    %182 = arith.addf %177, %181 : vector<1x120xf32>
    %c1_203 = arith.constant 1 : index
    %c0_204 = arith.constant 0 : index
    %183 = vector.load %arg14[%c1_203, %c0_204] : memref<5x144xf32, #tpu.memory_space<vmem>>, vector<1x144xf32>
    %c1_205 = arith.constant 1 : index
    %c0_206 = arith.constant 0 : index
    %c0_207 = arith.constant 0 : index
    %184 = vector.load %arg6[%c1_205, %c0_206, %c0_207] : memref<5x144x120xf32, #tpu.memory_space<vmem>>, vector<1x144x120xf32>
    %185 = vector.shape_cast %184 : vector<1x144x120xf32> to vector<144x120xf32>
    %cst_208 = arith.constant dense<0.000000e+00> : vector<1x120xf32>
    %186 = tpu.matmul %183, %185, %cst_208 {dimension_numbers = #tpu.dot_dimension_numbers<[1], [0], [0], [1], [0, 0, 1, 1], [], []>} : vector<1x144xf32>, vector<144x120xf32>, vector<1x120xf32> -> vector<1x120xf32>
    %187 = arith.addf %182, %186 : vector<1x120xf32>
    %c2_209 = arith.constant 2 : index
    %c0_210 = arith.constant 0 : index
    %188 = vector.load %arg14[%c2_209, %c0_210] : memref<5x144xf32, #tpu.memory_space<vmem>>, vector<1x144xf32>
    %c2_211 = arith.constant 2 : index
    %c0_212 = arith.constant 0 : index
    %c0_213 = arith.constant 0 : index
    %189 = vector.load %arg6[%c2_211, %c0_212, %c0_213] : memref<5x144x120xf32, #tpu.memory_space<vmem>>, vector<1x144x120xf32>
    %190 = vector.shape_cast %189 : vector<1x144x120xf32> to vector<144x120xf32>
    %cst_214 = arith.constant dense<0.000000e+00> : vector<1x120xf32>
    %191 = tpu.matmul %188, %190, %cst_214 {dimension_numbers = #tpu.dot_dimension_numbers<[1], [0], [0], [1], [0, 0, 1, 1], [], []>} : vector<1x144xf32>, vector<144x120xf32>, vector<1x120xf32> -> vector<1x120xf32>
    %192 = arith.addf %187, %191 : vector<1x120xf32>
    %c3_215 = arith.constant 3 : index
    %c0_216 = arith.constant 0 : index
    %193 = vector.load %arg14[%c3_215, %c0_216] : memref<5x144xf32, #tpu.memory_space<vmem>>, vector<1x144xf32>
    %c3_217 = arith.constant 3 : index
    %c0_218 = arith.constant 0 : index
    %c0_219 = arith.constant 0 : index
    %194 = vector.load %arg6[%c3_217, %c0_218, %c0_219] : memref<5x144x120xf32, #tpu.memory_space<vmem>>, vector<1x144x120xf32>
    %195 = vector.shape_cast %194 : vector<1x144x120xf32> to vector<144x120xf32>
    %cst_220 = arith.constant dense<0.000000e+00> : vector<1x120xf32>
    %196 = tpu.matmul %193, %195, %cst_220 {dimension_numbers = #tpu.dot_dimension_numbers<[1], [0], [0], [1], [0, 0, 1, 1], [], []>} : vector<1x144xf32>, vector<144x120xf32>, vector<1x120xf32> -> vector<1x120xf32>
    %197 = arith.addf %192, %196 : vector<1x120xf32>
    %c4_221 = arith.constant 4 : index
    %c0_222 = arith.constant 0 : index
    %198 = vector.load %arg14[%c4_221, %c0_222] : memref<5x144xf32, #tpu.memory_space<vmem>>, vector<1x144xf32>
    %c4_223 = arith.constant 4 : index
    %c0_224 = arith.constant 0 : index
    %c0_225 = arith.constant 0 : index
    %199 = vector.load %arg6[%c4_223, %c0_224, %c0_225] : memref<5x144x120xf32, #tpu.memory_space<vmem>>, vector<1x144x120xf32>
    %200 = vector.shape_cast %199 : vector<1x144x120xf32> to vector<144x120xf32>
    %cst_226 = arith.constant dense<0.000000e+00> : vector<1x120xf32>
    %201 = tpu.matmul %198, %200, %cst_226 {dimension_numbers = #tpu.dot_dimension_numbers<[1], [0], [0], [1], [0, 0, 1, 1], [], []>} : vector<1x144xf32>, vector<144x120xf32>, vector<1x120xf32> -> vector<1x120xf32>
    %202 = arith.addf %197, %201 : vector<1x120xf32>
    %c0_227 = arith.constant 0 : index
    %c0_228 = arith.constant 0 : index
    %203 = vector.load %arg7[%c0_227, %c0_228] : memref<1x120xf32, #tpu.memory_space<vmem>>, vector<1x120xf32>
    %204 = arith.addf %202, %203 : vector<1x120xf32>
    %cst_229 = arith.constant 0.000000e+00 : f32
    %205 = vector.broadcast %cst_229 : f32 to vector<1x120xf32>
    %206 = arith.maximumf %204, %205 : vector<1x120xf32>
    %c0_230 = arith.constant 0 : index
    %c0_231 = arith.constant 0 : index
    %207 = vector.load %arg8[%c0_230, %c0_231] : memref<120x84xf32, #tpu.memory_space<vmem>>, vector<120x84xf32>
    %cst_232 = arith.constant dense<0.000000e+00> : vector<1x84xf32>
    %208 = tpu.matmul %206, %207, %cst_232 {dimension_numbers = #tpu.dot_dimension_numbers<[1], [0], [0], [1], [0, 0, 1, 1], [], []>} : vector<1x120xf32>, vector<120x84xf32>, vector<1x84xf32> -> vector<1x84xf32>
    %c0_233 = arith.constant 0 : index
    %c0_234 = arith.constant 0 : index
    %209 = vector.load %arg9[%c0_233, %c0_234] : memref<1x84xf32, #tpu.memory_space<vmem>>, vector<1x84xf32>
    %210 = arith.addf %208, %209 : vector<1x84xf32>
    %cst_235 = arith.constant 0.000000e+00 : f32
    %211 = vector.broadcast %cst_235 : f32 to vector<1x84xf32>
    %212 = arith.maximumf %210, %211 : vector<1x84xf32>
    %c0_236 = arith.constant 0 : index
    %c0_237 = arith.constant 0 : index
    %213 = vector.load %arg10[%c0_236, %c0_237] : memref<84x10xf32, #tpu.memory_space<vmem>>, vector<84x10xf32>
    %cst_238 = arith.constant dense<0.000000e+00> : vector<1x10xf32>
    %214 = tpu.matmul %212, %213, %cst_238 {dimension_numbers = #tpu.dot_dimension_numbers<[1], [0], [0], [1], [0, 0, 1, 1], [], []>} : vector<1x84xf32>, vector<84x10xf32>, vector<1x10xf32> -> vector<1x10xf32>
    %c0_239 = arith.constant 0 : index
    %c0_240 = arith.constant 0 : index
    %215 = vector.load %arg11[%c0_239, %c0_240] : memref<1x10xf32, #tpu.memory_space<vmem>>, vector<1x10xf32>
    %216 = arith.addf %214, %215 : vector<1x10xf32>
    %c0_241 = arith.constant 0 : index
    %c0_242 = arith.constant 0 : index
    %c0_243 = arith.constant 0 : index
    %217 = vector.load %arg12[%c0_241, %c0_242, %c0_243] : memref<1x1x10xf32, #tpu.memory_space<vmem>>, vector<1x1x10xf32>
    %218 = vector.shape_cast %217 : vector<1x1x10xf32> to vector<1x10xf32>
    %219 = vector.shape_cast %216 : vector<1x10xf32> to vector<1x1x10xf32>
    tpu.vector_store %arg12[%c0_241, %c0_242, %c0_243], %219 {strides = array<i32>} : memref<1x1x10xf32, #tpu.memory_space<vmem>>, vector<1x1x10xf32>,
    return
  }
  func.func @transform_0(%arg0: i32) -> (i32, i32, i32, i32) {
    %c0_i32 = arith.constant 0 : i32
    %c0_i32_0 = arith.constant 0 : i32
    %c0_i32_1 = arith.constant 0 : i32
    %c0_i32_2 = arith.constant 0 : i32
    return %arg0, %c0_i32, %c0_i32_0, %c0_i32_1 : i32, i32, i32, i32
  }
  func.func @transform_1(%arg0: i32) -> (i32, i32, i32, i32) {
    %c0_i32 = arith.constant 0 : i32
    %c0_i32_0 = arith.constant 0 : i32
    %c0_i32_1 = arith.constant 0 : i32
    %c0_i32_2 = arith.constant 0 : i32
    %c0_i32_3 = arith.constant 0 : i32
    return %c0_i32, %c0_i32_0, %c0_i32_1, %c0_i32_2 : i32, i32, i32, i32
  }
  func.func @transform_2(%arg0: i32) -> (i32, i32) {
    %c0_i32 = arith.constant 0 : i32
    %c0_i32_0 = arith.constant 0 : i32
    %c0_i32_1 = arith.constant 0 : i32
    return %c0_i32, %c0_i32_0 : i32, i32
  }
  func.func @transform_3(%arg0: i32) -> (i32, i32, i32) {
    %c0_i32 = arith.constant 0 : i32
    %c0_i32_0 = arith.constant 0 : i32
    %c0_i32_1 = arith.constant 0 : i32
    %c0_i32_2 = arith.constant 0 : i32
    return %c0_i32, %c0_i32_0, %c0_i32_1 : i32, i32, i32
  }
  func.func @transform_4(%arg0: i32) -> (i32, i32) {
    %c0_i32 = arith.constant 0 : i32
    %c0_i32_0 = arith.constant 0 : i32
    %c0_i32_1 = arith.constant 0 : i32
    return %c0_i32, %c0_i32_0 : i32, i32
  }
  func.func @transform_5(%arg0: i32) -> (i32, i32, i32) {
    %c0_i32 = arith.constant 0 : i32
    %c0_i32_0 = arith.constant 0 : i32
    %c0_i32_1 = arith.constant 0 : i32
    %c0_i32_2 = arith.constant 0 : i32
    return %c0_i32, %c0_i32_0, %c0_i32_1 : i32, i32, i32
  }
  func.func @transform_6(%arg0: i32) -> (i32, i32) {
    %c0_i32 = arith.constant 0 : i32
    %c0_i32_0 = arith.constant 0 : i32
    %c0_i32_1 = arith.constant 0 : i32
    return %c0_i32, %c0_i32_0 : i32, i32
  }
  func.func @transform_7(%arg0: i32) -> (i32, i32) {
    %c0_i32 = arith.constant 0 : i32
    %c0_i32_0 = arith.constant 0 : i32
    %c0_i32_1 = arith.constant 0 : i32
    return %c0_i32, %c0_i32_0 : i32, i32
  }
  func.func @transform_8(%arg0: i32) -> (i32, i32) {
    %c0_i32 = arith.constant 0 : i32
    %c0_i32_0 = arith.constant 0 : i32
    %c0_i32_1 = arith.constant 0 : i32
    return %c0_i32, %c0_i32_0 : i32, i32
  }
  func.func @transform_9(%arg0: i32) -> (i32, i32) {
    %c0_i32 = arith.constant 0 : i32
    %c0_i32_0 = arith.constant 0 : i32
    %c0_i32_1 = arith.constant 0 : i32
    return %c0_i32, %c0_i32_0 : i32, i32
  }
  func.func @transform_10(%arg0: i32) -> (i32, i32) {
    %c0_i32 = arith.constant 0 : i32
    %c0_i32_0 = arith.constant 0 : i32
    %c0_i32_1 = arith.constant 0 : i32
    return %c0_i32, %c0_i32_0 : i32, i32
  }
  func.func @transform_11(%arg0: i32) -> (i32, i32, i32) {
    %c0_i32 = arith.constant 0 : i32
    %c0_i32_0 = arith.constant 0 : i32
    %c0_i32_1 = arith.constant 0 : i32
    return %arg0, %c0_i32, %c0_i32_0 : i32, i32, i32
  }
}

</mosaic_0001>

<llo_original>
// kernel: net_forward.1
$region0: #{net_forward.1}
  #allocation0 [shape = 'u32[]', space=smem, size = 0x4, offset = 0x4, fixed_abs, tag = 'smem constant byte address 0x4 - core index']
  #allocation1 [shape = 'u32[72,128]{1,0:T(1,128)}', space=vmem, size = 0x9000, scoped, tag = 'internal scratch']
  #allocation2 [shape = 'f32[14,162]{1,0:T(8,128)}', space=vmem, size = 0x4000, scoped, tag = 'scratch operand']
  #allocation3 [shape = 'f32[5,144]{1,0:T(8,128)}', space=vmem, size = 0x2000, scoped, tag = 'scratch operand']
  %s0 = inlined_call_operand.vmem [shape: f32[2,3,32,32], index: 0, kind: input, shape index: {}]
  %s1 = inlined_call_operand.vmem [shape: f32[5,3,32,168], index: 1, kind: input, shape index: {}]
  %s2 = inlined_call_operand.vmem [shape: f32[1,168], index: 2, kind: input, shape index: {}]
  %s3 = inlined_call_operand.vmem [shape: f32[5,162,160], index: 3, kind: input, shape index: {}]
  %s4 = inlined_call_operand.vmem [shape: f32[1,160], index: 4, kind: input, shape index: {}]
  %s5 = inlined_call_operand.vmem [shape: f32[5,144,120], index: 5, kind: input, shape index: {}]
  %s6 = inlined_call_operand.vmem [shape: f32[1,120], index: 6, kind: input, shape index: {}]
  %s7 = inlined_call_operand.vmem [shape: f32[120,84], index: 7, kind: input, shape index: {}]
  %s8 = inlined_call_operand.vmem [shape: f32[1,84], index: 8, kind: input, shape index: {}]
  %s9 = inlined_call_operand.vmem [shape: f32[84,10], index: 9, kind: input, shape index: {}]
  %s10 = inlined_call_operand.vmem [shape: f32[1,10], index: 10, kind: input, shape index: {}]
  %s11 = inlined_call_operand.hbm [shape: f32[2,1,10], index: 11, kind: output, shape index: {}]
  %s12 = sld [smem:[#allocation0]]
  $region77: #{net_forward.1} parent=0
    _
  %s14 = ssub.s32 1, %s12
  %s15 = scalar_select 0, %s14, %s12
  $region1: #{net_forward.1} parent=0
    #allocation4 [shape = 'u8[1024]{0}', space=vmem, size = 0x400, scoped, tag = 'output window, operand 0']
    #allocation5 [shape = 's32[2]{0}', space=sflag, size = 0x8, scoped, tag = 'scoped memory for net_forward.1']
    %16 = vsyncpa [#allocation5], 0
    %s17 = scalar_lea.sflag [#allocation5], 1
    %18 = vsyncpa %s17, 0
    loop: start=0, step=1, limit=4
    $region2: #{net_forward.1} parent=1 // loop_pre_header
      _
    $region3: #{net_forward.1} parent=1 // loop_header
      %s20 = sphi 0, %s24
      %p21 = scmp.ge.s32.totalorder %s20, 4
      %s30 = sphi 0, %s32
      %s33 = sphi 0, %s30
      %s34 = sphi 0, %s33
      %s50 = sphi 0, %s34
      %s54 = sphi 0, %s54
      %s56 = sphi 0, %s54
      %s57 = sphi 0, %s56
      %s71 = sphi 0, %s57
      %s75 = sphi 0, %s75
      %s77 = sphi 0, %s75
      %s78 = sphi 0, %s77
      %s92 = sphi 0, %s78
      %s96 = sphi 0, %s96
      %s98 = sphi 0, %s96
      %s99 = sphi 0, %s98
      %s113 = sphi 0, %s99
      %s117 = sphi 0, %s117
      %s119 = sphi 0, %s117
      %s120 = sphi 0, %s119
      %s134 = sphi 0, %s120
      %s138 = sphi 0, %s138
      %s140 = sphi 0, %s138
      %s141 = sphi 0, %s140
      %s155 = sphi 0, %s141
      %s159 = sphi 0, %s159
      %s161 = sphi 0, %s159
      %s162 = sphi 0, %s161
      %s176 = sphi 0, %s162
      %s180 = sphi 0, %s180
      %s182 = sphi 0, %s180
      %s183 = sphi 0, %s182
      %s197 = sphi 0, %s183
      %s201 = sphi 0, %s201
      %s203 = sphi 0, %s201
      %s204 = sphi 0, %s203
      %s218 = sphi 0, %s204
      %s222 = sphi 0, %s222
      %s224 = sphi 0, %s222
      %s225 = sphi 0, %s224
      %s239 = sphi 0, %s225
      %s243 = sphi 0, %s243
      %s245 = sphi 0, %s243
      %s246 = sphi 0, %s245
      %s260 = sphi 0, %s246
      %s266 = sphi 0, %s268
      %s269 = sphi 0, %s266
      %s270 = sphi 0, %s269
      %s286 = sphi 0, %s270
    $region4: #{net_forward.1} parent=1 // loop_header_branch
      %23 = sbr.rel (%p21) target = $region8
    $region5: #{net_forward.1} parent=1 // loop_body
      %s25 = ssub.s32 %s20, 1
      %s26 = ssub.s32 %s20, 2
      %s27 = sadd.s32 %s20, 1
      %s28 = ssub.s32 %s20, %s27
      %p29 = scmp.eq.s32.totalorder %s28, 0
      %s31 = sadd.s32 %s30, 1
      %s32 = scalar_select %p29, %s30, %s31
      %p35 = pneg %p29
      %p36 = scmp.eq.s32.totalorder %s20, 1
      %p37 = por %p35, %p36
      %p38 = scmp.ne.s32.totalorder %s30, %s33
      %p39 = scmp.eq.s32.totalorder %s20, 0
      %p40 = por %p38, %p39
      %p41 = scmp.ne.s32.totalorder %s30, %s33
      %p42 = scmp.eq.s32.totalorder %s25, 1
      %p43 = por %p41, %p42
      %p44 = scmp.ne.s32.totalorder %s33, %s34
      %p45 = scmp.eq.s32.totalorder %s25, 0
      %p46 = por %p44, %p45
      %p47 = scmp.ne.s32.totalorder %s33, %s34
      %p48 = scmp.eq.s32.totalorder %s26, 1
      %p49 = por %p47, %p48
      %p51 = scmp.ne.s32.totalorder %s34, %s50
      %p52 = scmp.eq.s32.totalorder %s26, 0
      %p53 = por %p51, %p52
      %s55 = sadd.s32 %s54, 1
      %p58 = scmp.eq.s32.totalorder %s20, 1
      %p59 = scmp.ne.s32.totalorder %s54, %s56
      %p60 = scmp.eq.s32.totalorder %s20, 0
      %p61 = por %p59, %p60
      %p62 = scmp.ne.s32.totalorder %s54, %s56
      %p63 = scmp.eq.s32.totalorder %s25, 1
      %p64 = por %p62, %p63
      %p65 = scmp.ne.s32.totalorder %s56, %s57
      %p66 = scmp.eq.s32.totalorder %s25, 0
      %p67 = por %p65, %p66
      %p68 = scmp.ne.s32.totalorder %s56, %s57
      %p69 = scmp.eq.s32.totalorder %s26, 1
      %p70 = por %p68, %p69
      %p72 = scmp.ne.s32.totalorder %s57, %s71
      %p73 = scmp.eq.s32.totalorder %s26, 0
      %p74 = por %p72, %p73
      %s76 = sadd.s32 %s75, 1
      %p79 = scmp.eq.s32.totalorder %s20, 1
      %p80 = scmp.ne.s32.totalorder %s75, %s77
      %p81 = scmp.eq.s32.totalorder %s20, 0
      %p82 = por %p80, %p81
      %p83 = scmp.ne.s32.totalorder %s75, %s77
      %p84 = scmp.eq.s32.totalorder %s25, 1
      %p85 = por %p83, %p84
      %p86 = scmp.ne.s32.totalorder %s77, %s78
      %p87 = scmp.eq.s32.totalorder %s25, 0
      %p88 = por %p86, %p87
      %p89 = scmp.ne.s32.totalorder %s77, %s78
      %p90 = scmp.eq.s32.totalorder %s26, 1
      %p91 = por %p89, %p90
      %p93 = scmp.ne.s32.totalorder %s78, %s92
      %p94 = scmp.eq.s32.totalorder %s26, 0
      %p95 = por %p93, %p94
      %s97 = sadd.s32 %s96, 1
      %p100 = scmp.eq.s32.totalorder %s20, 1
      %p101 = scmp.ne.s32.totalorder %s96, %s98
      %p102 = scmp.eq.s32.totalorder %s20, 0
      %p103 = por %p101, %p102
      %p104 = scmp.ne.s32.totalorder %s96, %s98
      %p105 = scmp.eq.s32.totalorder %s25, 1
      %p106 = por %p104, %p105
      %p107 = scmp.ne.s32.totalorder %s98, %s99
      %p108 = scmp.eq.s32.totalorder %s25, 0
      %p109 = por %p107, %p108
      %p110 = scmp.ne.s32.totalorder %s98, %s99
      %p111 = scmp.eq.s32.totalorder %s26, 1
      %p112 = por %p110, %p111
      %p114 = scmp.ne.s32.totalorder %s99, %s113
      %p115 = scmp.eq.s32.totalorder %s26, 0
      %p116 = por %p114, %p115
      %s118 = sadd.s32 %s117, 1
      %p121 = scmp.eq.s32.totalorder %s20, 1
      %p122 = scmp.ne.s32.totalorder %s117, %s119
      %p123 = scmp.eq.s32.totalorder %s20, 0
      %p124 = por %p122, %p123
      %p125 = scmp.ne.s32.totalorder %s117, %s119
      %p126 = scmp.eq.s32.totalorder %s25, 1
      %p127 = por %p125, %p126
      %p128 = scmp.ne.s32.totalorder %s119, %s120
      %p129 = scmp.eq.s32.totalorder %s25, 0
      %p130 = por %p128, %p129
      %p131 = scmp.ne.s32.totalorder %s119, %s120
      %p132 = scmp.eq.s32.totalorder %s26, 1
      %p133 = por %p131, %p132
      %p135 = scmp.ne.s32.totalorder %s120, %s134
      %p136 = scmp.eq.s32.totalorder %s26, 0
      %p137 = por %p135, %p136
      %s139 = sadd.s32 %s138, 1
      %p142 = scmp.eq.s32.totalorder %s20, 1
      %p143 = scmp.ne.s32.totalorder %s138, %s140
      %p144 = scmp.eq.s32.totalorder %s20, 0
      %p145 = por %p143, %p144
      %p146 = scmp.ne.s32.totalorder %s138, %s140
      %p147 = scmp.eq.s32.totalorder %s25, 1
      %p148 = por %p146, %p147
      %p149 = scmp.ne.s32.totalorder %s140, %s141
      %p150 = scmp.eq.s32.totalorder %s25, 0
      %p151 = por %p149, %p150
      %p152 = scmp.ne.s32.totalorder %s140, %s141
      %p153 = scmp.eq.s32.totalorder %s26, 1
      %p154 = por %p152, %p153
      %p156 = scmp.ne.s32.totalorder %s141, %s155
      %p157 = scmp.eq.s32.totalorder %s26, 0
      %p158 = por %p156, %p157
      %s160 = sadd.s32 %s159, 1
      %p163 = scmp.eq.s32.totalorder %s20, 1
      %p164 = scmp.ne.s32.totalorder %s159, %s161
      %p165 = scmp.eq.s32.totalorder %s20, 0
      %p166 = por %p164, %p165
      %p167 = scmp.ne.s32.totalorder %s159, %s161
      %p168 = scmp.eq.s32.totalorder %s25, 1
      %p169 = por %p167, %p168
      %p170 = scmp.ne.s32.totalorder %s161, %s162
      %p171 = scmp.eq.s32.totalorder %s25, 0
      %p172 = por %p170, %p171
      %p173 = scmp.ne.s32.totalorder %s161, %s162
      %p174 = scmp.eq.s32.totalorder %s26, 1
      %p175 = por %p173, %p174
      %p177 = scmp.ne.s32.totalorder %s162, %s176
      %p178 = scmp.eq.s32.totalorder %s26, 0
      %p179 = por %p177, %p178
      %s181 = sadd.s32 %s180, 1
      %p184 = scmp.eq.s32.totalorder %s20, 1
      %p185 = scmp.ne.s32.totalorder %s180, %s182
      %p186 = scmp.eq.s32.totalorder %s20, 0
      %p187 = por %p185, %p186
      %p188 = scmp.ne.s32.totalorder %s180, %s182
      %p189 = scmp.eq.s32.totalorder %s25, 1
      %p190 = por %p188, %p189
      %p191 = scmp.ne.s32.totalorder %s182, %s183
      %p192 = scmp.eq.s32.totalorder %s25, 0
      %p193 = por %p191, %p192
      %p194 = scmp.ne.s32.totalorder %s182, %s183
      %p195 = scmp.eq.s32.totalorder %s26, 1
      %p196 = por %p194, %p195
      %p198 = scmp.ne.s32.totalorder %s183, %s197
      %p199 = scmp.eq.s32.totalorder %s26, 0
      %p200 = por %p198, %p199
      %s202 = sadd.s32 %s201, 1
      %p205 = scmp.eq.s32.totalorder %s20, 1
      %p206 = scmp.ne.s32.totalorder %s201, %s203
      %p207 = scmp.eq.s32.totalorder %s20, 0
      %p208 = por %p206, %p207
      %p209 = scmp.ne.s32.totalorder %s201, %s203
      %p210 = scmp.eq.s32.totalorder %s25, 1
      %p211 = por %p209, %p210
      %p212 = scmp.ne.s32.totalorder %s203, %s204
      %p213 = scmp.eq.s32.totalorder %s25, 0
      %p214 = por %p212, %p213
      %p215 = scmp.ne.s32.totalorder %s203, %s204
      %p216 = scmp.eq.s32.totalorder %s26, 1
      %p217 = por %p215, %p216
      %p219 = scmp.ne.s32.totalorder %s204, %s218
      %p220 = scmp.eq.s32.totalorder %s26, 0
      %p221 = por %p219, %p220
      %s223 = sadd.s32 %s222, 1
      %p226 = scmp.eq.s32.totalorder %s20, 1
      %p227 = scmp.ne.s32.totalorder %s222, %s224
      %p228 = scmp.eq.s32.totalorder %s20, 0
      %p229 = por %p227, %p228
      %p230 = scmp.ne.s32.totalorder %s222, %s224
      %p231 = scmp.eq.s32.totalorder %s25, 1
      %p232 = por %p230, %p231
      %p233 = scmp.ne.s32.totalorder %s224, %s225
      %p234 = scmp.eq.s32.totalorder %s25, 0
      %p235 = por %p233, %p234
      %p236 = scmp.ne.s32.totalorder %s224, %s225
      %p237 = scmp.eq.s32.totalorder %s26, 1
      %p238 = por %p236, %p237
      %p240 = scmp.ne.s32.totalorder %s225, %s239
      %p241 = scmp.eq.s32.totalorder %s26, 0
      %p242 = por %p240, %p241
      %s244 = sadd.s32 %s243, 1
      %p247 = scmp.eq.s32.totalorder %s20, 1
      %p248 = scmp.ne.s32.totalorder %s243, %s245
      %p249 = scmp.eq.s32.totalorder %s20, 0
      %p250 = por %p248, %p249
      %p251 = scmp.ne.s32.totalorder %s243, %s245
      %p252 = scmp.eq.s32.totalorder %s25, 1
      %p253 = por %p251, %p252
      %p254 = scmp.ne.s32.totalorder %s245, %s246
      %p255 = scmp.eq.s32.totalorder %s25, 0
      %p256 = por %p254, %p255
      %p257 = scmp.ne.s32.totalorder %s245, %s246
      %p258 = scmp.eq.s32.totalorder %s26, 1
      %p259 = por %p257, %p258
      %p261 = scmp.ne.s32.totalorder %s246, %s260
      %p262 = scmp.eq.s32.totalorder %s26, 0
      %p263 = por %p261, %p262
      %s264 = ssub.s32 %s20, %s27
      %p265 = scmp.eq.s32.totalorder %s264, 0
      %s267 = sadd.s32 %s266, 1
      %s268 = scalar_select %p265, %s266, %s267
      %p271 = pneg %p265
      %p272 = scmp.eq.s32.totalorder %s20, 1
      %p273 = por %p271, %p272
      %p274 = scmp.ne.s32.totalorder %s266, %s269
      %p275 = scmp.eq.s32.totalorder %s20, 0
      %p276 = por %p274, %p275
      %p277 = scmp.ne.s32.totalorder %s266, %s269
      %p278 = scmp.eq.s32.totalorder %s25, 1
      %p279 = por %p277, %p278
      %p280 = scmp.ne.s32.totalorder %s269, %s270
      %p281 = scmp.eq.s32.totalorder %s25, 0
      %p282 = por %p280, %p281
      %p283 = scmp.ne.s32.totalorder %s269, %s270
      %p284 = scmp.eq.s32.totalorder %s26, 1
      %p285 = por %p283, %p284
      %p287 = scmp.ne.s32.totalorder %s270, %s286
      %p288 = scmp.eq.s32.totalorder %s26, 0
      %p289 = por %p287, %p288
      %p290 = scmp.le.s32.totalorder 1, %s20
      %p291 = scmp.lt.s32.totalorder %s20, 3
      %p292 = pnand %p290, %p291
      %p293 = pneg %p292
      // Predicated region
      $region9: #{net_forward.1} parent=5 // pred_check
        _
      $region10: #{net_forward.1} parent=5 // pred_check_branch
        %295 = sbr.rel (%p292) target = $region12
      $region11: #{net_forward.1} parent=5 // pred_region
        %s296 = ssub.s32 %s20, 1
        // Predicated region
        $region13: #{net_forward.1} parent=11 // pred_check
          %p297 = pneg %p67
        $region14: #{net_forward.1} parent=11 // pred_check_branch
          %299 = sbr.rel (%p297) target = $region16
        $region15: #{net_forward.1} parent=11 // pred_region
          _
        $region16: #{net_forward.1} parent=11 // pred_fallthru
          _
        // Predicated region
        $region17: #{net_forward.1} parent=11 // pred_check
          %p300 = pneg %p88
        $region18: #{net_forward.1} parent=11 // pred_check_branch
          %302 = sbr.rel (%p300) target = $region20
        $region19: #{net_forward.1} parent=11 // pred_region
          _
        $region20: #{net_forward.1} parent=11 // pred_fallthru
          _
        // Predicated region
        $region21: #{net_forward.1} parent=11 // pred_check
          %p303 = pneg %p109
        $region22: #{net_forward.1} parent=11 // pred_check_branch
          %305 = sbr.rel (%p303) target = $region24
        $region23: #{net_forward.1} parent=11 // pred_region
          _
        $region24: #{net_forward.1} parent=11 // pred_fallthru
          _
        // Predicated region
        $region25: #{net_forward.1} parent=11 // pred_check
          %p306 = pneg %p130
        $region26: #{net_forward.1} parent=11 // pred_check_branch
          %308 = sbr.rel (%p306) target = $region28
        $region27: #{net_forward.1} parent=11 // pred_region
          _
        $region28: #{net_forward.1} parent=11 // pred_fallthru
          _
        // Predicated region
        $region29: #{net_forward.1} parent=11 // pred_check
          %p309 = pneg %p151
        $region30: #{net_forward.1} parent=11 // pred_check_branch
          %311 = sbr.rel (%p309) target = $region32
        $region31: #{net_forward.1} parent=11 // pred_region
          _
        $region32: #{net_forward.1} parent=11 // pred_fallthru
          _
        // Predicated region
        $region33: #{net_forward.1} parent=11 // pred_check
          %p312 = pneg %p172
        $region34: #{net_forward.1} parent=11 // pred_check_branch
          %314 = sbr.rel (%p312) target = $region36
        $region35: #{net_forward.1} parent=11 // pred_region
          _
        $region36: #{net_forward.1} parent=11 // pred_fallthru
          _
        // Predicated region
        $region37: #{net_forward.1} parent=11 // pred_check
          %p315 = pneg %p193
        $region38: #{net_forward.1} parent=11 // pred_check_branch
          %317 = sbr.rel (%p315) target = $region40
        $region39: #{net_forward.1} parent=11 // pred_region
          _
        $region40: #{net_forward.1} parent=11 // pred_fallthru
          _
        // Predicated region
        $region41: #{net_forward.1} parent=11 // pred_check
          %p318 = pneg %p214
        $region42: #{net_forward.1} parent=11 // pred_check_branch
          %320 = sbr.rel (%p318) target = $region44
        $region43: #{net_forward.1} parent=11 // pred_region
          _
        $region44: #{net_forward.1} parent=11 // pred_fallthru
          _
        // Predicated region
        $region45: #{net_forward.1} parent=11 // pred_check
          %p321 = pneg %p235
        $region46: #{net_forward.1} parent=11 // pred_check_branch
          %323 = sbr.rel (%p321) target = $region48
        $region47: #{net_forward.1} parent=11 // pred_region
          _
        $region48: #{net_forward.1} parent=11 // pred_fallthru
          _
        // Predicated region
        $region49: #{net_forward.1} parent=11 // pred_check
          %p324 = pneg %p256
        $region50: #{net_forward.1} parent=11 // pred_check_branch
          %326 = sbr.rel (%p324) target = $region52
        $region51: #{net_forward.1} parent=11 // pred_region
          _
        $region52: #{net_forward.1} parent=11 // pred_fallthru
          _
      $region12: #{net_forward.1} parent=5 // pred_fallthru
        _
      %p327 = scmp.lt.s32.totalorder %s20, 2
      // Predicated region
      $region53: #{net_forward.1} parent=5 // pred_check
        %p328 = pneg %p327
      $region54: #{net_forward.1} parent=5 // pred_check_branch
        %330 = sbr.rel (%p328) target = $region56
      $region55: #{net_forward.1} parent=5 // pred_region
        // Predicated region
        $region57: #{net_forward.1} parent=55 // pred_check
          %p331 = pneg %p40
        $region58: #{net_forward.1} parent=55 // pred_check_branch
          %333 = sbr.rel (%p331) target = $region60
        $region59: #{net_forward.1} parent=55 // pred_region
          %p334 = scmp.lt.s32.totalorder %s20, 1
          %s335 = scalar_select %p334, %s20, 1
          %s336 = smul.addr %s335, 12
          %s337 = smul.addr %s336, 8
          %s338 = scalar_lea.vmem %s0, %s337
        $region60: #{net_forward.1} parent=55 // pred_fallthru
          _
      $region56: #{net_forward.1} parent=5 // pred_fallthru
        _
      %p339 = scmp.le.s32.totalorder 1, %s20
      %p340 = scmp.lt.s32.totalorder %s20, 3
      %p341 = pnand %p339, %p340
      %p342 = pneg %p341
      // Predicated region
      $region61: #{net_forward.1} parent=5 // pred_check
        _
      $region62: #{net_forward.1} parent=5 // pred_check_branch
        %344 = sbr.rel (%p341) target = $region64
      $region63: #{net_forward.1} parent=5 // pred_region
        %s345 = ssub.s32 %s20, 1
        %p346 = scmp.lt.s32.totalorder %s25, 1
        %s347 = scalar_select %p346, %s25, 1
        %s348 = smul.addr %s347, 12
        %s349 = smul.addr %s348, 8
        %s350 = scalar_lea.vmem %s0, %s349
        %p351 = pneg %p46
        %p352 = pneg %p43
        %p353 = pneg %p67
        %p354 = pneg %p64
        %p355 = pneg %p88
        %p356 = pneg %p85
        %p357 = pneg %p109
        %p358 = pneg %p106
        %p359 = pneg %p130
        %p360 = pneg %p127
        %p361 = pneg %p151
        %p362 = pneg %p148
        %p363 = pneg %p172
        %p364 = pneg %p169
        %p365 = pneg %p193
        %p366 = pneg %p190
        %p367 = pneg %p214
        %p368 = pneg %p211
        %p369 = pneg %p235
        %p370 = pneg %p232
        %p371 = pneg %p256
        %p372 = pneg %p253
        %p373 = pneg %p282
        %p374 = pneg %p279
        %s375 = sand.u32 %s269, 1
        %s376 = scalar_lea.sflag [#allocation5], %s375
        %s377 = sand.u32 %s269, 1
        %s378 = scalar_lea.vmem [#allocation4], %s377
        %p379 = scmp.lt.s32.totalorder %s25, 1
        %s380 = scalar_select %p379, %s25, 1
        %s381 = smul.addr %s380, 12
        %s382 = smul.addr %s381, 8
        %s383 = scalar_lea.vmem %s0, %s382
        %v384 = vld [vmem:[%s383] sm:$0xff]
        %v385 = vld [vmem:[%s383 + $0x8] sm:$0xff]
        %v386 = vld [vmem:[%s383 + $0x10] sm:$0xff]
        %v387 = vld [vmem:[%s383 + $0x18] sm:$0xf]
        %v388 = vld [vmem:[%s1] sm:$0xff]
        %v389 = vld [vmem:[%s1 + $0x8] sm:$0xff]
        %v390 = vld [vmem:[%s1 + $0x10] sm:$0xff]
        %v391 = vld [vmem:[%s1 + $0x18] sm:$0xff]
        %v392 = vld [vmem:[%s1 + $0x20] sm:$0xff]
        %v393 = vld [vmem:[%s1 + $0x28] sm:$0xff]
        %v394 = vld [vmem:[%s1 + $0x30] sm:$0xff]
        %v395 = vld [vmem:[%s1 + $0x38] sm:$0xff]
        %s396 = scalar_lea.vmem %s383, 32
        %v397 = vld [vmem:[%s396] sm:$0xff]
        %v398 = vld [vmem:[%s396 + $0x8] sm:$0xff]
        %v399 = vld [vmem:[%s396 + $0x10] sm:$0xff]
        %v400 = vld [vmem:[%s396 + $0x18] sm:$0xf]
        %s401 = scalar_lea.vmem %s1, 64
        %v402 = vld [vmem:[%s401] sm:$0xff]
        %v403 = vld [vmem:[%s401 + $0x8] sm:$0xff]
        %v404 = vld [vmem:[%s401 + $0x10] sm:$0xff]
        %v405 = vld [vmem:[%s401 + $0x18] sm:$0xff]
        %v406 = vld [vmem:[%s401 + $0x20] sm:$0xff]
        %v407 = vld [vmem:[%s401 + $0x28] sm:$0xff]
        %v408 = vld [vmem:[%s401 + $0x30] sm:$0xff]
        %v409 = vld [vmem:[%s401 + $0x38] sm:$0xff]
        %vm410 = vcmask 261120
        %v412 = vsel %vm410, %v397, 0
        %v415 = vsel %vm410, %v398, 0
        %v418 = vsel %vm410, %v399, 0
        %v421 = vsel %vm410, %v400, 0
        %423 = vmatpush.msra.mxu0 0.0
        %424 = vmatpush.msra.mxu0 0.0
        %425 = vmatpush.msra.mxu0 0.0
        %426 = vmatpush.msra.mxu0 0.0
        %427 = vmatpush.msra.mxu0 0.0
        %428 = vmatpush.msra.mxu0 0.0
        %429 = vmatpush.msra.mxu0 0.0
        %430 = vmatpush.msra.mxu0 0.0
        %431 = vmatpush.msra.mxu0 0.0
        %432 = vmatpush.msra.mxu0 0.0
        %433 = vmatpush.msra.mxu0 0.0
        %434 = vmatpush.msra.mxu0 0.0
        %435 = vmatpush.msra.mxu0 %v408
        %436 = vmatpush.msra.mxu0 %v406
        %437 = vmatpush.msra.mxu0 %v404
        %438 = vmatpush.msra.mxu0 %v402
        %439 = vmatmul.f32.gmra.mxu0 %v412
        %v440 = vpop.f32.mrf.mxu0
        %v441 = vadd.f32 0.0, %v440
        %442 = vmatmul.f32.gmra.mxu0 %v415
        %v443 = vpop.f32.mrf.mxu0
        %v444 = vadd.f32 0.0, %v443
        %445 = vmatmul.f32.gmra.mxu0 %v418
        %v446 = vpop.f32.mrf.mxu0
        %v447 = vadd.f32 0.0, %v446
        %448 = vmatmul.f32.gmra.mxu0 %v421
        %v449 = vpop.f32.mrf.mxu0
        %v450 = vadd.f32 0.0, %v449
        %451 = vdwg.mxu0
        %452 = vmatpush.msra.mxu0 0.0
        %453 = vmatpush.msra.mxu0 0.0
        %454 = vmatpush.msra.mxu0 0.0
        %455 = vmatpush.msra.mxu0 0.0
        %456 = vmatpush.msra.mxu0 0.0
        %457 = vmatpush.msra.mxu0 0.0
        %458 = vmatpush.msra.mxu0 0.0
        %459 = vmatpush.msra.mxu0 0.0
        %460 = vmatpush.msra.mxu0 0.0
        %461 = vmatpush.msra.mxu0 0.0
        %462 = vmatpush.msra.mxu0 0.0
        %463 = vmatpush.msra.mxu0 0.0
        %464 = vmatpush.msra.mxu0 %v409
        %465 = vmatpush.msra.mxu0 %v407
        %466 = vmatpush.msra.mxu0 %v405
        %467 = vmatpush.msra.mxu0 %v403
        %468 = vmatmul.f32.gmra.mxu0 %v412
        %v469 = vpop.f32.mrf.mxu0
        %v470 = vadd.f32 0.0, %v469
        %471 = vmatmul.f32.gmra.mxu0 %v415
        %v472 = vpop.f32.mrf.mxu0
        %v473 = vadd.f32 0.0, %v472
        %474 = vmatmul.f32.gmra.mxu0 %v418
        %v475 = vpop.f32.mrf.mxu0
        %v476 = vadd.f32 0.0, %v475
        %477 = vmatmul.f32.gmra.mxu0 %v421
        %v478 = vpop.f32.mrf.mxu0
        %v479 = vadd.f32 0.0, %v478
        %480 = vdwg.mxu0
        %v482 = vsel %vm410, %v384, 0
        %v485 = vsel %vm410, %v385, 0
        %v488 = vsel %vm410, %v386, 0
        %v491 = vsel %vm410, %v387, 0
        %493 = vmatpush.msra.mxu0 0.0
        %494 = vmatpush.msra.mxu0 0.0
        %495 = vmatpush.msra.mxu0 0.0
        %496 = vmatpush.msra.mxu0 0.0
        %497 = vmatpush.msra.mxu0 0.0
        %498 = vmatpush.msra.mxu0 0.0
        %499 = vmatpush.msra.mxu0 0.0
        %500 = vmatpush.msra.mxu0 0.0
        %501 = vmatpush.msra.mxu0 0.0
        %502 = vmatpush.msra.mxu0 0.0
        %503 = vmatpush.msra.mxu0 0.0
        %504 = vmatpush.msra.mxu0 0.0
        %505 = vmatpush.msra.mxu0 %v394
        %506 = vmatpush.msra.mxu0 %v392
        %507 = vmatpush.msra.mxu0 %v390
        %508 = vmatpush.msra.mxu0 %v388
        %509 = vmatmul.f32.gmra.mxu0 %v482
        %v510 = vpop.f32.mrf.mxu0
        %v511 = vadd.f32 %v441, %v510
        %512 = vmatmul.f32.gmra.mxu0 %v485
        %v513 = vpop.f32.mrf.mxu0
        %v514 = vadd.f32 %v444, %v513
        %515 = vmatmul.f32.gmra.mxu0 %v488
        %v516 = vpop.f32.mrf.mxu0
        %v517 = vadd.f32 %v447, %v516
        %518 = vmatmul.f32.gmra.mxu0 %v491
        %v519 = vpop.f32.mrf.mxu0
        %v520 = vadd.f32 %v450, %v519
        %521 = vdwg.mxu0
        %522 = vmatpush.msra.mxu0 0.0
        %523 = vmatpush.msra.mxu0 0.0
        %524 = vmatpush.msra.mxu0 0.0
        %525 = vmatpush.msra.mxu0 0.0
        %526 = vmatpush.msra.mxu0 0.0
        %527 = vmatpush.msra.mxu0 0.0
        %528 = vmatpush.msra.mxu0 0.0
        %529 = vmatpush.msra.mxu0 0.0
        %530 = vmatpush.msra.mxu0 0.0
        %531 = vmatpush.msra.mxu0 0.0
        %532 = vmatpush.msra.mxu0 0.0
        %533 = vmatpush.msra.mxu0 0.0
        %534 = vmatpush.msra.mxu0 %v395
        %535 = vmatpush.msra.mxu0 %v393
        %536 = vmatpush.msra.mxu0 %v391
        %537 = vmatpush.msra.mxu0 %v389
        %538 = vmatmul.f32.gmra.mxu0 %v482
        %v539 = vpop.f32.mrf.mxu0
        %v540 = vadd.f32 %v470, %v539
        %541 = vmatmul.f32.gmra.mxu0 %v485
        %v542 = vpop.f32.mrf.mxu0
        %v543 = vadd.f32 %v473, %v542
        %544 = vmatmul.f32.gmra.mxu0 %v488
        %v545 = vpop.f32.mrf.mxu0
        %v546 = vadd.f32 %v476, %v545
        %547 = vmatmul.f32.gmra.mxu0 %v491
        %v548 = vpop.f32.mrf.mxu0
        %v549 = vadd.f32 %v479, %v548
        %550 = vdwg.mxu0
        %s551 = scalar_lea.vmem %s383, 64
        %v552 = vld [vmem:[%s551] sm:$0xff]
        %v553 = vld [vmem:[%s551 + $0x8] sm:$0xff]
        %v554 = vld [vmem:[%s551 + $0x10] sm:$0xff]
        %v555 = vld [vmem:[%s551 + $0x18] sm:$0xf]
        %s556 = scalar_lea.vmem %s1, 128
        %v557 = vld [vmem:[%s556] sm:$0xff]
        %v558 = vld [vmem:[%s556 + $0x8] sm:$0xff]
        %v559 = vld [vmem:[%s556 + $0x10] sm:$0xff]
        %v560 = vld [vmem:[%s556 + $0x18] sm:$0xff]
        %v561 = vld [vmem:[%s556 + $0x20] sm:$0xff]
        %v562 = vld [vmem:[%s556 + $0x28] sm:$0xff]
        %v563 = vld [vmem:[%s556 + $0x30] sm:$0xff]
        %v564 = vld [vmem:[%s556 + $0x38] sm:$0xff]
        %v566 = vsel %vm410, %v552, 0
        %v569 = vsel %vm410, %v553, 0
        %v572 = vsel %vm410, %v554, 0
        %v575 = vsel %vm410, %v555, 0
        %577 = vmatpush.msra.mxu0 0.0
        %578 = vmatpush.msra.mxu0 0.0
        %579 = vmatpush.msra.mxu0 0.0
        %580 = vmatpush.msra.mxu0 0.0
        %581 = vmatpush.msra.mxu0 0.0
        %582 = vmatpush.msra.mxu0 0.0
        %583 = vmatpush.msra.mxu0 0.0
        %584 = vmatpush.msra.mxu0 0.0
        %585 = vmatpush.msra.mxu0 0.0
        %586 = vmatpush.msra.mxu0 0.0
        %587 = vmatpush.msra.mxu0 0.0
        %588 = vmatpush.msra.mxu0 0.0
        %589 = vmatpush.msra.mxu0 %v563
        %590 = vmatpush.msra.mxu0 %v561
        %591 = vmatpush.msra.mxu0 %v559
        %592 = vmatpush.msra.mxu0 %v557
        %593 = vmatmul.f32.gmra.mxu0 %v566
        %v594 = vpop.f32.mrf.mxu0
        %v595 = vadd.f32 0.0, %v594
        %596 = vmatmul.f32.gmra.mxu0 %v569
        %v597 = vpop.f32.mrf.mxu0
        %v598 = vadd.f32 0.0, %v597
        %599 = vmatmul.f32.gmra.mxu0 %v572
        %v600 = vpop.f32.mrf.mxu0
        %v601 = vadd.f32 0.0, %v600
        %602 = vmatmul.f32.gmra.mxu0 %v575
        %v603 = vpop.f32.mrf.mxu0
        %v604 = vadd.f32 0.0, %v603
        %605 = vdwg.mxu0
        %606 = vmatpush.msra.mxu0 0.0
        %607 = vmatpush.msra.mxu0 0.0
        %608 = vmatpush.msra.mxu0 0.0
        %609 = vmatpush.msra.mxu0 0.0
        %610 = vmatpush.msra.mxu0 0.0
        %611 = vmatpush.msra.mxu0 0.0
        %612 = vmatpush.msra.mxu0 0.0
        %613 = vmatpush.msra.mxu0 0.0
        %614 = vmatpush.msra.mxu0 0.0
        %615 = vmatpush.msra.mxu0 0.0
        %616 = vmatpush.msra.mxu0 0.0
        %617 = vmatpush.msra.mxu0 0.0
        %618 = vmatpush.msra.mxu0 %v564
        %619 = vmatpush.msra.mxu0 %v562
        %620 = vmatpush.msra.mxu0 %v560
        %621 = vmatpush.msra.mxu0 %v558
        %622 = vmatmul.f32.gmra.mxu0 %v566
        %v623 = vpop.f32.mrf.mxu0
        %v624 = vadd.f32 0.0, %v623
        %625 = vmatmul.f32.gmra.mxu0 %v569
        %v626 = vpop.f32.mrf.mxu0
        %v627 = vadd.f32 0.0, %v626
        %628 = vmatmul.f32.gmra.mxu0 %v572
        %v629 = vpop.f32.mrf.mxu0
        %v630 = vadd.f32 0.0, %v629
        %631 = vmatmul.f32.gmra.mxu0 %v575
        %v632 = vpop.f32.mrf.mxu0
        %v633 = vadd.f32 0.0, %v632
        %634 = vdwg.mxu0
        %v635 = vadd.f32 %v511, %v595
        %v636 = vadd.f32 %v540, %v624
        %v637 = vadd.f32 %v514, %v598
        %v638 = vadd.f32 %v543, %v627
        %v639 = vadd.f32 %v517, %v601
        %v640 = vadd.f32 %v546, %v630
        %v641 = vadd.f32 %v520, %v604
        %v642 = vadd.f32 %v549, %v633
        %v643 = vld [vmem:[%s383 + $0x1] sm:$0xff]
        %v644 = vld [vmem:[%s383 + $0x9] sm:$0xff]
        %v645 = vld [vmem:[%s383 + $0x11] sm:$0xff]
        %v646 = vld [vmem:[%s383 + $0x19] sm:$0xf]
        %s647 = scalar_lea.vmem %s1, 192
        %v648 = vld [vmem:[%s647] sm:$0xff]
        %v649 = vld [vmem:[%s647 + $0x8] sm:$0xff]
        %v650 = vld [vmem:[%s647 + $0x10] sm:$0xff]
        %v651 = vld [vmem:[%s647 + $0x18] sm:$0xff]
        %v652 = vld [vmem:[%s647 + $0x20] sm:$0xff]
        %v653 = vld [vmem:[%s647 + $0x28] sm:$0xff]
        %v654 = vld [vmem:[%s647 + $0x30] sm:$0xff]
        %v655 = vld [vmem:[%s647 + $0x38] sm:$0xff]
        %v657 = vsel %vm410, %v643, 0
        %v660 = vsel %vm410, %v644, 0
        %v663 = vsel %vm410, %v645, 0
        %v666 = vsel %vm410, %v646, 0
        %668 = vmatpush.msra.mxu0 0.0
        %669 = vmatpush.msra.mxu0 0.0
        %670 = vmatpush.msra.mxu0 0.0
        %671 = vmatpush.msra.mxu0 0.0
        %672 = vmatpush.msra.mxu0 0.0
        %673 = vmatpush.msra.mxu0 0.0
        %674 = vmatpush.msra.mxu0 0.0
        %675 = vmatpush.msra.mxu0 0.0
        %676 = vmatpush.msra.mxu0 0.0
        %677 = vmatpush.msra.mxu0 0.0
        %678 = vmatpush.msra.mxu0 0.0
        %679 = vmatpush.msra.mxu0 0.0
        %680 = vmatpush.msra.mxu0 %v654
        %681 = vmatpush.msra.mxu0 %v652
        %682 = vmatpush.msra.mxu0 %v650
        %683 = vmatpush.msra.mxu0 %v648
        %684 = vmatmul.f32.gmra.mxu0 %v657
        %v685 = vpop.f32.mrf.mxu0
        %v686 = vadd.f32 0.0, %v685
        %687 = vmatmul.f32.gmra.mxu0 %v660
        %v688 = vpop.f32.mrf.mxu0
        %v689 = vadd.f32 0.0, %v688
        %690 = vmatmul.f32.gmra.mxu0 %v663
        %v691 = vpop.f32.mrf.mxu0
        %v692 = vadd.f32 0.0, %v691
        %693 = vmatmul.f32.gmra.mxu0 %v666
        %v694 = vpop.f32.mrf.mxu0
        %v695 = vadd.f32 0.0, %v694
        %696 = vdwg.mxu0
        %697 = vmatpush.msra.mxu0 0.0
        %698 = vmatpush.msra.mxu0 0.0
        %699 = vmatpush.msra.mxu0 0.0
        %700 = vmatpush.msra.mxu0 0.0
        %701 = vmatpush.msra.mxu0 0.0
        %702 = vmatpush.msra.mxu0 0.0
        %703 = vmatpush.msra.mxu0 0.0
        %704 = vmatpush.msra.mxu0 0.0
        %705 = vmatpush.msra.mxu0 0.0
        %706 = vmatpush.msra.mxu0 0.0
        %707 = vmatpush.msra.mxu0 0.0
        %708 = vmatpush.msra.mxu0 0.0
        %709 = vmatpush.msra.mxu0 %v655
        %710 = vmatpush.msra.mxu0 %v653
        %711 = vmatpush.msra.mxu0 %v651
        %712 = vmatpush.msra.mxu0 %v649
        %713 = vmatmul.f32.gmra.mxu0 %v657
        %v714 = vpop.f32.mrf.mxu0
        %v715 = vadd.f32 0.0, %v714
        %716 = vmatmul.f32.gmra.mxu0 %v660
        %v717 = vpop.f32.mrf.mxu0
        %v718 = vadd.f32 0.0, %v717
        %719 = vmatmul.f32.gmra.mxu0 %v663
        %v720 = vpop.f32.mrf.mxu0
        %v721 = vadd.f32 0.0, %v720
        %722 = vmatmul.f32.gmra.mxu0 %v666
        %v723 = vpop.f32.mrf.mxu0
        %v724 = vadd.f32 0.0, %v723
        %725 = vdwg.mxu0
        %v726 = vadd.f32 %v635, %v686
        %v727 = vadd.f32 %v636, %v715
        %v728 = vadd.f32 %v637, %v689
        %v729 = vadd.f32 %v638, %v718
        %v730 = vadd.f32 %v639, %v692
        %v731 = vadd.f32 %v640, %v721
        %v732 = vadd.f32 %v641, %v695
        %v733 = vadd.f32 %v642, %v724
        %v734 = vld [vmem:[%s396 + $0x1] sm:$0xff]
        %v735 = vld [vmem:[%s396 + $0x9] sm:$0xff]
        %v736 = vld [vmem:[%s396 + $0x11] sm:$0xff]
        %v737 = vld [vmem:[%s396 + $0x19] sm:$0xf]
        %s738 = scalar_lea.vmem %s1, 256
        %v739 = vld [vmem:[%s738] sm:$0xff]
        %v740 = vld [vmem:[%s738 + $0x8] sm:$0xff]
        %v741 = vld [vmem:[%s738 + $0x10] sm:$0xff]
        %v742 = vld [vmem:[%s738 + $0x18] sm:$0xff]
        %v743 = vld [vmem:[%s738 + $0x20] sm:$0xff]
        %v744 = vld [vmem:[%s738 + $0x28] sm:$0xff]
        %v745 = vld [vmem:[%s738 + $0x30] sm:$0xff]
        %v746 = vld [vmem:[%s738 + $0x38] sm:$0xff]
        %v748 = vsel %vm410, %v734, 0
        %v751 = vsel %vm410, %v735, 0
        %v754 = vsel %vm410, %v736, 0
        %v757 = vsel %vm410, %v737, 0
        %759 = vmatpush.msra.mxu0 0.0
        %760 = vmatpush.msra.mxu0 0.0
        %761 = vmatpush.msra.mxu0 0.0
        %762 = vmatpush.msra.mxu0 0.0
        %763 = vmatpush.msra.mxu0 0.0
        %764 = vmatpush.msra.mxu0 0.0
        %765 = vmatpush.msra.mxu0 0.0
        %766 = vmatpush.msra.mxu0 0.0
        %767 = vmatpush.msra.mxu0 0.0
        %768 = vmatpush.msra.mxu0 0.0
        %769 = vmatpush.msra.mxu0 0.0
        %770 = vmatpush.msra.mxu0 0.0
        %771 = vmatpush.msra.mxu0 %v745
        %772 = vmatpush.msra.mxu0 %v743
        %773 = vmatpush.msra.mxu0 %v741
        %774 = vmatpush.msra.mxu0 %v739
        %775 = vmatmul.f32.gmra.mxu0 %v748
        %v776 = vpop.f32.mrf.mxu0
        %v777 = vadd.f32 0.0, %v776
        %778 = vmatmul.f32.gmra.mxu0 %v751
        %v779 = vpop.f32.mrf.mxu0
        %v780 = vadd.f32 0.0, %v779
        %781 = vmatmul.f32.gmra.mxu0 %v754
        %v782 = vpop.f32.mrf.mxu0
        %v783 = vadd.f32 0.0, %v782
        %784 = vmatmul.f32.gmra.mxu0 %v757
        %v785 = vpop.f32.mrf.mxu0
        %v786 = vadd.f32 0.0, %v785
        %787 = vdwg.mxu0
        %788 = vmatpush.msra.mxu0 0.0
        %789 = vmatpush.msra.mxu0 0.0
        %790 = vmatpush.msra.mxu0 0.0
        %791 = vmatpush.msra.mxu0 0.0
        %792 = vmatpush.msra.mxu0 0.0
        %793 = vmatpush.msra.mxu0 0.0
        %794 = vmatpush.msra.mxu0 0.0
        %795 = vmatpush.msra.mxu0 0.0
        %796 = vmatpush.msra.mxu0 0.0
        %797 = vmatpush.msra.mxu0 0.0
        %798 = vmatpush.msra.mxu0 0.0
        %799 = vmatpush.msra.mxu0 0.0
        %800 = vmatpush.msra.mxu0 %v746
        %801 = vmatpush.msra.mxu0 %v744
        %802 = vmatpush.msra.mxu0 %v742
        %803 = vmatpush.msra.mxu0 %v740
        %804 = vmatmul.f32.gmra.mxu0 %v748
        %v805 = vpop.f32.mrf.mxu0
        %v806 = vadd.f32 0.0, %v805
        %807 = vmatmul.f32.gmra.mxu0 %v751
        %v808 = vpop.f32.mrf.mxu0
        %v809 = vadd.f32 0.0, %v808
        %810 = vmatmul.f32.gmra.mxu0 %v754
        %v811 = vpop.f32.mrf.mxu0
        %v812 = vadd.f32 0.0, %v811
        %813 = vmatmul.f32.gmra.mxu0 %v757
        %v814 = vpop.f32.mrf.mxu0
        %v815 = vadd.f32 0.0, %v814
        %816 = vdwg.mxu0
        %v817 = vadd.f32 %v726, %v777
        %v818 = vadd.f32 %v727, %v806
        %v819 = vadd.f32 %v728, %v780
        %v820 = vadd.f32 %v729, %v809
        %v821 = vadd.f32 %v730, %v783
        %v822 = vadd.f32 %v731, %v812
        %v823 = vadd.f32 %v732, %v786
        %v824 = vadd.f32 %v733, %v815
        %v825 = vld [vmem:[%s551 + $0x1] sm:$0xff]
        %v826 = vld [vmem:[%s551 + $0x9] sm:$0xff]
        %v827 = vld [vmem:[%s551 + $0x11] sm:$0xff]
        %v828 = vld [vmem:[%s551 + $0x19] sm:$0xf]
        %s829 = scalar_lea.vmem %s1, 320
        %v830 = vld [vmem:[%s829] sm:$0xff]
        %v831 = vld [vmem:[%s829 + $0x8] sm:$0xff]
        %v832 = vld [vmem:[%s829 + $0x10] sm:$0xff]
        %v833 = vld [vmem:[%s829 + $0x18] sm:$0xff]
        %v834 = vld [vmem:[%s829 + $0x20] sm:$0xff]
        %v835 = vld [vmem:[%s829 + $0x28] sm:$0xff]
        %v836 = vld [vmem:[%s829 + $0x30] sm:$0xff]
        %v837 = vld [vmem:[%s829 + $0x38] sm:$0xff]
        %v839 = vsel %vm410, %v825, 0
        %v842 = vsel %vm410, %v826, 0
        %v845 = vsel %vm410, %v827, 0
        %v848 = vsel %vm410, %v828, 0
        %850 = vmatpush.msra.mxu0 0.0
        %851 = vmatpush.msra.mxu0 0.0
        %852 = vmatpush.msra.mxu0 0.0
        %853 = vmatpush.msra.mxu0 0.0
        %854 = vmatpush.msra.mxu0 0.0
        %855 = vmatpush.msra.mxu0 0.0
        %856 = vmatpush.msra.mxu0 0.0
        %857 = vmatpush.msra.mxu0 0.0
        %858 = vmatpush.msra.mxu0 0.0
        %859 = vmatpush.msra.mxu0 0.0
        %860 = vmatpush.msra.mxu0 0.0
        %861 = vmatpush.msra.mxu0 0.0
        %862 = vmatpush.msra.mxu0 %v836
        %863 = vmatpush.msra.mxu0 %v834
        %864 = vmatpush.msra.mxu0 %v832
        %865 = vmatpush.msra.mxu0 %v830
        %866 = vmatmul.f32.gmra.mxu0 %v839
        %v867 = vpop.f32.mrf.mxu0
        %v868 = vadd.f32 0.0, %v867
        %869 = vmatmul.f32.gmra.mxu0 %v842
        %v870 = vpop.f32.mrf.mxu0
        %v871 = vadd.f32 0.0, %v870
        %872 = vmatmul.f32.gmra.mxu0 %v845
        %v873 = vpop.f32.mrf.mxu0
        %v874 = vadd.f32 0.0, %v873
        %875 = vmatmul.f32.gmra.mxu0 %v848
        %v876 = vpop.f32.mrf.mxu0
        %v877 = vadd.f32 0.0, %v876
        %878 = vdwg.mxu0
        %879 = vmatpush.msra.mxu0 0.0
        %880 = vmatpush.msra.mxu0 0.0
        %881 = vmatpush.msra.mxu0 0.0
        %882 = vmatpush.msra.mxu0 0.0
        %883 = vmatpush.msra.mxu0 0.0
        %884 = vmatpush.msra.mxu0 0.0
        %885 = vmatpush.msra.mxu0 0.0
        %886 = vmatpush.msra.mxu0 0.0
        %887 = vmatpush.msra.mxu0 0.0
        %888 = vmatpush.msra.mxu0 0.0
        %889 = vmatpush.msra.mxu0 0.0
        %890 = vmatpush.msra.mxu0 0.0
        %891 = vmatpush.msra.mxu0 %v837
        %892 = vmatpush.msra.mxu0 %v835
        %893 = vmatpush.msra.mxu0 %v833
        %894 = vmatpush.msra.mxu0 %v831
        %895 = vmatmul.f32.gmra.mxu0 %v839
        %v896 = vpop.f32.mrf.mxu0
        %v897 = vadd.f32 0.0, %v896
        %898 = vmatmul.f32.gmra.mxu0 %v842
        %v899 = vpop.f32.mrf.mxu0
        %v900 = vadd.f32 0.0, %v899
        %901 = vmatmul.f32.gmra.mxu0 %v845
        %v902 = vpop.f32.mrf.mxu0
        %v903 = vadd.f32 0.0, %v902
        %904 = vmatmul.f32.gmra.mxu0 %v848
        %v905 = vpop.f32.mrf.mxu0
        %v906 = vadd.f32 0.0, %v905
        %907 = vdwg.mxu0
        %v908 = vadd.f32 %v817, %v868
        %v909 = vadd.f32 %v818, %v897
        %v910 = vadd.f32 %v819, %v871
        %v911 = vadd.f32 %v820, %v900
        %v912 = vadd.f32 %v821, %v874
        %v913 = vadd.f32 %v822, %v903
        %v914 = vadd.f32 %v823, %v877
        %v915 = vadd.f32 %v824, %v906
        %v916 = vld [vmem:[%s383 + $0x2] sm:$0xff]
        %v917 = vld [vmem:[%s383 + $0xa] sm:$0xff]
        %v918 = vld [vmem:[%s383 + $0x12] sm:$0xff]
        %v919 = vld [vmem:[%s383 + $0x1a] sm:$0xf]
        %s920 = scalar_lea.vmem %s1, 384
        %v921 = vld [vmem:[%s920] sm:$0xff]
        %v922 = vld [vmem:[%s920 + $0x8] sm:$0xff]
        %v923 = vld [vmem:[%s920 + $0x10] sm:$0xff]
        %v924 = vld [vmem:[%s920 + $0x18] sm:$0xff]
        %v925 = vld [vmem:[%s920 + $0x20] sm:$0xff]
        %v926 = vld [vmem:[%s920 + $0x28] sm:$0xff]
        %v927 = vld [vmem:[%s920 + $0x30] sm:$0xff]
        %v928 = vld [vmem:[%s920 + $0x38] sm:$0xff]
        %v930 = vsel %vm410, %v916, 0
        %v933 = vsel %vm410, %v917, 0
        %v936 = vsel %vm410, %v918, 0
        %v939 = vsel %vm410, %v919, 0
        %941 = vmatpush.msra.mxu0 0.0
        %942 = vmatpush.msra.mxu0 0.0
        %943 = vmatpush.msra.mxu0 0.0
        %944 = vmatpush.msra.mxu0 0.0
        %945 = vmatpush.msra.mxu0 0.0
        %946 = vmatpush.msra.mxu0 0.0
        %947 = vmatpush.msra.mxu0 0.0
        %948 = vmatpush.msra.mxu0 0.0
        %949 = vmatpush.msra.mxu0 0.0
        %950 = vmatpush.msra.mxu0 0.0
        %951 = vmatpush.msra.mxu0 0.0
        %952 = vmatpush.msra.mxu0 0.0
        %953 = vmatpush.msra.mxu0 %v927
        %954 = vmatpush.msra.mxu0 %v925
        %955 = vmatpush.msra.mxu0 %v923
        %956 = vmatpush.msra.mxu0 %v921
        %957 = vmatmul.f32.gmra.mxu0 %v930
        %v958 = vpop.f32.mrf.mxu0
        %v959 = vadd.f32 0.0, %v958
        %960 = vmatmul.f32.gmra.mxu0 %v933
        %v961 = vpop.f32.mrf.mxu0
        %v962 = vadd.f32 0.0, %v961
        %963 = vmatmul.f32.gmra.mxu0 %v936
        %v964 = vpop.f32.mrf.mxu0
        %v965 = vadd.f32 0.0, %v964
        %966 = vmatmul.f32.gmra.mxu0 %v939
        %v967 = vpop.f32.mrf.mxu0
        %v968 = vadd.f32 0.0, %v967
        %969 = vdwg.mxu0
        %970 = vmatpush.msra.mxu0 0.0
        %971 = vmatpush.msra.mxu0 0.0
        %972 = vmatpush.msra.mxu0 0.0
        %973 = vmatpush.msra.mxu0 0.0
        %974 = vmatpush.msra.mxu0 0.0
        %975 = vmatpush.msra.mxu0 0.0
        %976 = vmatpush.msra.mxu0 0.0
        %977 = vmatpush.msra.mxu0 0.0
        %978 = vmatpush.msra.mxu0 0.0
        %979 = vmatpush.msra.mxu0 0.0
        %980 = vmatpush.msra.mxu0 0.0
        %981 = vmatpush.msra.mxu0 0.0
        %982 = vmatpush.msra.mxu0 %v928
        %983 = vmatpush.msra.mxu0 %v926
        %984 = vmatpush.msra.mxu0 %v924
        %985 = vmatpush.msra.mxu0 %v922
        %986 = vmatmul.f32.gmra.mxu0 %v930
        %v987 = vpop.f32.mrf.mxu0
        %v988 = vadd.f32 0.0, %v987
        %989 = vmatmul.f32.gmra.mxu0 %v933
        %v990 = vpop.f32.mrf.mxu0
        %v991 = vadd.f32 0.0, %v990
        %992 = vmatmul.f32.gmra.mxu0 %v936
        %v993 = vpop.f32.mrf.mxu0
        %v994 = vadd.f32 0.0, %v993
        %995 = vmatmul.f32.gmra.mxu0 %v939
        %v996 = vpop.f32.mrf.mxu0
        %v997 = vadd.f32 0.0, %v996
        %998 = vdwg.mxu0
        %v999 = vadd.f32 %v908, %v959
        %v1000 = vadd.f32 %v909, %v988
        %v1001 = vadd.f32 %v910, %v962
        %v1002 = vadd.f32 %v911, %v991
        %v1003 = vadd.f32 %v912, %v965
        %v1004 = vadd.f32 %v913, %v994
        %v1005 = vadd.f32 %v914, %v968
        %v1006 = vadd.f32 %v915, %v997
        %v1007 = vld [vmem:[%s396 + $0x2] sm:$0xff]
        %v1008 = vld [vmem:[%s396 + $0xa] sm:$0xff]
        %v1009 = vld [vmem:[%s396 + $0x12] sm:$0xff]
        %v1010 = vld [vmem:[%s396 + $0x1a] sm:$0xf]
        %s1011 = scalar_lea.vmem %s1, 448
        %v1012 = vld [vmem:[%s1011] sm:$0xff]
        %v1013 = vld [vmem:[%s1011 + $0x8] sm:$0xff]
        %v1014 = vld [vmem:[%s1011 + $0x10] sm:$0xff]
        %v1015 = vld [vmem:[%s1011 + $0x18] sm:$0xff]
        %v1016 = vld [vmem:[%s1011 + $0x20] sm:$0xff]
        %v1017 = vld [vmem:[%s1011 + $0x28] sm:$0xff]
        %v1018 = vld [vmem:[%s1011 + $0x30] sm:$0xff]
        %v1019 = vld [vmem:[%s1011 + $0x38] sm:$0xff]
        %v1021 = vsel %vm410, %v1007, 0
        %v1024 = vsel %vm410, %v1008, 0
        %v1027 = vsel %vm410, %v1009, 0
        %v1030 = vsel %vm410, %v1010, 0
        %1032 = vmatpush.msra.mxu0 0.0
        %1033 = vmatpush.msra.mxu0 0.0
        %1034 = vmatpush.msra.mxu0 0.0
        %1035 = vmatpush.msra.mxu0 0.0
        %1036 = vmatpush.msra.mxu0 0.0
        %1037 = vmatpush.msra.mxu0 0.0
        %1038 = vmatpush.msra.mxu0 0.0
        %1039 = vmatpush.msra.mxu0 0.0
        %1040 = vmatpush.msra.mxu0 0.0
        %1041 = vmatpush.msra.mxu0 0.0
        %1042 = vmatpush.msra.mxu0 0.0
        %1043 = vmatpush.msra.mxu0 0.0
        %1044 = vmatpush.msra.mxu0 %v1018
        %1045 = vmatpush.msra.mxu0 %v1016
        %1046 = vmatpush.msra.mxu0 %v1014
        %1047 = vmatpush.msra.mxu0 %v1012
        %1048 = vmatmul.f32.gmra.mxu0 %v1021
        %v1049 = vpop.f32.mrf.mxu0
        %v1050 = vadd.f32 0.0, %v1049
        %1051 = vmatmul.f32.gmra.mxu0 %v1024
        %v1052 = vpop.f32.mrf.mxu0
        %v1053 = vadd.f32 0.0, %v1052
        %1054 = vmatmul.f32.gmra.mxu0 %v1027
        %v1055 = vpop.f32.mrf.mxu0
        %v1056 = vadd.f32 0.0, %v1055
        %1057 = vmatmul.f32.gmra.mxu0 %v1030
        %v1058 = vpop.f32.mrf.mxu0
        %v1059 = vadd.f32 0.0, %v1058
        %1060 = vdwg.mxu0
        %1061 = vmatpush.msra.mxu0 0.0
        %1062 = vmatpush.msra.mxu0 0.0
        %1063 = vmatpush.msra.mxu0 0.0
        %1064 = vmatpush.msra.mxu0 0.0
        %1065 = vmatpush.msra.mxu0 0.0
        %1066 = vmatpush.msra.mxu0 0.0
        %1067 = vmatpush.msra.mxu0 0.0
        %1068 = vmatpush.msra.mxu0 0.0
        %1069 = vmatpush.msra.mxu0 0.0
        %1070 = vmatpush.msra.mxu0 0.0
        %1071 = vmatpush.msra.mxu0 0.0
        %1072 = vmatpush.msra.mxu0 0.0
        %1073 = vmatpush.msra.mxu0 %v1019
        %1074 = vmatpush.msra.mxu0 %v1017
        %1075 = vmatpush.msra.mxu0 %v1015
        %1076 = vmatpush.msra.mxu0 %v1013
        %1077 = vmatmul.f32.gmra.mxu0 %v1021
        %v1078 = vpop.f32.mrf.mxu0
        %v1079 = vadd.f32 0.0, %v1078
        %1080 = vmatmul.f32.gmra.mxu0 %v1024
        %v1081 = vpop.f32.mrf.mxu0
        %v1082 = vadd.f32 0.0, %v1081
        %1083 = vmatmul.f32.gmra.mxu0 %v1027
        %v1084 = vpop.f32.mrf.mxu0
        %v1085 = vadd.f32 0.0, %v1084
        %1086 = vmatmul.f32.gmra.mxu0 %v1030
        %v1087 = vpop.f32.mrf.mxu0
        %v1088 = vadd.f32 0.0, %v1087
        %1089 = vdwg.mxu0
        %v1090 = vadd.f32 %v999, %v1050
        %v1091 = vadd.f32 %v1000, %v1079
        %v1092 = vadd.f32 %v1001, %v1053
        %v1093 = vadd.f32 %v1002, %v1082
        %v1094 = vadd.f32 %v1003, %v1056
        %v1095 = vadd.f32 %v1004, %v1085
        %v1096 = vadd.f32 %v1005, %v1059
        %v1097 = vadd.f32 %v1006, %v1088
        %v1098 = vld [vmem:[%s551 + $0x2] sm:$0xff]
        %v1099 = vld [vmem:[%s551 + $0xa] sm:$0xff]
        %v1100 = vld [vmem:[%s551 + $0x12] sm:$0xff]
        %v1101 = vld [vmem:[%s551 + $0x1a] sm:$0xf]
        %s1102 = scalar_lea.vmem %s1, 512
        %v1103 = vld [vmem:[%s1102] sm:$0xff]
        %v1104 = vld [vmem:[%s1102 + $0x8] sm:$0xff]
        %v1105 = vld [vmem:[%s1102 + $0x10] sm:$0xff]
        %v1106 = vld [vmem:[%s1102 + $0x18] sm:$0xff]
        %v1107 = vld [vmem:[%s1102 + $0x20] sm:$0xff]
        %v1108 = vld [vmem:[%s1102 + $0x28] sm:$0xff]
        %v1109 = vld [vmem:[%s1102 + $0x30] sm:$0xff]
        %v1110 = vld [vmem:[%s1102 + $0x38] sm:$0xff]
        %v1112 = vsel %vm410, %v1098, 0
        %v1115 = vsel %vm410, %v1099, 0
        %v1118 = vsel %vm410, %v1100, 0
        %v1121 = vsel %vm410, %v1101, 0
        %1123 = vmatpush.msra.mxu0 0.0
        %1124 = vmatpush.msra.mxu0 0.0
        %1125 = vmatpush.msra.mxu0 0.0
        %1126 = vmatpush.msra.mxu0 0.0
        %1127 = vmatpush.msra.mxu0 0.0
        %1128 = vmatpush.msra.mxu0 0.0
        %1129 = vmatpush.msra.mxu0 0.0
        %1130 = vmatpush.msra.mxu0 0.0
        %1131 = vmatpush.msra.mxu0 0.0
        %1132 = vmatpush.msra.mxu0 0.0
        %1133 = vmatpush.msra.mxu0 0.0
        %1134 = vmatpush.msra.mxu0 0.0
        %1135 = vmatpush.msra.mxu0 %v1109
        %1136 = vmatpush.msra.mxu0 %v1107
        %1137 = vmatpush.msra.mxu0 %v1105
        %1138 = vmatpush.msra.mxu0 %v1103
        %1139 = vmatmul.f32.gmra.mxu0 %v1112
        %v1140 = vpop.f32.mrf.mxu0
        %v1141 = vadd.f32 0.0, %v1140
        %1142 = vmatmul.f32.gmra.mxu0 %v1115
        %v1143 = vpop.f32.mrf.mxu0
        %v1144 = vadd.f32 0.0, %v1143
        %1145 = vmatmul.f32.gmra.mxu0 %v1118
        %v1146 = vpop.f32.mrf.mxu0
        %v1147 = vadd.f32 0.0, %v1146
        %1148 = vmatmul.f32.gmra.mxu0 %v1121
        %v1149 = vpop.f32.mrf.mxu0
        %v1150 = vadd.f32 0.0, %v1149
        %1151 = vdwg.mxu0
        %1152 = vmatpush.msra.mxu0 0.0
        %1153 = vmatpush.msra.mxu0 0.0
        %1154 = vmatpush.msra.mxu0 0.0
        %1155 = vmatpush.msra.mxu0 0.0
        %1156 = vmatpush.msra.mxu0 0.0
        %1157 = vmatpush.msra.mxu0 0.0
        %1158 = vmatpush.msra.mxu0 0.0
        %1159 = vmatpush.msra.mxu0 0.0
        %1160 = vmatpush.msra.mxu0 0.0
        %1161 = vmatpush.msra.mxu0 0.0
        %1162 = vmatpush.msra.mxu0 0.0
        %1163 = vmatpush.msra.mxu0 0.0
        %1164 = vmatpush.msra.mxu0 %v1110
        %1165 = vmatpush.msra.mxu0 %v1108
        %1166 = vmatpush.msra.mxu0 %v1106
        %1167 = vmatpush.msra.mxu0 %v1104
        %1168 = vmatmul.f32.gmra.mxu0 %v1112
        %v1169 = vpop.f32.mrf.mxu0
        %v1170 = vadd.f32 0.0, %v1169
        %1171 = vmatmul.f32.gmra.mxu0 %v1115
        %v1172 = vpop.f32.mrf.mxu0
        %v1173 = vadd.f32 0.0, %v1172
        %1174 = vmatmul.f32.gmra.mxu0 %v1118
        %v1175 = vpop.f32.mrf.mxu0
        %v1176 = vadd.f32 0.0, %v1175
        %1177 = vmatmul.f32.gmra.mxu0 %v1121
        %v1178 = vpop.f32.mrf.mxu0
        %v1179 = vadd.f32 0.0, %v1178
        %1180 = vdwg.mxu0
        %v1181 = vadd.f32 %v1090, %v1141
        %v1182 = vadd.f32 %v1091, %v1170
        %v1183 = vadd.f32 %v1092, %v1144
        %v1184 = vadd.f32 %v1093, %v1173
        %v1185 = vadd.f32 %v1094, %v1147
        %v1186 = vadd.f32 %v1095, %v1176
        %v1187 = vadd.f32 %v1096, %v1150
        %v1188 = vadd.f32 %v1097, %v1179
        %v1189 = vld [vmem:[%s383 + $0x3] sm:$0xff]
        %v1190 = vld [vmem:[%s383 + $0xb] sm:$0xff]
        %v1191 = vld [vmem:[%s383 + $0x13] sm:$0xff]
        %v1192 = vld [vmem:[%s383 + $0x1b] sm:$0xf]
        %s1193 = scalar_lea.vmem %s1, 576
        %v1194 = vld [vmem:[%s1193] sm:$0xff]
        %v1195 = vld [vmem:[%s1193 + $0x8] sm:$0xff]
        %v1196 = vld [vmem:[%s1193 + $0x10] sm:$0xff]
        %v1197 = vld [vmem:[%s1193 + $0x18] sm:$0xff]
        %v1198 = vld [vmem:[%s1193 + $0x20] sm:$0xff]
        %v1199 = vld [vmem:[%s1193 + $0x28] sm:$0xff]
        %v1200 = vld [vmem:[%s1193 + $0x30] sm:$0xff]
        %v1201 = vld [vmem:[%s1193 + $0x38] sm:$0xff]
        %v1203 = vsel %vm410, %v1189, 0
        %v1206 = vsel %vm410, %v1190, 0
        %v1209 = vsel %vm410, %v1191, 0
        %v1212 = vsel %vm410, %v1192, 0
        %1214 = vmatpush.msra.mxu0 0.0
        %1215 = vmatpush.msra.mxu0 0.0
        %1216 = vmatpush.msra.mxu0 0.0
        %1217 = vmatpush.msra.mxu0 0.0
        %1218 = vmatpush.msra.mxu0 0.0
        %1219 = vmatpush.msra.mxu0 0.0
        %1220 = vmatpush.msra.mxu0 0.0
        %1221 = vmatpush.msra.mxu0 0.0
        %1222 = vmatpush.msra.mxu0 0.0
        %1223 = vmatpush.msra.mxu0 0.0
        %1224 = vmatpush.msra.mxu0 0.0
        %1225 = vmatpush.msra.mxu0 0.0
        %1226 = vmatpush.msra.mxu0 %v1200
        %1227 = vmatpush.msra.mxu0 %v1198
        %1228 = vmatpush.msra.mxu0 %v1196
        %1229 = vmatpush.msra.mxu0 %v1194
        %1230 = vmatmul.f32.gmra.mxu0 %v1203
        %v1231 = vpop.f32.mrf.mxu0
        %v1232 = vadd.f32 0.0, %v1231
        %1233 = vmatmul.f32.gmra.mxu0 %v1206
        %v1234 = vpop.f32.mrf.mxu0
        %v1235 = vadd.f32 0.0, %v1234
        %1236 = vmatmul.f32.gmra.mxu0 %v1209
        %v1237 = vpop.f32.mrf.mxu0
        %v1238 = vadd.f32 0.0, %v1237
        %1239 = vmatmul.f32.gmra.mxu0 %v1212
        %v1240 = vpop.f32.mrf.mxu0
        %v1241 = vadd.f32 0.0, %v1240
        %1242 = vdwg.mxu0
        %1243 = vmatpush.msra.mxu0 0.0
        %1244 = vmatpush.msra.mxu0 0.0
        %1245 = vmatpush.msra.mxu0 0.0
        %1246 = vmatpush.msra.mxu0 0.0
        %1247 = vmatpush.msra.mxu0 0.0
        %1248 = vmatpush.msra.mxu0 0.0
        %1249 = vmatpush.msra.mxu0 0.0
        %1250 = vmatpush.msra.mxu0 0.0
        %1251 = vmatpush.msra.mxu0 0.0
        %1252 = vmatpush.msra.mxu0 0.0
        %1253 = vmatpush.msra.mxu0 0.0
        %1254 = vmatpush.msra.mxu0 0.0
        %1255 = vmatpush.msra.mxu0 %v1201
        %1256 = vmatpush.msra.mxu0 %v1199
        %1257 = vmatpush.msra.mxu0 %v1197
        %1258 = vmatpush.msra.mxu0 %v1195
        %1259 = vmatmul.f32.gmra.mxu0 %v1203
        %v1260 = vpop.f32.mrf.mxu0
        %v1261 = vadd.f32 0.0, %v1260
        %1262 = vmatmul.f32.gmra.mxu0 %v1206
        %v1263 = vpop.f32.mrf.mxu0
        %v1264 = vadd.f32 0.0, %v1263
        %1265 = vmatmul.f32.gmra.mxu0 %v1209
        %v1266 = vpop.f32.mrf.mxu0
        %v1267 = vadd.f32 0.0, %v1266
        %1268 = vmatmul.f32.gmra.mxu0 %v1212
        %v1269 = vpop.f32.mrf.mxu0
        %v1270 = vadd.f32 0.0, %v1269
        %1271 = vdwg.mxu0
        %v1272 = vadd.f32 %v1181, %v1232
        %v1273 = vadd.f32 %v1182, %v1261
        %v1274 = vadd.f32 %v1183, %v1235
        %v1275 = vadd.f32 %v1184, %v1264
        %v1276 = vadd.f32 %v1185, %v1238
        %v1277 = vadd.f32 %v1186, %v1267
        %v1278 = vadd.f32 %v1187, %v1241
        %v1279 = vadd.f32 %v1188, %v1270
        %v1280 = vld [vmem:[%s396 + $0x3] sm:$0xff]
        %v1281 = vld [vmem:[%s396 + $0xb] sm:$0xff]
        %v1282 = vld [vmem:[%s396 + $0x13] sm:$0xff]
        %v1283 = vld [vmem:[%s396 + $0x1b] sm:$0xf]
        %s1284 = scalar_lea.vmem %s1, 640
        %v1285 = vld [vmem:[%s1284] sm:$0xff]
        %v1286 = vld [vmem:[%s1284 + $0x8] sm:$0xff]
        %v1287 = vld [vmem:[%s1284 + $0x10] sm:$0xff]
        %v1288 = vld [vmem:[%s1284 + $0x18] sm:$0xff]
        %v1289 = vld [vmem:[%s1284 + $0x20] sm:$0xff]
        %v1290 = vld [vmem:[%s1284 + $0x28] sm:$0xff]
        %v1291 = vld [vmem:[%s1284 + $0x30] sm:$0xff]
        %v1292 = vld [vmem:[%s1284 + $0x38] sm:$0xff]
        %v1294 = vsel %vm410, %v1280, 0
        %v1297 = vsel %vm410, %v1281, 0
        %v1300 = vsel %vm410, %v1282, 0
        %v1303 = vsel %vm410, %v1283, 0
        %1305 = vmatpush.msra.mxu0 0.0
        %1306 = vmatpush.msra.mxu0 0.0
        %1307 = vmatpush.msra.mxu0 0.0
        %1308 = vmatpush.msra.mxu0 0.0
        %1309 = vmatpush.msra.mxu0 0.0
        %1310 = vmatpush.msra.mxu0 0.0
        %1311 = vmatpush.msra.mxu0 0.0
        %1312 = vmatpush.msra.mxu0 0.0
        %1313 = vmatpush.msra.mxu0 0.0
        %1314 = vmatpush.msra.mxu0 0.0
        %1315 = vmatpush.msra.mxu0 0.0
        %1316 = vmatpush.msra.mxu0 0.0
        %1317 = vmatpush.msra.mxu0 %v1291
        %1318 = vmatpush.msra.mxu0 %v1289
        %1319 = vmatpush.msra.mxu0 %v1287
        %1320 = vmatpush.msra.mxu0 %v1285
        %1321 = vmatmul.f32.gmra.mxu0 %v1294
        %v1322 = vpop.f32.mrf.mxu0
        %v1323 = vadd.f32 0.0, %v1322
        %1324 = vmatmul.f32.gmra.mxu0 %v1297
        %v1325 = vpop.f32.mrf.mxu0
        %v1326 = vadd.f32 0.0, %v1325
        %1327 = vmatmul.f32.gmra.mxu0 %v1300
        %v1328 = vpop.f32.mrf.mxu0
        %v1329 = vadd.f32 0.0, %v1328
        %1330 = vmatmul.f32.gmra.mxu0 %v1303
        %v1331 = vpop.f32.mrf.mxu0
        %v1332 = vadd.f32 0.0, %v1331
        %1333 = vdwg.mxu0
        %1334 = vmatpush.msra.mxu0 0.0
        %1335 = vmatpush.msra.mxu0 0.0
        %1336 = vmatpush.msra.mxu0 0.0
        %1337 = vmatpush.msra.mxu0 0.0
        %1338 = vmatpush.msra.mxu0 0.0
        %1339 = vmatpush.msra.mxu0 0.0
        %1340 = vmatpush.msra.mxu0 0.0
        %1341 = vmatpush.msra.mxu0 0.0
        %1342 = vmatpush.msra.mxu0 0.0
        %1343 = vmatpush.msra.mxu0 0.0
        %1344 = vmatpush.msra.mxu0 0.0
        %1345 = vmatpush.msra.mxu0 0.0
        %1346 = vmatpush.msra.mxu0 %v1292
        %1347 = vmatpush.msra.mxu0 %v1290
        %1348 = vmatpush.msra.mxu0 %v1288
        %1349 = vmatpush.msra.mxu0 %v1286
        %1350 = vmatmul.f32.gmra.mxu0 %v1294
        %v1351 = vpop.f32.mrf.mxu0
        %v1352 = vadd.f32 0.0, %v1351
        %1353 = vmatmul.f32.gmra.mxu0 %v1297
        %v1354 = vpop.f32.mrf.mxu0
        %v1355 = vadd.f32 0.0, %v1354
        %1356 = vmatmul.f32.gmra.mxu0 %v1300
        %v1357 = vpop.f32.mrf.mxu0
        %v1358 = vadd.f32 0.0, %v1357
        %1359 = vmatmul.f32.gmra.mxu0 %v1303
        %v1360 = vpop.f32.mrf.mxu0
        %v1361 = vadd.f32 0.0, %v1360
        %1362 = vdwg.mxu0
        %v1363 = vadd.f32 %v1272, %v1323
        %v1364 = vadd.f32 %v1273, %v1352
        %v1365 = vadd.f32 %v1274, %v1326
        %v1366 = vadd.f32 %v1275, %v1355
        %v1367 = vadd.f32 %v1276, %v1329
        %v1368 = vadd.f32 %v1277, %v1358
        %v1369 = vadd.f32 %v1278, %v1332
        %v1370 = vadd.f32 %v1279, %v1361
        %v1371 = vld [vmem:[%s551 + $0x3] sm:$0xff]
        %v1372 = vld [vmem:[%s551 + $0xb] sm:$0xff]
        %v1373 = vld [vmem:[%s551 + $0x13] sm:$0xff]
        %v1374 = vld [vmem:[%s551 + $0x1b] sm:$0xf]
        %s1375 = scalar_lea.vmem %s1, 704
        %v1376 = vld [vmem:[%s1375] sm:$0xff]
        %v1377 = vld [vmem:[%s1375 + $0x8] sm:$0xff]
        %v1378 = vld [vmem:[%s1375 + $0x10] sm:$0xff]
        %v1379 = vld [vmem:[%s1375 + $0x18] sm:$0xff]
        %v1380 = vld [vmem:[%s1375 + $0x20] sm:$0xff]
        %v1381 = vld [vmem:[%s1375 + $0x28] sm:$0xff]
        %v1382 = vld [vmem:[%s1375 + $0x30] sm:$0xff]
        %v1383 = vld [vmem:[%s1375 + $0x38] sm:$0xff]
        %v1385 = vsel %vm410, %v1371, 0
        %v1388 = vsel %vm410, %v1372, 0
        %v1391 = vsel %vm410, %v1373, 0
        %v1394 = vsel %vm410, %v1374, 0
        %1396 = vmatpush.msra.mxu0 0.0
        %1397 = vmatpush.msra.mxu0 0.0
        %1398 = vmatpush.msra.mxu0 0.0
        %1399 = vmatpush.msra.mxu0 0.0
        %1400 = vmatpush.msra.mxu0 0.0
        %1401 = vmatpush.msra.mxu0 0.0
        %1402 = vmatpush.msra.mxu0 0.0
        %1403 = vmatpush.msra.mxu0 0.0
        %1404 = vmatpush.msra.mxu0 0.0
        %1405 = vmatpush.msra.mxu0 0.0
        %1406 = vmatpush.msra.mxu0 0.0
        %1407 = vmatpush.msra.mxu0 0.0
        %1408 = vmatpush.msra.mxu0 %v1382
        %1409 = vmatpush.msra.mxu0 %v1380
        %1410 = vmatpush.msra.mxu0 %v1378
        %1411 = vmatpush.msra.mxu0 %v1376
        %1412 = vmatmul.f32.gmra.mxu0 %v1385
        %v1413 = vpop.f32.mrf.mxu0
        %v1414 = vadd.f32 0.0, %v1413
        %1415 = vmatmul.f32.gmra.mxu0 %v1388
        %v1416 = vpop.f32.mrf.mxu0
        %v1417 = vadd.f32 0.0, %v1416
        %1418 = vmatmul.f32.gmra.mxu0 %v1391
        %v1419 = vpop.f32.mrf.mxu0
        %v1420 = vadd.f32 0.0, %v1419
        %1421 = vmatmul.f32.gmra.mxu0 %v1394
        %v1422 = vpop.f32.mrf.mxu0
        %v1423 = vadd.f32 0.0, %v1422
        %1424 = vdwg.mxu0
        %1425 = vmatpush.msra.mxu0 0.0
        %1426 = vmatpush.msra.mxu0 0.0
        %1427 = vmatpush.msra.mxu0 0.0
        %1428 = vmatpush.msra.mxu0 0.0
        %1429 = vmatpush.msra.mxu0 0.0
        %1430 = vmatpush.msra.mxu0 0.0
        %1431 = vmatpush.msra.mxu0 0.0
        %1432 = vmatpush.msra.mxu0 0.0
        %1433 = vmatpush.msra.mxu0 0.0
        %1434 = vmatpush.msra.mxu0 0.0
        %1435 = vmatpush.msra.mxu0 0.0
        %1436 = vmatpush.msra.mxu0 0.0
        %1437 = vmatpush.msra.mxu0 %v1383
        %1438 = vmatpush.msra.mxu0 %v1381
        %1439 = vmatpush.msra.mxu0 %v1379
        %1440 = vmatpush.msra.mxu0 %v1377
        %1441 = vmatmul.f32.gmra.mxu0 %v1385
        %v1442 = vpop.f32.mrf.mxu0
        %v1443 = vadd.f32 0.0, %v1442
        %1444 = vmatmul.f32.gmra.mxu0 %v1388
        %v1445 = vpop.f32.mrf.mxu0
        %v1446 = vadd.f32 0.0, %v1445
        %1447 = vmatmul.f32.gmra.mxu0 %v1391
        %v1448 = vpop.f32.mrf.mxu0
        %v1449 = vadd.f32 0.0, %v1448
        %1450 = vmatmul.f32.gmra.mxu0 %v1394
        %v1451 = vpop.f32.mrf.mxu0
        %v1452 = vadd.f32 0.0, %v1451
        %1453 = vdwg.mxu0
        %v1454 = vadd.f32 %v1363, %v1414
        %v1455 = vadd.f32 %v1364, %v1443
        %v1456 = vadd.f32 %v1365, %v1417
        %v1457 = vadd.f32 %v1366, %v1446
        %v1458 = vadd.f32 %v1367, %v1420
        %v1459 = vadd.f32 %v1368, %v1449
        %v1460 = vadd.f32 %v1369, %v1423
        %v1461 = vadd.f32 %v1370, %v1452
        %v1462 = vld [vmem:[%s383 + $0x4] sm:$0xff]
        %v1463 = vld [vmem:[%s383 + $0xc] sm:$0xff]
        %v1464 = vld [vmem:[%s383 + $0x14] sm:$0xff]
        %v1465 = vld [vmem:[%s383 + $0x1c] sm:$0xf]
        %s1466 = scalar_lea.vmem %s1, 768
        %v1467 = vld [vmem:[%s1466] sm:$0xff]
        %v1468 = vld [vmem:[%s1466 + $0x8] sm:$0xff]
        %v1469 = vld [vmem:[%s1466 + $0x10] sm:$0xff]
        %v1470 = vld [vmem:[%s1466 + $0x18] sm:$0xff]
        %v1471 = vld [vmem:[%s1466 + $0x20] sm:$0xff]
        %v1472 = vld [vmem:[%s1466 + $0x28] sm:$0xff]
        %v1473 = vld [vmem:[%s1466 + $0x30] sm:$0xff]
        %v1474 = vld [vmem:[%s1466 + $0x38] sm:$0xff]
        %v1476 = vsel %vm410, %v1462, 0
        %v1479 = vsel %vm410, %v1463, 0
        %v1482 = vsel %vm410, %v1464, 0
        %v1485 = vsel %vm410, %v1465, 0
        %1487 = vmatpush.msra.mxu0 0.0
        %1488 = vmatpush.msra.mxu0 0.0
        %1489 = vmatpush.msra.mxu0 0.0
        %1490 = vmatpush.msra.mxu0 0.0
        %1491 = vmatpush.msra.mxu0 0.0
        %1492 = vmatpush.msra.mxu0 0.0
        %1493 = vmatpush.msra.mxu0 0.0
        %1494 = vmatpush.msra.mxu0 0.0
        %1495 = vmatpush.msra.mxu0 0.0
        %1496 = vmatpush.msra.mxu0 0.0
        %1497 = vmatpush.msra.mxu0 0.0
        %1498 = vmatpush.msra.mxu0 0.0
        %1499 = vmatpush.msra.mxu0 %v1473
        %1500 = vmatpush.msra.mxu0 %v1471
        %1501 = vmatpush.msra.mxu0 %v1469
        %1502 = vmatpush.msra.mxu0 %v1467
        %1503 = vmatmul.f32.gmra.mxu0 %v1476
        %v1504 = vpop.f32.mrf.mxu0
        %v1505 = vadd.f32 0.0, %v1504
        %1506 = vmatmul.f32.gmra.mxu0 %v1479
        %v1507 = vpop.f32.mrf.mxu0
        %v1508 = vadd.f32 0.0, %v1507
        %1509 = vmatmul.f32.gmra.mxu0 %v1482
        %v1510 = vpop.f32.mrf.mxu0
        %v1511 = vadd.f32 0.0, %v1510
        %1512 = vmatmul.f32.gmra.mxu0 %v1485
        %v1513 = vpop.f32.mrf.mxu0
        %v1514 = vadd.f32 0.0, %v1513
        %1515 = vdwg.mxu0
        %1516 = vmatpush.msra.mxu0 0.0
        %1517 = vmatpush.msra.mxu0 0.0
        %1518 = vmatpush.msra.mxu0 0.0
        %1519 = vmatpush.msra.mxu0 0.0
        %1520 = vmatpush.msra.mxu0 0.0
        %1521 = vmatpush.msra.mxu0 0.0
        %1522 = vmatpush.msra.mxu0 0.0
        %1523 = vmatpush.msra.mxu0 0.0
        %1524 = vmatpush.msra.mxu0 0.0
        %1525 = vmatpush.msra.mxu0 0.0
        %1526 = vmatpush.msra.mxu0 0.0
        %1527 = vmatpush.msra.mxu0 0.0
        %1528 = vmatpush.msra.mxu0 %v1474
        %1529 = vmatpush.msra.mxu0 %v1472
        %1530 = vmatpush.msra.mxu0 %v1470
        %1531 = vmatpush.msra.mxu0 %v1468
        %1532 = vmatmul.f32.gmra.mxu0 %v1476
        %v1533 = vpop.f32.mrf.mxu0
        %v1534 = vadd.f32 0.0, %v1533
        %1535 = vmatmul.f32.gmra.mxu0 %v1479
        %v1536 = vpop.f32.mrf.mxu0
        %v1537 = vadd.f32 0.0, %v1536
        %1538 = vmatmul.f32.gmra.mxu0 %v1482
        %v1539 = vpop.f32.mrf.mxu0
        %v1540 = vadd.f32 0.0, %v1539
        %1541 = vmatmul.f32.gmra.mxu0 %v1485
        %v1542 = vpop.f32.mrf.mxu0
        %v1543 = vadd.f32 0.0, %v1542
        %1544 = vdwg.mxu0
        %v1545 = vadd.f32 %v1454, %v1505
        %v1546 = vadd.f32 %v1455, %v1534
        %v1547 = vadd.f32 %v1456, %v1508
        %v1548 = vadd.f32 %v1457, %v1537
        %v1549 = vadd.f32 %v1458, %v1511
        %v1550 = vadd.f32 %v1459, %v1540
        %v1551 = vadd.f32 %v1460, %v1514
        %v1552 = vadd.f32 %v1461, %v1543
        %v1553 = vld [vmem:[%s396 + $0x4] sm:$0xff]
        %v1554 = vld [vmem:[%s396 + $0xc] sm:$0xff]
        %v1555 = vld [vmem:[%s396 + $0x14] sm:$0xff]
        %v1556 = vld [vmem:[%s396 + $0x1c] sm:$0xf]
        %s1557 = scalar_lea.vmem %s1, 832
        %v1558 = vld [vmem:[%s1557] sm:$0xff]
        %v1559 = vld [vmem:[%s1557 + $0x8] sm:$0xff]
        %v1560 = vld [vmem:[%s1557 + $0x10] sm:$0xff]
        %v1561 = vld [vmem:[%s1557 + $0x18] sm:$0xff]
        %v1562 = vld [vmem:[%s1557 + $0x20] sm:$0xff]
        %v1563 = vld [vmem:[%s1557 + $0x28] sm:$0xff]
        %v1564 = vld [vmem:[%s1557 + $0x30] sm:$0xff]
        %v1565 = vld [vmem:[%s1557 + $0x38] sm:$0xff]
        %v1567 = vsel %vm410, %v1553, 0
        %v1570 = vsel %vm410, %v1554, 0
        %v1573 = vsel %vm410, %v1555, 0
        %v1576 = vsel %vm410, %v1556, 0
        %1578 = vmatpush.msra.mxu0 0.0
        %1579 = vmatpush.msra.mxu0 0.0
        %1580 = vmatpush.msra.mxu0 0.0
        %1581 = vmatpush.msra.mxu0 0.0
        %1582 = vmatpush.msra.mxu0 0.0
        %1583 = vmatpush.msra.mxu0 0.0
        %1584 = vmatpush.msra.mxu0 0.0
        %1585 = vmatpush.msra.mxu0 0.0
        %1586 = vmatpush.msra.mxu0 0.0
        %1587 = vmatpush.msra.mxu0 0.0
        %1588 = vmatpush.msra.mxu0 0.0
        %1589 = vmatpush.msra.mxu0 0.0
        %1590 = vmatpush.msra.mxu0 %v1564
        %1591 = vmatpush.msra.mxu0 %v1562
        %1592 = vmatpush.msra.mxu0 %v1560
        %1593 = vmatpush.msra.mxu0 %v1558
        %1594 = vmatmul.f32.gmra.mxu0 %v1567
        %v1595 = vpop.f32.mrf.mxu0
        %v1596 = vadd.f32 0.0, %v1595
        %1597 = vmatmul.f32.gmra.mxu0 %v1570
        %v1598 = vpop.f32.mrf.mxu0
        %v1599 = vadd.f32 0.0, %v1598
        %1600 = vmatmul.f32.gmra.mxu0 %v1573
        %v1601 = vpop.f32.mrf.mxu0
        %v1602 = vadd.f32 0.0, %v1601
        %1603 = vmatmul.f32.gmra.mxu0 %v1576
        %v1604 = vpop.f32.mrf.mxu0
        %v1605 = vadd.f32 0.0, %v1604
        %1606 = vdwg.mxu0
        %1607 = vmatpush.msra.mxu0 0.0
        %1608 = vmatpush.msra.mxu0 0.0
        %1609 = vmatpush.msra.mxu0 0.0
        %1610 = vmatpush.msra.mxu0 0.0
        %1611 = vmatpush.msra.mxu0 0.0
        %1612 = vmatpush.msra.mxu0 0.0
        %1613 = vmatpush.msra.mxu0 0.0
        %1614 = vmatpush.msra.mxu0 0.0
        %1615 = vmatpush.msra.mxu0 0.0
        %1616 = vmatpush.msra.mxu0 0.0
        %1617 = vmatpush.msra.mxu0 0.0
        %1618 = vmatpush.msra.mxu0 0.0
        %1619 = vmatpush.msra.mxu0 %v1565
        %1620 = vmatpush.msra.mxu0 %v1563
        %1621 = vmatpush.msra.mxu0 %v1561
        %1622 = vmatpush.msra.mxu0 %v1559
        %1623 = vmatmul.f32.gmra.mxu0 %v1567
        %v1624 = vpop.f32.mrf.mxu0
        %v1625 = vadd.f32 0.0, %v1624
        %1626 = vmatmul.f32.gmra.mxu0 %v1570
        %v1627 = vpop.f32.mrf.mxu0
        %v1628 = vadd.f32 0.0, %v1627
        %1629 = vmatmul.f32.gmra.mxu0 %v1573
        %v1630 = vpop.f32.mrf.mxu0
        %v1631 = vadd.f32 0.0, %v1630
        %1632 = vmatmul.f32.gmra.mxu0 %v1576
        %v1633 = vpop.f32.mrf.mxu0
        %v1634 = vadd.f32 0.0, %v1633
        %1635 = vdwg.mxu0
        %v1636 = vadd.f32 %v1545, %v1596
        %v1637 = vadd.f32 %v1546, %v1625
        %v1638 = vadd.f32 %v1547, %v1599
        %v1639 = vadd.f32 %v1548, %v1628
        %v1640 = vadd.f32 %v1549, %v1602
        %v1641 = vadd.f32 %v1550, %v1631
        %v1642 = vadd.f32 %v1551, %v1605
        %v1643 = vadd.f32 %v1552, %v1634
        %v1644 = vld [vmem:[%s551 + $0x4] sm:$0xff]
        %v1645 = vld [vmem:[%s551 + $0xc] sm:$0xff]
        %v1646 = vld [vmem:[%s551 + $0x14] sm:$0xff]
        %v1647 = vld [vmem:[%s551 + $0x1c] sm:$0xf]
        %s1648 = scalar_lea.vmem %s1, 896
        %v1649 = vld [vmem:[%s1648] sm:$0xff]
        %v1650 = vld [vmem:[%s1648 + $0x8] sm:$0xff]
        %v1651 = vld [vmem:[%s1648 + $0x10] sm:$0xff]
        %v1652 = vld [vmem:[%s1648 + $0x18] sm:$0xff]
        %v1653 = vld [vmem:[%s1648 + $0x20] sm:$0xff]
        %v1654 = vld [vmem:[%s1648 + $0x28] sm:$0xff]
        %v1655 = vld [vmem:[%s1648 + $0x30] sm:$0xff]
        %v1656 = vld [vmem:[%s1648 + $0x38] sm:$0xff]
        %v1658 = vsel %vm410, %v1644, 0
        %v1661 = vsel %vm410, %v1645, 0
        %v1664 = vsel %vm410, %v1646, 0
        %v1667 = vsel %vm410, %v1647, 0
        %1669 = vmatpush.msra.mxu0 0.0
        %1670 = vmatpush.msra.mxu0 0.0
        %1671 = vmatpush.msra.mxu0 0.0
        %1672 = vmatpush.msra.mxu0 0.0
        %1673 = vmatpush.msra.mxu0 0.0
        %1674 = vmatpush.msra.mxu0 0.0
        %1675 = vmatpush.msra.mxu0 0.0
        %1676 = vmatpush.msra.mxu0 0.0
        %1677 = vmatpush.msra.mxu0 0.0
        %1678 = vmatpush.msra.mxu0 0.0
        %1679 = vmatpush.msra.mxu0 0.0
        %1680 = vmatpush.msra.mxu0 0.0
        %1681 = vmatpush.msra.mxu0 %v1655
        %1682 = vmatpush.msra.mxu0 %v1653
        %1683 = vmatpush.msra.mxu0 %v1651
        %1684 = vmatpush.msra.mxu0 %v1649
        %1685 = vmatmul.f32.gmra.mxu0 %v1658
        %v1686 = vpop.f32.mrf.mxu0
        %v1687 = vadd.f32 0.0, %v1686
        %1688 = vmatmul.f32.gmra.mxu0 %v1661
        %v1689 = vpop.f32.mrf.mxu0
        %v1690 = vadd.f32 0.0, %v1689
        %1691 = vmatmul.f32.gmra.mxu0 %v1664
        %v1692 = vpop.f32.mrf.mxu0
        %v1693 = vadd.f32 0.0, %v1692
        %1694 = vmatmul.f32.gmra.mxu0 %v1667
        %v1695 = vpop.f32.mrf.mxu0
        %v1696 = vadd.f32 0.0, %v1695
        %1697 = vdwg.mxu0
        %1698 = vmatpush.msra.mxu0 0.0
        %1699 = vmatpush.msra.mxu0 0.0
        %1700 = vmatpush.msra.mxu0 0.0
        %1701 = vmatpush.msra.mxu0 0.0
        %1702 = vmatpush.msra.mxu0 0.0
        %1703 = vmatpush.msra.mxu0 0.0
        %1704 = vmatpush.msra.mxu0 0.0
        %1705 = vmatpush.msra.mxu0 0.0
        %1706 = vmatpush.msra.mxu0 0.0
        %1707 = vmatpush.msra.mxu0 0.0
        %1708 = vmatpush.msra.mxu0 0.0
        %1709 = vmatpush.msra.mxu0 0.0
        %1710 = vmatpush.msra.mxu0 %v1656
        %1711 = vmatpush.msra.mxu0 %v1654
        %1712 = vmatpush.msra.mxu0 %v1652
        %1713 = vmatpush.msra.mxu0 %v1650
        %1714 = vmatmul.f32.gmra.mxu0 %v1658
        %v1715 = vpop.f32.mrf.mxu0
        %v1716 = vadd.f32 0.0, %v1715
        %1717 = vmatmul.f32.gmra.mxu0 %v1661
        %v1718 = vpop.f32.mrf.mxu0
        %v1719 = vadd.f32 0.0, %v1718
        %1720 = vmatmul.f32.gmra.mxu0 %v1664
        %v1721 = vpop.f32.mrf.mxu0
        %v1722 = vadd.f32 0.0, %v1721
        %1723 = vmatmul.f32.gmra.mxu0 %v1667
        %v1724 = vpop.f32.mrf.mxu0
        %v1725 = vadd.f32 0.0, %v1724
        %1726 = vdwg.mxu0
        %v1727 = vadd.f32 %v1636, %v1687
        %v1728 = vadd.f32 %v1637, %v1716
        %v1729 = vadd.f32 %v1638, %v1690
        %v1730 = vadd.f32 %v1639, %v1719
        %v1731 = vadd.f32 %v1640, %v1693
        %v1732 = vadd.f32 %v1641, %v1722
        %v1733 = vadd.f32 %v1642, %v1696
        %v1734 = vadd.f32 %v1643, %v1725
        %v1735 = vld [vmem:[%s2] sm:$0x3]
        %v1737 = vperm.slane %v1735, 0
        %v1738 = vperm.slane %v1735, 1
        %v1741 = vadd.f32 %v1727, %v1737
        %v1742 = vadd.f32 %v1728, %v1738
        %v1743 = vadd.f32 %v1729, %v1737
        %v1744 = vadd.f32 %v1730, %v1738
        %v1745 = vadd.f32 %v1731, %v1737
        %v1746 = vadd.f32 %v1732, %v1738
        %v1747 = vadd.f32 %v1733, %v1737
        %v1748 = vadd.f32 %v1734, %v1738
        %v1749 = vmax.f32 %v1741, 0.0
        %v1750 = vmax.f32 %v1742, 0.0
        %v1751 = vmax.f32 %v1743, 0.0
        %v1752 = vmax.f32 %v1744, 0.0
        %v1753 = vmax.f32 %v1745, 0.0
        %v1754 = vmax.f32 %v1746, 0.0
        %v1755 = vmax.f32 %v1747, 0.0
        %v1756 = vmax.f32 %v1748, 0.0
        %vm1765 = vcmask 1046528
        %v1766 = vrot.slane %v1749, 1
        %v1767 = vrot.slane %v1751, 1
        %v1768 = vsel %vm1765, %v1766, %v1767
        %v1769 = vrot.slane %v1750, 1
        %v1770 = vrot.slane %v1752, 1
        %v1771 = vsel %vm1765, %v1769, %v1770
        %v1772 = vrot.slane %v1753, 1
        %v1773 = vsel %vm1765, %v1767, %v1772
        %v1774 = vrot.slane %v1754, 1
        %v1775 = vsel %vm1765, %v1770, %v1774
        %v1776 = vrot.slane %v1755, 1
        %v1777 = vsel %vm1765, %v1772, %v1776
        %v1778 = vrot.slane %v1756, 1
        %v1779 = vsel %vm1765, %v1774, %v1778
        %v1788 = vmax.f32 %v1749, %v1768
        %v1789 = vmax.f32 %v1750, %v1771
        %v1790 = vmax.f32 %v1751, %v1773
        %v1791 = vmax.f32 %v1752, %v1775
        %v1792 = vmax.f32 %v1753, %v1777
        %v1793 = vmax.f32 %v1754, %v1779
        %v1794 = vmax.f32 %v1755, %v1776
        %v1795 = vmax.f32 %v1756, %v1778
        %1804 = vrot.lane.b32.xlu0 %v1788, 122
        %v1805 = vpop.permute.xlu0 %1804
        %1806 = vrot.lane.b32.xlu0 %v1789, 122
        %v1807 = vpop.permute.xlu0 %1806
        %1808 = vrot.lane.b32.xlu0 %v1790, 122
        %v1809 = vpop.permute.xlu0 %1808
        %1810 = vrot.lane.b32.xlu0 %v1791, 122
        %v1811 = vpop.permute.xlu0 %1810
        %1812 = vrot.lane.b32.xlu0 %v1792, 122
        %v1813 = vpop.permute.xlu0 %1812
        %1814 = vrot.lane.b32.xlu0 %v1793, 122
        %v1815 = vpop.permute.xlu0 %1814
        %1816 = vrot.lane.b32.xlu0 %v1794, 122
        %v1817 = vpop.permute.xlu0 %1816
        %1818 = vrot.lane.b32.xlu0 %v1795, 122
        %v1819 = vpop.permute.xlu0 %1818
        %vm1820 = vcmask 998400
        %v1821 = vsel %vm1820, %v1805, %v1807
        %v1822 = vsel %vm1820, %v1809, %v1811
        %v1823 = vsel %vm1820, %v1813, %v1815
        %v1824 = vsel %vm1820, %v1817, %v1819
        %v1833 = vmax.f32 %v1788, %v1821
        %v1834 = vmax.f32 %v1789, %v1807
        %v1835 = vmax.f32 %v1790, %v1822
        %v1836 = vmax.f32 %v1791, %v1811
        %v1837 = vmax.f32 %v1792, %v1823
        %v1838 = vmax.f32 %v1793, %v1815
        %v1839 = vmax.f32 %v1794, %v1824
        %v1840 = vmax.f32 %v1795, %v1819
        %v1843 = vrot.slane %v1834, 7
        %vm1844 = vcmask 1040384
        %v1845 = vsel %vm1844, %v1833, %v1843
        %v1847 = vlaneseq
        %vm1848 = vcmp.ge.s32.totalorder %v1847, 0
        %vm1849 = vcmp.lt.s32.totalorder %v1847, 162
        %vm1850 = vmand %vm1848, %vm1849
        %1851 = vst.msk [vmem:[#allocation2] ss:$8 sm:$0x3] %vm1850, %v1845
        %1852 = vst.msk [vmem:[#allocation2] ss:$8 sm:$0x0] %vm1850, %v1845
        %1853 = vst [vmem:[#allocation1] sm:$0xff] %v1833
        %1854 = vst [vmem:[#allocation1 + $0x9] sm:$0xff] %v1834
        %s1855 = scalar_lea.vmem [#allocation1], 2
        %v1856 = vld [vmem:[%s1855] ss:$9 sm:$0xff]
        %s1858 = scalar_lea.vmem [#allocation2], 1
        %1859 = vst.msk [vmem:[%s1858] ss:$8 sm:$0x3] %vm1850, %v1856
        %1860 = vst.msk [vmem:[%s1858] ss:$8 sm:$0x0] %vm1850, %v1856
        %1861 = vst [vmem:[#allocation1] sm:$0xff] %v1833
        %1862 = vst [vmem:[#allocation1 + $0x9] sm:$0xff] %v1834
        %s1863 = scalar_lea.vmem [#allocation1], 4
        %v1864 = vld [vmem:[%s1863] ss:$9 sm:$0xff]
        %s1866 = scalar_lea.vmem [#allocation2], 2
        %1867 = vst.msk [vmem:[%s1866] ss:$8 sm:$0x3] %vm1850, %v1864
        %1868 = vst.msk [vmem:[%s1866] ss:$8 sm:$0x0] %vm1850, %v1864
        %1869 = vst [vmem:[#allocation1] sm:$0xff] %v1833
        %1870 = vst [vmem:[#allocation1 + $0x9] sm:$0xff] %v1834
        %s1871 = scalar_lea.vmem [#allocation1], 6
        %v1872 = vld [vmem:[%s1871] ss:$9 sm:$0xff]
        %s1874 = scalar_lea.vmem [#allocation2], 3
        %1875 = vst.msk [vmem:[%s1874] ss:$8 sm:$0x3] %vm1850, %v1872
        %1876 = vst.msk [vmem:[%s1874] ss:$8 sm:$0x0] %vm1850, %v1872
        %v1879 = vrot.slane %v1836, 7
        %v1880 = vsel %vm1844, %v1835, %v1879
        %s1882 = scalar_lea.vmem [#allocation2], 4
        %1883 = vst.msk [vmem:[%s1882] ss:$8 sm:$0x3] %vm1850, %v1880
        %1884 = vst.msk [vmem:[%s1882] ss:$8 sm:$0x0] %vm1850, %v1880
        %1885 = vst [vmem:[#allocation1] sm:$0xff] %v1835
        %1886 = vst [vmem:[#allocation1 + $0x9] sm:$0xff] %v1836
        %s1887 = scalar_lea.vmem [#allocation1], 2
        %v1888 = vld [vmem:[%s1887] ss:$9 sm:$0xff]
        %s1890 = scalar_lea.vmem [#allocation2], 5
        %1891 = vst.msk [vmem:[%s1890] ss:$8 sm:$0x3] %vm1850, %v1888
        %1892 = vst.msk [vmem:[%s1890] ss:$8 sm:$0x0] %vm1850, %v1888
        %1893 = vst [vmem:[#allocation1] sm:$0xff] %v1835
        %1894 = vst [vmem:[#allocation1 + $0x9] sm:$0xff] %v1836
        %s1895 = scalar_lea.vmem [#allocation1], 4
        %v1896 = vld [vmem:[%s1895] ss:$9 sm:$0xff]
        %s1898 = scalar_lea.vmem [#allocation2], 6
        %1899 = vst.msk [vmem:[%s1898] ss:$8 sm:$0x3] %vm1850, %v1896
        %1900 = vst.msk [vmem:[%s1898] ss:$8 sm:$0x0] %vm1850, %v1896
        %1901 = vst [vmem:[#allocation1] sm:$0xff] %v1835
        %1902 = vst [vmem:[#allocation1 + $0x9] sm:$0xff] %v1836
        %s1903 = scalar_lea.vmem [#allocation1], 6
        %v1904 = vld [vmem:[%s1903] ss:$9 sm:$0xff]
        %s1906 = scalar_lea.vmem [#allocation2], 7
        %1907 = vst.msk [vmem:[%s1906] ss:$8 sm:$0x3] %vm1850, %v1904
        %1908 = vst.msk [vmem:[%s1906] ss:$8 sm:$0x0] %vm1850, %v1904
        %v1911 = vrot.slane %v1838, 7
        %v1912 = vsel %vm1844, %v1837, %v1911
        %s1914 = scalar_lea.vmem [#allocation2], 16
        %1915 = vst.msk [vmem:[%s1914] ss:$8 sm:$0x3] %vm1850, %v1912
        %1916 = vst.msk [vmem:[%s1914] ss:$8 sm:$0x0] %vm1850, %v1912
        %1917 = vst [vmem:[#allocation1] sm:$0xff] %v1837
        %1918 = vst [vmem:[#allocation1 + $0x9] sm:$0xff] %v1838
        %s1919 = scalar_lea.vmem [#allocation1], 2
        %v1920 = vld [vmem:[%s1919] ss:$9 sm:$0xff]
        %s1922 = scalar_lea.vmem [#allocation2], 17
        %1923 = vst.msk [vmem:[%s1922] ss:$8 sm:$0x3] %vm1850, %v1920
        %1924 = vst.msk [vmem:[%s1922] ss:$8 sm:$0x0] %vm1850, %v1920
        %1925 = vst [vmem:[#allocation1] sm:$0xff] %v1837
        %1926 = vst [vmem:[#allocation1 + $0x9] sm:$0xff] %v1838
        %s1927 = scalar_lea.vmem [#allocation1], 4
        %v1928 = vld [vmem:[%s1927] ss:$9 sm:$0xff]
        %s1930 = scalar_lea.vmem [#allocation2], 18
        %1931 = vst.msk [vmem:[%s1930] ss:$8 sm:$0x3] %vm1850, %v1928
        %1932 = vst.msk [vmem:[%s1930] ss:$8 sm:$0x0] %vm1850, %v1928
        %1933 = vst [vmem:[#allocation1] sm:$0xff] %v1837
        %1934 = vst [vmem:[#allocation1 + $0x9] sm:$0xff] %v1838
        %s1935 = scalar_lea.vmem [#allocation1], 6
        %v1936 = vld [vmem:[%s1935] ss:$9 sm:$0xff]
        %s1938 = scalar_lea.vmem [#allocation2], 19
        %1939 = vst.msk [vmem:[%s1938] ss:$8 sm:$0x3] %vm1850, %v1936
        %1940 = vst.msk [vmem:[%s1938] ss:$8 sm:$0x0] %vm1850, %v1936
        %v1943 = vrot.slane %v1840, 7
        %v1944 = vsel %vm1844, %v1839, %v1943
        %s1946 = scalar_lea.vmem [#allocation2], 20
        %1947 = vst.msk [vmem:[%s1946] ss:$8 sm:$0x3] %vm1850, %v1944
        %1948 = vst.msk [vmem:[%s1946] ss:$8 sm:$0x0] %vm1850, %v1944
        %1949 = vst [vmem:[#allocation1] sm:$0xff] %v1839
        %1950 = vst [vmem:[#allocation1 + $0x9] sm:$0xff] %v1840
        %s1951 = scalar_lea.vmem [#allocation1], 2
        %v1952 = vld [vmem:[%s1951] ss:$9 sm:$0xff]
        %s1954 = scalar_lea.vmem [#allocation2], 21
        %1955 = vst.msk [vmem:[%s1954] ss:$8 sm:$0x3] %vm1850, %v1952
        %1956 = vst.msk [vmem:[%s1954] ss:$8 sm:$0x0] %vm1850, %v1952
        %v1957 = vld [vmem:[#allocation2] sm:$0xff]
        %v1958 = vld [vmem:[#allocation2 + $0x8] sm:$0xff]
        %v1959 = vld [vmem:[#allocation2 + $0x10] sm:$0x3]
        %v1960 = vld [vmem:[#allocation2 + $0x18] sm:$0x3]
        %v1961 = vld [vmem:[%s3] sm:$0xff]
        %v1962 = vld [vmem:[%s3 + $0x8] sm:$0xff]
        %v1963 = vld [vmem:[%s3 + $0x10] sm:$0xff]
        %v1964 = vld [vmem:[%s3 + $0x18] sm:$0xff]
        %v1965 = vld [vmem:[%s3 + $0x20] sm:$0xff]
        %v1966 = vld [vmem:[%s3 + $0x28] sm:$0xff]
        %v1967 = vld [vmem:[%s3 + $0x30] sm:$0xff]
        %v1968 = vld [vmem:[%s3 + $0x38] sm:$0xff]
        %v1969 = vld [vmem:[%s3 + $0x40] sm:$0xff]
        %v1970 = vld [vmem:[%s3 + $0x48] sm:$0xff]
        %v1971 = vld [vmem:[%s3 + $0x50] sm:$0xff]
        %v1972 = vld [vmem:[%s3 + $0x58] sm:$0xff]
        %v1973 = vld [vmem:[%s3 + $0x60] sm:$0xff]
        %v1974 = vld [vmem:[%s3 + $0x68] sm:$0xff]
        %v1975 = vld [vmem:[%s3 + $0x70] sm:$0xff]
        %v1976 = vld [vmem:[%s3 + $0x78] sm:$0xff]
        %v1977 = vld [vmem:[%s3 + $0x80] sm:$0xff]
        %v1978 = vld [vmem:[%s3 + $0x88] sm:$0xff]
        %v1979 = vld [vmem:[%s3 + $0x90] sm:$0xff]
        %v1980 = vld [vmem:[%s3 + $0x98] sm:$0xff]
        %v1981 = vld [vmem:[%s3 + $0xa0] sm:$0xff]
        %v1982 = vld [vmem:[%s3 + $0xa8] sm:$0xff]
        %v1983 = vld [vmem:[%s3 + $0xb0] sm:$0xff]
        %v1984 = vld [vmem:[%s3 + $0xb8] sm:$0xff]
        %v1985 = vld [vmem:[%s3 + $0xc0] sm:$0xff]
        %v1986 = vld [vmem:[%s3 + $0xc8] sm:$0xff]
        %v1987 = vld [vmem:[%s3 + $0xd0] sm:$0xff]
        %v1988 = vld [vmem:[%s3 + $0xd8] sm:$0xff]
        %v1989 = vld [vmem:[%s3 + $0xe0] sm:$0xff]
        %v1990 = vld [vmem:[%s3 + $0xe8] sm:$0xff]
        %v1991 = vld [vmem:[%s3 + $0xf0] sm:$0xff]
        %v1992 = vld [vmem:[%s3 + $0xf8] sm:$0xff]
        %v1993 = vld [vmem:[%s3 + $0x100] sm:$0xff]
        %v1994 = vld [vmem:[%s3 + $0x108] sm:$0xff]
        %v1995 = vld [vmem:[%s3 + $0x110] sm:$0xff]
        %v1996 = vld [vmem:[%s3 + $0x118] sm:$0xff]
        %v1997 = vld [vmem:[%s3 + $0x120] sm:$0xff]
        %v1998 = vld [vmem:[%s3 + $0x128] sm:$0xff]
        %v1999 = vld [vmem:[%s3 + $0x130] sm:$0xff]
        %v2000 = vld [vmem:[%s3 + $0x138] sm:$0xff]
        %v2001 = vld [vmem:[%s3 + $0x140] sm:$0x3]
        %v2002 = vld [vmem:[%s3 + $0x148] sm:$0x3]
        %v2003 = vld [vmem:[#allocation2] sm:$0xfe]
        %v2004 = vld [vmem:[#allocation2 + $0x8] sm:$0xfe]
        %v2005 = vld [vmem:[#allocation2 + $0x10] sm:$0x7]
        %v2006 = vld [vmem:[#allocation2 + $0x18] sm:$0x7]
        %s2007 = scalar_lea.vmem %s3, 336
        %v2008 = vld [vmem:[%s2007] sm:$0xff]
        %v2009 = vld [vmem:[%s2007 + $0x8] sm:$0xff]
        %v2010 = vld [vmem:[%s2007 + $0x10] sm:$0xff]
        %v2011 = vld [vmem:[%s2007 + $0x18] sm:$0xff]
        %v2012 = vld [vmem:[%s2007 + $0x20] sm:$0xff]
        %v2013 = vld [vmem:[%s2007 + $0x28] sm:$0xff]
        %v2014 = vld [vmem:[%s2007 + $0x30] sm:$0xff]
        %v2015 = vld [vmem:[%s2007 + $0x38] sm:$0xff]
        %v2016 = vld [vmem:[%s2007 + $0x40] sm:$0xff]
        %v2017 = vld [vmem:[%s2007 + $0x48] sm:$0xff]
        %v2018 = vld [vmem:[%s2007 + $0x50] sm:$0xff]
        %v2019 = vld [vmem:[%s2007 + $0x58] sm:$0xff]
        %v2020 = vld [vmem:[%s2007 + $0x60] sm:$0xff]
        %v2021 = vld [vmem:[%s2007 + $0x68] sm:$0xff]
        %v2022 = vld [vmem:[%s2007 + $0x70] sm:$0xff]
        %v2023 = vld [vmem:[%s2007 + $0x78] sm:$0xff]
        %v2024 = vld [vmem:[%s2007 + $0x80] sm:$0xff]
        %v2025 = vld [vmem:[%s2007 + $0x88] sm:$0xff]
        %v2026 = vld [vmem:[%s2007 + $0x90] sm:$0xff]
        %v2027 = vld [vmem:[%s2007 + $0x98] sm:$0xff]
        %v2028 = vld [vmem:[%s2007 + $0xa0] sm:$0xff]
        %v2029 = vld [vmem:[%s2007 + $0xa8] sm:$0xff]
        %v2030 = vld [vmem:[%s2007 + $0xb0] sm:$0xff]
        %v2031 = vld [vmem:[%s2007 + $0xb8] sm:$0xff]
        %v2032 = vld [vmem:[%s2007 + $0xc0] sm:$0xff]
        %v2033 = vld [vmem:[%s2007 + $0xc8] sm:$0xff]
        %v2034 = vld [vmem:[%s2007 + $0xd0] sm:$0xff]
        %v2035 = vld [vmem:[%s2007 + $0xd8] sm:$0xff]
        %v2036 = vld [vmem:[%s2007 + $0xe0] sm:$0xff]
        %v2037 = vld [vmem:[%s2007 + $0xe8] sm:$0xff]
        %v2038 = vld [vmem:[%s2007 + $0xf0] sm:$0xff]
        %v2039 = vld [vmem:[%s2007 + $0xf8] sm:$0xff]
        %v2040 = vld [vmem:[%s2007 + $0x100] sm:$0xff]
        %v2041 = vld [vmem:[%s2007 + $0x108] sm:$0xff]
        %v2042 = vld [vmem:[%s2007 + $0x110] sm:$0xff]
        %v2043 = vld [vmem:[%s2007 + $0x118] sm:$0xff]
        %v2044 = vld [vmem:[%s2007 + $0x120] sm:$0xff]
        %v2045 = vld [vmem:[%s2007 + $0x128] sm:$0xff]
        %v2046 = vld [vmem:[%s2007 + $0x130] sm:$0xff]
        %v2047 = vld [vmem:[%s2007 + $0x138] sm:$0xff]
        %v2048 = vld [vmem:[%s2007 + $0x140] sm:$0x3]
        %v2049 = vld [vmem:[%s2007 + $0x148] sm:$0x3]
        %v2054 = vrot.slane %v2003, 1
        %v2055 = vrot.slane %v2005, 1
        %v2056 = vsel %vm1765, %v2054, %v2055
        %v2057 = vrot.slane %v2004, 1
        %v2058 = vrot.slane %v2006, 1
        %v2059 = vsel %vm1765, %v2057, %v2058
        %vm2062 = vcmask 277504
        %v2063 = vsel %vm2062, %v2059, 0
        %v2065 = vsel %vm2062, %v2058, 0
        %vm2067 = vcmask 1041408
        %v2069 = vsel %vm2067, %v2048, 0
        %v2072 = vsel %vm2067, %v2049, 0
        %2074 = vmatpush.msra.mxu0 %v2038
        %2075 = vmatpush.msra.mxu0 %v2036
        %2076 = vmatpush.msra.mxu0 %v2034
        %2077 = vmatpush.msra.mxu0 %v2032
        %2078 = vmatpush.msra.mxu0 %v2030
        %2079 = vmatpush.msra.mxu0 %v2028
        %2080 = vmatpush.msra.mxu0 %v2026
        %2081 = vmatpush.msra.mxu0 %v2024
        %2082 = vmatpush.msra.mxu0 %v2022
        %2083 = vmatpush.msra.mxu0 %v2020
        %2084 = vmatpush.msra.mxu0 %v2018
        %2085 = vmatpush.msra.mxu0 %v2016
        %2086 = vmatpush.msra.mxu0 %v2014
        %2087 = vmatpush.msra.mxu0 %v2012
        %2088 = vmatpush.msra.mxu0 %v2010
        %2089 = vmatpush.msra.mxu0 %v2008
        %2090 = vmatmul.f32.gmra.mxu0 %v2056
        %v2091 = vpop.f32.mrf.mxu0
        %v2092 = vadd.f32 0.0, %v2091
        %2093 = vmatmul.f32.gmra.mxu0 %v2055
        %v2094 = vpop.f32.mrf.mxu0
        %v2095 = vadd.f32 0.0, %v2094
        %2096 = vdwg.mxu0
        %2097 = vmatpush.msra.mxu0 0.0
        %2098 = vmatpush.msra.mxu0 0.0
        %2099 = vmatpush.msra.mxu0 0.0
        %2100 = vmatpush.msra.mxu0 0.0
        %2101 = vmatpush.msra.mxu0 0.0
        %2102 = vmatpush.msra.mxu0 0.0
        %2103 = vmatpush.msra.mxu0 0.0
        %2104 = vmatpush.msra.mxu0 0.0
        %2105 = vmatpush.msra.mxu0 0.0
        %2106 = vmatpush.msra.mxu0 0.0
        %2107 = vmatpush.msra.mxu0 0.0
        %2108 = vmatpush.msra.mxu0 %v2069
        %2109 = vmatpush.msra.mxu0 %v2046
        %2110 = vmatpush.msra.mxu0 %v2044
        %2111 = vmatpush.msra.mxu0 %v2042
        %2112 = vmatpush.msra.mxu0 %v2040
        %2113 = vmatmul.f32.gmra.mxu0 %v2063
        %v2114 = vpop.f32.mrf.mxu0
        %v2115 = vadd.f32 %v2092, %v2114
        %2116 = vmatmul.f32.gmra.mxu0 %v2065
        %v2117 = vpop.f32.mrf.mxu0
        %v2118 = vadd.f32 %v2095, %v2117
        %2119 = vdwg.mxu0
        %2120 = vmatpush.msra.mxu0 %v2039
        %2121 = vmatpush.msra.mxu0 %v2037
        %2122 = vmatpush.msra.mxu0 %v2035
        %2123 = vmatpush.msra.mxu0 %v2033
        %2124 = vmatpush.msra.mxu0 %v2031
        %2125 = vmatpush.msra.mxu0 %v2029
        %2126 = vmatpush.msra.mxu0 %v2027
        %2127 = vmatpush.msra.mxu0 %v2025
        %2128 = vmatpush.msra.mxu0 %v2023
        %2129 = vmatpush.msra.mxu0 %v2021
        %2130 = vmatpush.msra.mxu0 %v2019
        %2131 = vmatpush.msra.mxu0 %v2017
        %2132 = vmatpush.msra.mxu0 %v2015
        %2133 = vmatpush.msra.mxu0 %v2013
        %2134 = vmatpush.msra.mxu0 %v2011
        %2135 = vmatpush.msra.mxu0 %v2009
        %2136 = vmatmul.f32.gmra.mxu0 %v2056
        %v2137 = vpop.f32.mrf.mxu0
        %v2138 = vadd.f32 0.0, %v2137
        %2139 = vmatmul.f32.gmra.mxu0 %v2055
        %v2140 = vpop.f32.mrf.mxu0
        %v2141 = vadd.f32 0.0, %v2140
        %2142 = vdwg.mxu0
        %2143 = vmatpush.msra.mxu0 0.0
        %2144 = vmatpush.msra.mxu0 0.0
        %2145 = vmatpush.msra.mxu0 0.0
        %2146 = vmatpush.msra.mxu0 0.0
        %2147 = vmatpush.msra.mxu0 0.0
        %2148 = vmatpush.msra.mxu0 0.0
        %2149 = vmatpush.msra.mxu0 0.0
        %2150 = vmatpush.msra.mxu0 0.0
        %2151 = vmatpush.msra.mxu0 0.0
        %2152 = vmatpush.msra.mxu0 0.0
        %2153 = vmatpush.msra.mxu0 0.0
        %2154 = vmatpush.msra.mxu0 %v2072
        %2155 = vmatpush.msra.mxu0 %v2047
        %2156 = vmatpush.msra.mxu0 %v2045
        %2157 = vmatpush.msra.mxu0 %v2043
        %2158 = vmatpush.msra.mxu0 %v2041
        %2159 = vmatmul.f32.gmra.mxu0 %v2063
        %v2160 = vpop.f32.mrf.mxu0
        %v2161 = vadd.f32 %v2138, %v2160
        %2162 = vmatmul.f32.gmra.mxu0 %v2065
        %v2163 = vpop.f32.mrf.mxu0
        %v2164 = vadd.f32 %v2141, %v2163
        %2165 = vdwg.mxu0
        %v2167 = vsel %vm2062, %v1958, 0
        %v2170 = vsel %vm2062, %v1960, 0
        %v2173 = vsel %vm2067, %v2001, 0
        %v2176 = vsel %vm2067, %v2002, 0
        %2178 = vmatpush.msra.mxu0 %v1991
        %2179 = vmatpush.msra.mxu0 %v1989
        %2180 = vmatpush.msra.mxu0 %v1987
        %2181 = vmatpush.msra.mxu0 %v1985
        %2182 = vmatpush.msra.mxu0 %v1983
        %2183 = vmatpush.msra.mxu0 %v1981
        %2184 = vmatpush.msra.mxu0 %v1979
        %2185 = vmatpush.msra.mxu0 %v1977
        %2186 = vmatpush.msra.mxu0 %v1975
        %2187 = vmatpush.msra.mxu0 %v1973
        %2188 = vmatpush.msra.mxu0 %v1971
        %2189 = vmatpush.msra.mxu0 %v1969
        %2190 = vmatpush.msra.mxu0 %v1967
        %2191 = vmatpush.msra.mxu0 %v1965
        %2192 = vmatpush.msra.mxu0 %v1963
        %2193 = vmatpush.msra.mxu0 %v1961
        %2194 = vmatmul.f32.gmra.mxu0 %v1957
        %v2195 = vpop.f32.mrf.mxu0
        %v2196 = vadd.f32 %v2115, %v2195
        %2197 = vmatmul.f32.gmra.mxu0 %v1959
        %v2198 = vpop.f32.mrf.mxu0
        %v2199 = vadd.f32 %v2118, %v2198
        %2200 = vdwg.mxu0
        %2201 = vmatpush.msra.mxu0 0.0
        %2202 = vmatpush.msra.mxu0 0.0
        %2203 = vmatpush.msra.mxu0 0.0
        %2204 = vmatpush.msra.mxu0 0.0
        %2205 = vmatpush.msra.mxu0 0.0
        %2206 = vmatpush.msra.mxu0 0.0
        %2207 = vmatpush.msra.mxu0 0.0
        %2208 = vmatpush.msra.mxu0 0.0
        %2209 = vmatpush.msra.mxu0 0.0
        %2210 = vmatpush.msra.mxu0 0.0
        %2211 = vmatpush.msra.mxu0 0.0
        %2212 = vmatpush.msra.mxu0 %v2173
        %2213 = vmatpush.msra.mxu0 %v1999
        %2214 = vmatpush.msra.mxu0 %v1997
        %2215 = vmatpush.msra.mxu0 %v1995
        %2216 = vmatpush.msra.mxu0 %v1993
        %2217 = vmatmul.f32.gmra.mxu0 %v2167
        %v2218 = vpop.f32.mrf.mxu0
        %v2219 = vadd.f32 %v2196, %v2218
        %2220 = vmatmul.f32.gmra.mxu0 %v2170
        %v2221 = vpop.f32.mrf.mxu0
        %v2222 = vadd.f32 %v2199, %v2221
        %2223 = vdwg.mxu0
        %2224 = vmatpush.msra.mxu0 %v1992
        %2225 = vmatpush.msra.mxu0 %v1990
        %2226 = vmatpush.msra.mxu0 %v1988
        %2227 = vmatpush.msra.mxu0 %v1986
        %2228 = vmatpush.msra.mxu0 %v1984
        %2229 = vmatpush.msra.mxu0 %v1982
        %2230 = vmatpush.msra.mxu0 %v1980
        %2231 = vmatpush.msra.mxu0 %v1978
        %2232 = vmatpush.msra.mxu0 %v1976
        %2233 = vmatpush.msra.mxu0 %v1974
        %2234 = vmatpush.msra.mxu0 %v1972
        %2235 = vmatpush.msra.mxu0 %v1970
        %2236 = vmatpush.msra.mxu0 %v1968
        %2237 = vmatpush.msra.mxu0 %v1966
        %2238 = vmatpush.msra.mxu0 %v1964
        %2239 = vmatpush.msra.mxu0 %v1962
        %2240 = vmatmul.f32.gmra.mxu0 %v1957
        %v2241 = vpop.f32.mrf.mxu0
        %v2242 = vadd.f32 %v2161, %v2241
        %2243 = vmatmul.f32.gmra.mxu0 %v1959
        %v2244 = vpop.f32.mrf.mxu0
        %v2245 = vadd.f32 %v2164, %v2244
        %2246 = vdwg.mxu0
        %2247 = vmatpush.msra.mxu0 0.0
        %2248 = vmatpush.msra.mxu0 0.0
        %2249 = vmatpush.msra.mxu0 0.0
        %2250 = vmatpush.msra.mxu0 0.0
        %2251 = vmatpush.msra.mxu0 0.0
        %2252 = vmatpush.msra.mxu0 0.0
        %2253 = vmatpush.msra.mxu0 0.0
        %2254 = vmatpush.msra.mxu0 0.0
        %2255 = vmatpush.msra.mxu0 0.0
        %2256 = vmatpush.msra.mxu0 0.0
        %2257 = vmatpush.msra.mxu0 0.0
        %2258 = vmatpush.msra.mxu0 %v2176
        %2259 = vmatpush.msra.mxu0 %v2000
        %2260 = vmatpush.msra.mxu0 %v1998
        %2261 = vmatpush.msra.mxu0 %v1996
        %2262 = vmatpush.msra.mxu0 %v1994
        %2263 = vmatmul.f32.gmra.mxu0 %v2167
        %v2264 = vpop.f32.mrf.mxu0
        %v2265 = vadd.f32 %v2242, %v2264
        %2266 = vmatmul.f32.gmra.mxu0 %v2170
        %v2267 = vpop.f32.mrf.mxu0
        %v2268 = vadd.f32 %v2245, %v2267
        %2269 = vdwg.mxu0
        %v2270 = vld [vmem:[#allocation2] sm:$0xfc]
        %v2271 = vld [vmem:[#allocation2 + $0x8] sm:$0xfc]
        %v2272 = vld [vmem:[#allocation2 + $0x10] sm:$0xf]
        %v2273 = vld [vmem:[#allocation2 + $0x18] sm:$0xf]
        %s2274 = scalar_lea.vmem %s3, 672
        %v2275 = vld [vmem:[%s2274] sm:$0xff]
        %v2276 = vld [vmem:[%s2274 + $0x8] sm:$0xff]
        %v2277 = vld [vmem:[%s2274 + $0x10] sm:$0xff]
        %v2278 = vld [vmem:[%s2274 + $0x18] sm:$0xff]
        %v2279 = vld [vmem:[%s2274 + $0x20] sm:$0xff]
        %v2280 = vld [vmem:[%s2274 + $0x28] sm:$0xff]
        %v2281 = vld [vmem:[%s2274 + $0x30] sm:$0xff]
        %v2282 = vld [vmem:[%s2274 + $0x38] sm:$0xff]
        %v2283 = vld [vmem:[%s2274 + $0x40] sm:$0xff]
        %v2284 = vld [vmem:[%s2274 + $0x48] sm:$0xff]
        %v2285 = vld [vmem:[%s2274 + $0x50] sm:$0xff]
        %v2286 = vld [vmem:[%s2274 + $0x58] sm:$0xff]
        %v2287 = vld [vmem:[%s2274 + $0x60] sm:$0xff]
        %v2288 = vld [vmem:[%s2274 + $0x68] sm:$0xff]
        %v2289 = vld [vmem:[%s2274 + $0x70] sm:$0xff]
        %v2290 = vld [vmem:[%s2274 + $0x78] sm:$0xff]
        %v2291 = vld [vmem:[%s2274 + $0x80] sm:$0xff]
        %v2292 = vld [vmem:[%s2274 + $0x88] sm:$0xff]
        %v2293 = vld [vmem:[%s2274 + $0x90] sm:$0xff]
        %v2294 = vld [vmem:[%s2274 + $0x98] sm:$0xff]
        %v2295 = vld [vmem:[%s2274 + $0xa0] sm:$0xff]
        %v2296 = vld [vmem:[%s2274 + $0xa8] sm:$0xff]
        %v2297 = vld [vmem:[%s2274 + $0xb0] sm:$0xff]
        %v2298 = vld [vmem:[%s2274 + $0xb8] sm:$0xff]
        %v2299 = vld [vmem:[%s2274 + $0xc0] sm:$0xff]
        %v2300 = vld [vmem:[%s2274 + $0xc8] sm:$0xff]
        %v2301 = vld [vmem:[%s2274 + $0xd0] sm:$0xff]
        %v2302 = vld [vmem:[%s2274 + $0xd8] sm:$0xff]
        %v2303 = vld [vmem:[%s2274 + $0xe0] sm:$0xff]
        %v2304 = vld [vmem:[%s2274 + $0xe8] sm:$0xff]
        %v2305 = vld [vmem:[%s2274 + $0xf0] sm:$0xff]
        %v2306 = vld [vmem:[%s2274 + $0xf8] sm:$0xff]
        %v2307 = vld [vmem:[%s2274 + $0x100] sm:$0xff]
        %v2308 = vld [vmem:[%s2274 + $0x108] sm:$0xff]
        %v2309 = vld [vmem:[%s2274 + $0x110] sm:$0xff]
        %v2310 = vld [vmem:[%s2274 + $0x118] sm:$0xff]
        %v2311 = vld [vmem:[%s2274 + $0x120] sm:$0xff]
        %v2312 = vld [vmem:[%s2274 + $0x128] sm:$0xff]
        %v2313 = vld [vmem:[%s2274 + $0x130] sm:$0xff]
        %v2314 = vld [vmem:[%s2274 + $0x138] sm:$0xff]
        %v2315 = vld [vmem:[%s2274 + $0x140] sm:$0x3]
        %v2316 = vld [vmem:[%s2274 + $0x148] sm:$0x3]
        %vm2321 = vcmask 1045504
        %v2322 = vrot.slane %v2270, 2
        %v2323 = vrot.slane %v2272, 2
        %v2324 = vsel %vm2321, %v2322, %v2323
        %v2325 = vrot.slane %v2271, 2
        %v2326 = vrot.slane %v2273, 2
        %v2327 = vsel %vm2321, %v2325, %v2326
        %v2330 = vsel %vm2062, %v2327, 0
        %v2332 = vsel %vm2062, %v2326, 0
        %v2335 = vsel %vm2067, %v2315, 0
        %v2338 = vsel %vm2067, %v2316, 0
        %2340 = vmatpush.msra.mxu0 %v2305
        %2341 = vmatpush.msra.mxu0 %v2303
        %2342 = vmatpush.msra.mxu0 %v2301
        %2343 = vmatpush.msra.mxu0 %v2299
        %2344 = vmatpush.msra.mxu0 %v2297
        %2345 = vmatpush.msra.mxu0 %v2295
        %2346 = vmatpush.msra.mxu0 %v2293
        %2347 = vmatpush.msra.mxu0 %v2291
        %2348 = vmatpush.msra.mxu0 %v2289
        %2349 = vmatpush.msra.mxu0 %v2287
        %2350 = vmatpush.msra.mxu0 %v2285
        %2351 = vmatpush.msra.mxu0 %v2283
        %2352 = vmatpush.msra.mxu0 %v2281
        %2353 = vmatpush.msra.mxu0 %v2279
        %2354 = vmatpush.msra.mxu0 %v2277
        %2355 = vmatpush.msra.mxu0 %v2275
        %2356 = vmatmul.f32.gmra.mxu0 %v2324
        %v2357 = vpop.f32.mrf.mxu0
        %v2358 = vadd.f32 0.0, %v2357
        %2359 = vmatmul.f32.gmra.mxu0 %v2323
        %v2360 = vpop.f32.mrf.mxu0
        %v2361 = vadd.f32 0.0, %v2360
        %2362 = vdwg.mxu0
        %2363 = vmatpush.msra.mxu0 0.0
        %2364 = vmatpush.msra.mxu0 0.0
        %2365 = vmatpush.msra.mxu0 0.0
        %2366 = vmatpush.msra.mxu0 0.0
        %2367 = vmatpush.msra.mxu0 0.0
        %2368 = vmatpush.msra.mxu0 0.0
        %2369 = vmatpush.msra.mxu0 0.0
        %2370 = vmatpush.msra.mxu0 0.0
        %2371 = vmatpush.msra.mxu0 0.0
        %2372 = vmatpush.msra.mxu0 0.0
        %2373 = vmatpush.msra.mxu0 0.0
        %2374 = vmatpush.msra.mxu0 %v2335
        %2375 = vmatpush.msra.mxu0 %v2313
        %2376 = vmatpush.msra.mxu0 %v2311
        %2377 = vmatpush.msra.mxu0 %v2309
        %2378 = vmatpush.msra.mxu0 %v2307
        %2379 = vmatmul.f32.gmra.mxu0 %v2330
        %v2380 = vpop.f32.mrf.mxu0
        %v2381 = vadd.f32 %v2358, %v2380
        %2382 = vmatmul.f32.gmra.mxu0 %v2332
        %v2383 = vpop.f32.mrf.mxu0
        %v2384 = vadd.f32 %v2361, %v2383
        %2385 = vdwg.mxu0
        %2386 = vmatpush.msra.mxu0 %v2306
        %2387 = vmatpush.msra.mxu0 %v2304
        %2388 = vmatpush.msra.mxu0 %v2302
        %2389 = vmatpush.msra.mxu0 %v2300
        %2390 = vmatpush.msra.mxu0 %v2298
        %2391 = vmatpush.msra.mxu0 %v2296
        %2392 = vmatpush.msra.mxu0 %v2294
        %2393 = vmatpush.msra.mxu0 %v2292
        %2394 = vmatpush.msra.mxu0 %v2290
        %2395 = vmatpush.msra.mxu0 %v2288
        %2396 = vmatpush.msra.mxu0 %v2286
        %2397 = vmatpush.msra.mxu0 %v2284
        %2398 = vmatpush.msra.mxu0 %v2282
        %2399 = vmatpush.msra.mxu0 %v2280
        %2400 = vmatpush.msra.mxu0 %v2278
        %2401 = vmatpush.msra.mxu0 %v2276
        %2402 = vmatmul.f32.gmra.mxu0 %v2324
        %v2403 = vpop.f32.mrf.mxu0
        %v2404 = vadd.f32 0.0, %v2403
        %2405 = vmatmul.f32.gmra.mxu0 %v2323
        %v2406 = vpop.f32.mrf.mxu0
        %v2407 = vadd.f32 0.0, %v2406
        %2408 = vdwg.mxu0
        %2409 = vmatpush.msra.mxu0 0.0
        %2410 = vmatpush.msra.mxu0 0.0
        %2411 = vmatpush.msra.mxu0 0.0
        %2412 = vmatpush.msra.mxu0 0.0
        %2413 = vmatpush.msra.mxu0 0.0
        %2414 = vmatpush.msra.mxu0 0.0
        %2415 = vmatpush.msra.mxu0 0.0
        %2416 = vmatpush.msra.mxu0 0.0
        %2417 = vmatpush.msra.mxu0 0.0
        %2418 = vmatpush.msra.mxu0 0.0
        %2419 = vmatpush.msra.mxu0 0.0
        %2420 = vmatpush.msra.mxu0 %v2338
        %2421 = vmatpush.msra.mxu0 %v2314
        %2422 = vmatpush.msra.mxu0 %v2312
        %2423 = vmatpush.msra.mxu0 %v2310
        %2424 = vmatpush.msra.mxu0 %v2308
        %2425 = vmatmul.f32.gmra.mxu0 %v2330
        %v2426 = vpop.f32.mrf.mxu0
        %v2427 = vadd.f32 %v2404, %v2426
        %2428 = vmatmul.f32.gmra.mxu0 %v2332
        %v2429 = vpop.f32.mrf.mxu0
        %v2430 = vadd.f32 %v2407, %v2429
        %2431 = vdwg.mxu0
        %v2432 = vadd.f32 %v2219, %v2381
        %v2433 = vadd.f32 %v2265, %v2427
        %v2434 = vadd.f32 %v2222, %v2384
        %v2435 = vadd.f32 %v2268, %v2430
        %v2436 = vld [vmem:[#allocation2] sm:$0xf8]
        %v2437 = vld [vmem:[#allocation2 + $0x8] sm:$0xf8]
        %v2438 = vld [vmem:[#allocation2 + $0x10] sm:$0x1f]
        %v2439 = vld [vmem:[#allocation2 + $0x18] sm:$0x1f]
        %s2440 = scalar_lea.vmem %s3, 1008
        %v2441 = vld [vmem:[%s2440] sm:$0xff]
        %v2442 = vld [vmem:[%s2440 + $0x8] sm:$0xff]
        %v2443 = vld [vmem:[%s2440 + $0x10] sm:$0xff]
        %v2444 = vld [vmem:[%s2440 + $0x18] sm:$0xff]
        %v2445 = vld [vmem:[%s2440 + $0x20] sm:$0xff]
        %v2446 = vld [vmem:[%s2440 + $0x28] sm:$0xff]
        %v2447 = vld [vmem:[%s2440 + $0x30] sm:$0xff]
        %v2448 = vld [vmem:[%s2440 + $0x38] sm:$0xff]
        %v2449 = vld [vmem:[%s2440 + $0x40] sm:$0xff]
        %v2450 = vld [vmem:[%s2440 + $0x48] sm:$0xff]
        %v2451 = vld [vmem:[%s2440 + $0x50] sm:$0xff]
        %v2452 = vld [vmem:[%s2440 + $0x58] sm:$0xff]
        %v2453 = vld [vmem:[%s2440 + $0x60] sm:$0xff]
        %v2454 = vld [vmem:[%s2440 + $0x68] sm:$0xff]
        %v2455 = vld [vmem:[%s2440 + $0x70] sm:$0xff]
        %v2456 = vld [vmem:[%s2440 + $0x78] sm:$0xff]
        %v2457 = vld [vmem:[%s2440 + $0x80] sm:$0xff]
        %v2458 = vld [vmem:[%s2440 + $0x88] sm:$0xff]
        %v2459 = vld [vmem:[%s2440 + $0x90] sm:$0xff]
        %v2460 = vld [vmem:[%s2440 + $0x98] sm:$0xff]
        %v2461 = vld [vmem:[%s2440 + $0xa0] sm:$0xff]
        %v2462 = vld [vmem:[%s2440 + $0xa8] sm:$0xff]
        %v2463 = vld [vmem:[%s2440 + $0xb0] sm:$0xff]
        %v2464 = vld [vmem:[%s2440 + $0xb8] sm:$0xff]
        %v2465 = vld [vmem:[%s2440 + $0xc0] sm:$0xff]
        %v2466 = vld [vmem:[%s2440 + $0xc8] sm:$0xff]
        %v2467 = vld [vmem:[%s2440 + $0xd0] sm:$0xff]
        %v2468 = vld [vmem:[%s2440 + $0xd8] sm:$0xff]
        %v2469 = vld [vmem:[%s2440 + $0xe0] sm:$0xff]
        %v2470 = vld [vmem:[%s2440 + $0xe8] sm:$0xff]
        %v2471 = vld [vmem:[%s2440 + $0xf0] sm:$0xff]
        %v2472 = vld [vmem:[%s2440 + $0xf8] sm:$0xff]
        %v2473 = vld [vmem:[%s2440 + $0x100] sm:$0xff]
        %v2474 = vld [vmem:[%s2440 + $0x108] sm:$0xff]
        %v2475 = vld [vmem:[%s2440 + $0x110] sm:$0xff]
        %v2476 = vld [vmem:[%s2440 + $0x118] sm:$0xff]
        %v2477 = vld [vmem:[%s2440 + $0x120] sm:$0xff]
        %v2478 = vld [vmem:[%s2440 + $0x128] sm:$0xff]
        %v2479 = vld [vmem:[%s2440 + $0x130] sm:$0xff]
        %v2480 = vld [vmem:[%s2440 + $0x138] sm:$0xff]
        %v2481 = vld [vmem:[%s2440 + $0x140] sm:$0x3]
        %v2482 = vld [vmem:[%s2440 + $0x148] sm:$0x3]
        %vm2487 = vcmask 1044480
        %v2488 = vrot.slane %v2436, 3
        %v2489 = vrot.slane %v2438, 3
        %v2490 = vsel %vm2487, %v2488, %v2489
        %v2491 = vrot.slane %v2437, 3
        %v2492 = vrot.slane %v2439, 3
        %v2493 = vsel %vm2487, %v2491, %v2492
        %v2496 = vsel %vm2062, %v2493, 0
        %v2498 = vsel %vm2062, %v2492, 0
        %v2501 = vsel %vm2067, %v2481, 0
        %v2504 = vsel %vm2067, %v2482, 0
        %2506 = vmatpush.msra.mxu0 %v2471
        %2507 = vmatpush.msra.mxu0 %v2469
        %2508 = vmatpush.msra.mxu0 %v2467
        %2509 = vmatpush.msra.mxu0 %v2465
        %2510 = vmatpush.msra.mxu0 %v2463
        %2511 = vmatpush.msra.mxu0 %v2461
        %2512 = vmatpush.msra.mxu0 %v2459
        %2513 = vmatpush.msra.mxu0 %v2457
        %2514 = vmatpush.msra.mxu0 %v2455
        %2515 = vmatpush.msra.mxu0 %v2453
        %2516 = vmatpush.msra.mxu0 %v2451
        %2517 = vmatpush.msra.mxu0 %v2449
        %2518 = vmatpush.msra.mxu0 %v2447
        %2519 = vmatpush.msra.mxu0 %v2445
        %2520 = vmatpush.msra.mxu0 %v2443
        %2521 = vmatpush.msra.mxu0 %v2441
        %2522 = vmatmul.f32.gmra.mxu0 %v2490
        %v2523 = vpop.f32.mrf.mxu0
        %v2524 = vadd.f32 0.0, %v2523
        %2525 = vmatmul.f32.gmra.mxu0 %v2489
        %v2526 = vpop.f32.mrf.mxu0
        %v2527 = vadd.f32 0.0, %v2526
        %2528 = vdwg.mxu0
        %2529 = vmatpush.msra.mxu0 0.0
        %2530 = vmatpush.msra.mxu0 0.0
        %2531 = vmatpush.msra.mxu0 0.0
        %2532 = vmatpush.msra.mxu0 0.0
        %2533 = vmatpush.msra.mxu0 0.0
        %2534 = vmatpush.msra.mxu0 0.0
        %2535 = vmatpush.msra.mxu0 0.0
        %2536 = vmatpush.msra.mxu0 0.0
        %2537 = vmatpush.msra.mxu0 0.0
        %2538 = vmatpush.msra.mxu0 0.0
        %2539 = vmatpush.msra.mxu0 0.0
        %2540 = vmatpush.msra.mxu0 %v2501
        %2541 = vmatpush.msra.mxu0 %v2479
        %2542 = vmatpush.msra.mxu0 %v2477
        %2543 = vmatpush.msra.mxu0 %v2475
        %2544 = vmatpush.msra.mxu0 %v2473
        %2545 = vmatmul.f32.gmra.mxu0 %v2496
        %v2546 = vpop.f32.mrf.mxu0
        %v2547 = vadd.f32 %v2524, %v2546
        %2548 = vmatmul.f32.gmra.mxu0 %v2498
        %v2549 = vpop.f32.mrf.mxu0
        %v2550 = vadd.f32 %v2527, %v2549
        %2551 = vdwg.mxu0
        %2552 = vmatpush.msra.mxu0 %v2472
        %2553 = vmatpush.msra.mxu0 %v2470
        %2554 = vmatpush.msra.mxu0 %v2468
        %2555 = vmatpush.msra.mxu0 %v2466
        %2556 = vmatpush.msra.mxu0 %v2464
        %2557 = vmatpush.msra.mxu0 %v2462
        %2558 = vmatpush.msra.mxu0 %v2460
        %2559 = vmatpush.msra.mxu0 %v2458
        %2560 = vmatpush.msra.mxu0 %v2456
        %2561 = vmatpush.msra.mxu0 %v2454
        %2562 = vmatpush.msra.mxu0 %v2452
        %2563 = vmatpush.msra.mxu0 %v2450
        %2564 = vmatpush.msra.mxu0 %v2448
        %2565 = vmatpush.msra.mxu0 %v2446
        %2566 = vmatpush.msra.mxu0 %v2444
        %2567 = vmatpush.msra.mxu0 %v2442
        %2568 = vmatmul.f32.gmra.mxu0 %v2490
        %v2569 = vpop.f32.mrf.mxu0
        %v2570 = vadd.f32 0.0, %v2569
        %2571 = vmatmul.f32.gmra.mxu0 %v2489
        %v2572 = vpop.f32.mrf.mxu0
        %v2573 = vadd.f32 0.0, %v2572
        %2574 = vdwg.mxu0
        %2575 = vmatpush.msra.mxu0 0.0
        %2576 = vmatpush.msra.mxu0 0.0
        %2577 = vmatpush.msra.mxu0 0.0
        %2578 = vmatpush.msra.mxu0 0.0
        %2579 = vmatpush.msra.mxu0 0.0
        %2580 = vmatpush.msra.mxu0 0.0
        %2581 = vmatpush.msra.mxu0 0.0
        %2582 = vmatpush.msra.mxu0 0.0
        %2583 = vmatpush.msra.mxu0 0.0
        %2584 = vmatpush.msra.mxu0 0.0
        %2585 = vmatpush.msra.mxu0 0.0
        %2586 = vmatpush.msra.mxu0 %v2504
        %2587 = vmatpush.msra.mxu0 %v2480
        %2588 = vmatpush.msra.mxu0 %v2478
        %2589 = vmatpush.msra.mxu0 %v2476
        %2590 = vmatpush.msra.mxu0 %v2474
        %2591 = vmatmul.f32.gmra.mxu0 %v2496
        %v2592 = vpop.f32.mrf.mxu0
        %v2593 = vadd.f32 %v2570, %v2592
        %2594 = vmatmul.f32.gmra.mxu0 %v2498
        %v2595 = vpop.f32.mrf.mxu0
        %v2596 = vadd.f32 %v2573, %v2595
        %2597 = vdwg.mxu0
        %v2598 = vadd.f32 %v2432, %v2547
        %v2599 = vadd.f32 %v2433, %v2593
        %v2600 = vadd.f32 %v2434, %v2550
        %v2601 = vadd.f32 %v2435, %v2596
        %v2602 = vld [vmem:[#allocation2] sm:$0xf0]
        %v2603 = vld [vmem:[#allocation2 + $0x8] sm:$0xf0]
        %v2604 = vld [vmem:[#allocation2 + $0x10] sm:$0x3f]
        %v2605 = vld [vmem:[#allocation2 + $0x18] sm:$0x3f]
        %s2606 = scalar_lea.vmem %s3, 1344
        %v2607 = vld [vmem:[%s2606] sm:$0xff]
        %v2608 = vld [vmem:[%s2606 + $0x8] sm:$0xff]
        %v2609 = vld [vmem:[%s2606 + $0x10] sm:$0xff]
        %v2610 = vld [vmem:[%s2606 + $0x18] sm:$0xff]
        %v2611 = vld [vmem:[%s2606 + $0x20] sm:$0xff]
        %v2612 = vld [vmem:[%s2606 + $0x28] sm:$0xff]
        %v2613 = vld [vmem:[%s2606 + $0x30] sm:$0xff]
        %v2614 = vld [vmem:[%s2606 + $0x38] sm:$0xff]
        %v2615 = vld [vmem:[%s2606 + $0x40] sm:$0xff]
        %v2616 = vld [vmem:[%s2606 + $0x48] sm:$0xff]
        %v2617 = vld [vmem:[%s2606 + $0x50] sm:$0xff]
        %v2618 = vld [vmem:[%s2606 + $0x58] sm:$0xff]
        %v2619 = vld [vmem:[%s2606 + $0x60] sm:$0xff]
        %v2620 = vld [vmem:[%s2606 + $0x68] sm:$0xff]
        %v2621 = vld [vmem:[%s2606 + $0x70] sm:$0xff]
        %v2622 = vld [vmem:[%s2606 + $0x78] sm:$0xff]
        %v2623 = vld [vmem:[%s2606 + $0x80] sm:$0xff]
        %v2624 = vld [vmem:[%s2606 + $0x88] sm:$0xff]
        %v2625 = vld [vmem:[%s2606 + $0x90] sm:$0xff]
        %v2626 = vld [vmem:[%s2606 + $0x98] sm:$0xff]
        %v2627 = vld [vmem:[%s2606 + $0xa0] sm:$0xff]
        %v2628 = vld [vmem:[%s2606 + $0xa8] sm:$0xff]
        %v2629 = vld [vmem:[%s2606 + $0xb0] sm:$0xff]
        %v2630 = vld [vmem:[%s2606 + $0xb8] sm:$0xff]
        %v2631 = vld [vmem:[%s2606 + $0xc0] sm:$0xff]
        %v2632 = vld [vmem:[%s2606 + $0xc8] sm:$0xff]
        %v2633 = vld [vmem:[%s2606 + $0xd0] sm:$0xff]
        %v2634 = vld [vmem:[%s2606 + $0xd8] sm:$0xff]
        %v2635 = vld [vmem:[%s2606 + $0xe0] sm:$0xff]
        %v2636 = vld [vmem:[%s2606 + $0xe8] sm:$0xff]
        %v2637 = vld [vmem:[%s2606 + $0xf0] sm:$0xff]
        %v2638 = vld [vmem:[%s2606 + $0xf8] sm:$0xff]
        %v2639 = vld [vmem:[%s2606 + $0x100] sm:$0xff]
        %v2640 = vld [vmem:[%s2606 + $0x108] sm:$0xff]
        %v2641 = vld [vmem:[%s2606 + $0x110] sm:$0xff]
        %v2642 = vld [vmem:[%s2606 + $0x118] sm:$0xff]
        %v2643 = vld [vmem:[%s2606 + $0x120] sm:$0xff]
        %v2644 = vld [vmem:[%s2606 + $0x128] sm:$0xff]
        %v2645 = vld [vmem:[%s2606 + $0x130] sm:$0xff]
        %v2646 = vld [vmem:[%s2606 + $0x138] sm:$0xff]
        %v2647 = vld [vmem:[%s2606 + $0x140] sm:$0x3]
        %v2648 = vld [vmem:[%s2606 + $0x148] sm:$0x3]
        %vm2653 = vcmask 1043456
        %v2654 = vrot.slane %v2602, 4
        %v2655 = vrot.slane %v2604, 4
        %v2656 = vsel %vm2653, %v2654, %v2655
        %v2657 = vrot.slane %v2603, 4
        %v2658 = vrot.slane %v2605, 4
        %v2659 = vsel %vm2653, %v2657, %v2658
        %v2662 = vsel %vm2062, %v2659, 0
        %v2664 = vsel %vm2062, %v2658, 0
        %v2667 = vsel %vm2067, %v2647, 0
        %v2670 = vsel %vm2067, %v2648, 0
        %2672 = vmatpush.msra.mxu0 %v2637
        %2673 = vmatpush.msra.mxu0 %v2635
        %2674 = vmatpush.msra.mxu0 %v2633
        %2675 = vmatpush.msra.mxu0 %v2631
        %2676 = vmatpush.msra.mxu0 %v2629
        %2677 = vmatpush.msra.mxu0 %v2627
        %2678 = vmatpush.msra.mxu0 %v2625
        %2679 = vmatpush.msra.mxu0 %v2623
        %2680 = vmatpush.msra.mxu0 %v2621
        %2681 = vmatpush.msra.mxu0 %v2619
        %2682 = vmatpush.msra.mxu0 %v2617
        %2683 = vmatpush.msra.mxu0 %v2615
        %2684 = vmatpush.msra.mxu0 %v2613
        %2685 = vmatpush.msra.mxu0 %v2611
        %2686 = vmatpush.msra.mxu0 %v2609
        %2687 = vmatpush.msra.mxu0 %v2607
        %2688 = vmatmul.f32.gmra.mxu0 %v2656
        %v2689 = vpop.f32.mrf.mxu0
        %v2690 = vadd.f32 0.0, %v2689
        %2691 = vmatmul.f32.gmra.mxu0 %v2655
        %v2692 = vpop.f32.mrf.mxu0
        %v2693 = vadd.f32 0.0, %v2692
        %2694 = vdwg.mxu0
        %2695 = vmatpush.msra.mxu0 0.0
        %2696 = vmatpush.msra.mxu0 0.0
        %2697 = vmatpush.msra.mxu0 0.0
        %2698 = vmatpush.msra.mxu0 0.0
        %2699 = vmatpush.msra.mxu0 0.0
        %2700 = vmatpush.msra.mxu0 0.0
        %2701 = vmatpush.msra.mxu0 0.0
        %2702 = vmatpush.msra.mxu0 0.0
        %2703 = vmatpush.msra.mxu0 0.0
        %2704 = vmatpush.msra.mxu0 0.0
        %2705 = vmatpush.msra.mxu0 0.0
        %2706 = vmatpush.msra.mxu0 %v2667
        %2707 = vmatpush.msra.mxu0 %v2645
        %2708 = vmatpush.msra.mxu0 %v2643
        %2709 = vmatpush.msra.mxu0 %v2641
        %2710 = vmatpush.msra.mxu0 %v2639
        %2711 = vmatmul.f32.gmra.mxu0 %v2662
        %v2712 = vpop.f32.mrf.mxu0
        %v2713 = vadd.f32 %v2690, %v2712
        %2714 = vmatmul.f32.gmra.mxu0 %v2664
        %v2715 = vpop.f32.mrf.mxu0
        %v2716 = vadd.f32 %v2693, %v2715
        %2717 = vdwg.mxu0
        %2718 = vmatpush.msra.mxu0 %v2638
        %2719 = vmatpush.msra.mxu0 %v2636
        %2720 = vmatpush.msra.mxu0 %v2634
        %2721 = vmatpush.msra.mxu0 %v2632
        %2722 = vmatpush.msra.mxu0 %v2630
        %2723 = vmatpush.msra.mxu0 %v2628
        %2724 = vmatpush.msra.mxu0 %v2626
        %2725 = vmatpush.msra.mxu0 %v2624
        %2726 = vmatpush.msra.mxu0 %v2622
        %2727 = vmatpush.msra.mxu0 %v2620
        %2728 = vmatpush.msra.mxu0 %v2618
        %2729 = vmatpush.msra.mxu0 %v2616
        %2730 = vmatpush.msra.mxu0 %v2614
        %2731 = vmatpush.msra.mxu0 %v2612
        %2732 = vmatpush.msra.mxu0 %v2610
        %2733 = vmatpush.msra.mxu0 %v2608
        %2734 = vmatmul.f32.gmra.mxu0 %v2656
        %v2735 = vpop.f32.mrf.mxu0
        %v2736 = vadd.f32 0.0, %v2735
        %2737 = vmatmul.f32.gmra.mxu0 %v2655
        %v2738 = vpop.f32.mrf.mxu0
        %v2739 = vadd.f32 0.0, %v2738
        %2740 = vdwg.mxu0
        %2741 = vmatpush.msra.mxu0 0.0
        %2742 = vmatpush.msra.mxu0 0.0
        %2743 = vmatpush.msra.mxu0 0.0
        %2744 = vmatpush.msra.mxu0 0.0
        %2745 = vmatpush.msra.mxu0 0.0
        %2746 = vmatpush.msra.mxu0 0.0
        %2747 = vmatpush.msra.mxu0 0.0
        %2748 = vmatpush.msra.mxu0 0.0
        %2749 = vmatpush.msra.mxu0 0.0
        %2750 = vmatpush.msra.mxu0 0.0
        %2751 = vmatpush.msra.mxu0 0.0
        %2752 = vmatpush.msra.mxu0 %v2670
        %2753 = vmatpush.msra.mxu0 %v2646
        %2754 = vmatpush.msra.mxu0 %v2644
        %2755 = vmatpush.msra.mxu0 %v2642
        %2756 = vmatpush.msra.mxu0 %v2640
        %2757 = vmatmul.f32.gmra.mxu0 %v2662
        %v2758 = vpop.f32.mrf.mxu0
        %v2759 = vadd.f32 %v2736, %v2758
        %2760 = vmatmul.f32.gmra.mxu0 %v2664
        %v2761 = vpop.f32.mrf.mxu0
        %v2762 = vadd.f32 %v2739, %v2761
        %2763 = vdwg.mxu0
        %v2764 = vadd.f32 %v2598, %v2713
        %v2765 = vadd.f32 %v2599, %v2759
        %v2766 = vadd.f32 %v2600, %v2716
        %v2767 = vadd.f32 %v2601, %v2762
        %v2768 = vld [vmem:[%s4] sm:$0x3]
        %v2770 = vperm.slane %v2768, 0
        %v2771 = vperm.slane %v2768, 1
        %v2774 = vadd.f32 %v2764, %v2770
        %v2775 = vadd.f32 %v2765, %v2771
        %v2776 = vadd.f32 %v2766, %v2770
        %v2777 = vadd.f32 %v2767, %v2771
        %v2778 = vmax.f32 %v2774, 0.0
        %v2779 = vmax.f32 %v2775, 0.0
        %v2780 = vmax.f32 %v2776, 0.0
        %v2781 = vmax.f32 %v2777, 0.0
        %v2786 = vrot.slane %v2778, 1
        %v2787 = vrot.slane %v2780, 1
        %v2788 = vsel %vm1765, %v2786, %v2787
        %v2789 = vrot.slane %v2779, 1
        %v2790 = vrot.slane %v2781, 1
        %v2791 = vsel %vm1765, %v2789, %v2790
        %v2796 = vmax.f32 %v2778, %v2788
        %v2797 = vmax.f32 %v2779, %v2791
        %v2798 = vmax.f32 %v2780, %v2787
        %v2799 = vmax.f32 %v2781, %v2790
        %2804 = vrot.lane.b32.xlu0 %v2796, 112
        %v2805 = vpop.permute.xlu0 %2804
        %2806 = vrot.lane.b32.xlu0 %v2797, 112
        %v2807 = vpop.permute.xlu0 %2806
        %2808 = vrot.lane.b32.xlu0 %v2798, 112
        %v2809 = vpop.permute.xlu0 %2808
        %2810 = vrot.lane.b32.xlu0 %v2799, 112
        %v2811 = vpop.permute.xlu0 %2810
        %vm2812 = vcmask 916480
        %v2813 = vsel %vm2812, %v2805, %v2807
        %v2814 = vsel %vm2812, %v2809, %v2811
        %v2819 = vmax.f32 %v2796, %v2813
        %v2820 = vmax.f32 %v2797, %v2807
        %v2821 = vmax.f32 %v2798, %v2814
        %v2822 = vmax.f32 %v2799, %v2811
        %v2825 = vrot.slane %v2820, 7
        %v2826 = vsel %vm1844, %v2819, %v2825
        %vm2828 = vcmp.lt.s32.totalorder %v1847, 144
        %vm2829 = vmand %vm1848, %vm2828
        %2830 = vst.msk [vmem:[#allocation3] ss:$8 sm:$0x3] %vm2829, %v2826
        %2831 = vst.msk [vmem:[#allocation3] ss:$8 sm:$0x0] %vm2829, %v2826
        %2832 = vst [vmem:[#allocation1] sm:$0xff] %v2819
        %2833 = vst [vmem:[#allocation1 + $0x9] sm:$0xff] %v2820
        %s2834 = scalar_lea.vmem [#allocation1], 2
        %v2835 = vld [vmem:[%s2834] ss:$9 sm:$0xff]
        %s2837 = scalar_lea.vmem [#allocation3], 1
        %2838 = vst.msk [vmem:[%s2837] ss:$8 sm:$0x3] %vm2829, %v2835
        %2839 = vst.msk [vmem:[%s2837] ss:$8 sm:$0x0] %vm2829, %v2835
        %2840 = vst [vmem:[#allocation1] sm:$0xff] %v2819
        %2841 = vst [vmem:[#allocation1 + $0x9] sm:$0xff] %v2820
        %s2842 = scalar_lea.vmem [#allocation1], 4
        %v2843 = vld [vmem:[%s2842] ss:$9 sm:$0xff]
        %s2845 = scalar_lea.vmem [#allocation3], 2
        %2846 = vst.msk [vmem:[%s2845] ss:$8 sm:$0x3] %vm2829, %v2843
        %2847 = vst.msk [vmem:[%s2845] ss:$8 sm:$0x0] %vm2829, %v2843
        %2848 = vst [vmem:[#allocation1] sm:$0xff] %v2819
        %2849 = vst [vmem:[#allocation1 + $0x9] sm:$0xff] %v2820
        %s2850 = scalar_lea.vmem [#allocation1], 6
        %v2851 = vld [vmem:[%s2850] ss:$9 sm:$0xff]
        %s2853 = scalar_lea.vmem [#allocation3], 3
        %2854 = vst.msk [vmem:[%s2853] ss:$8 sm:$0x3] %vm2829, %v2851
        %2855 = vst.msk [vmem:[%s2853] ss:$8 sm:$0x0] %vm2829, %v2851
        %v2858 = vrot.slane %v2822, 7
        %v2859 = vsel %vm1844, %v2821, %v2858
        %s2861 = scalar_lea.vmem [#allocation3], 4
        %2862 = vst.msk [vmem:[%s2861] ss:$8 sm:$0x3] %vm2829, %v2859
        %2863 = vst.msk [vmem:[%s2861] ss:$8 sm:$0x0] %vm2829, %v2859
        %v2864 = vld [vmem:[#allocation3] ss:$8 sm:$0x3]
        %v2865 = vld [vmem:[%s5] sm:$0xff]
        %v2866 = vld [vmem:[%s5 + $0x8] sm:$0xff]
        %v2867 = vld [vmem:[%s5 + $0x10] sm:$0xff]
        %v2868 = vld [vmem:[%s5 + $0x18] sm:$0xff]
        %v2869 = vld [vmem:[%s5 + $0x20] sm:$0xff]
        %v2870 = vld [vmem:[%s5 + $0x28] sm:$0xff]
        %v2871 = vld [vmem:[%s5 + $0x30] sm:$0xff]
        %v2872 = vld [vmem:[%s5 + $0x38] sm:$0xff]
        %v2873 = vld [vmem:[%s5 + $0x40] sm:$0xff]
        %v2874 = vld [vmem:[%s5 + $0x48] sm:$0xff]
        %v2875 = vld [vmem:[%s5 + $0x50] sm:$0xff]
        %v2876 = vld [vmem:[%s5 + $0x58] sm:$0xff]
        %v2877 = vld [vmem:[%s5 + $0x60] sm:$0xff]
        %v2878 = vld [vmem:[%s5 + $0x68] sm:$0xff]
        %v2879 = vld [vmem:[%s5 + $0x70] sm:$0xff]
        %v2880 = vld [vmem:[%s5 + $0x78] sm:$0xff]
        %v2881 = vld [vmem:[%s5 + $0x80] sm:$0xff]
        %v2882 = vld [vmem:[%s5 + $0x88] sm:$0xff]
        %v2883 = vld [vmem:[%s2837] ss:$8 sm:$0x3]
        %s2884 = scalar_lea.vmem %s5, 144
        %v2885 = vld [vmem:[%s2884] sm:$0xff]
        %v2886 = vld [vmem:[%s2884 + $0x8] sm:$0xff]
        %v2887 = vld [vmem:[%s2884 + $0x10] sm:$0xff]
        %v2888 = vld [vmem:[%s2884 + $0x18] sm:$0xff]
        %v2889 = vld [vmem:[%s2884 + $0x20] sm:$0xff]
        %v2890 = vld [vmem:[%s2884 + $0x28] sm:$0xff]
        %v2891 = vld [vmem:[%s2884 + $0x30] sm:$0xff]
        %v2892 = vld [vmem:[%s2884 + $0x38] sm:$0xff]
        %v2893 = vld [vmem:[%s2884 + $0x40] sm:$0xff]
        %v2894 = vld [vmem:[%s2884 + $0x48] sm:$0xff]
        %v2895 = vld [vmem:[%s2884 + $0x50] sm:$0xff]
        %v2896 = vld [vmem:[%s2884 + $0x58] sm:$0xff]
        %v2897 = vld [vmem:[%s2884 + $0x60] sm:$0xff]
        %v2898 = vld [vmem:[%s2884 + $0x68] sm:$0xff]
        %v2899 = vld [vmem:[%s2884 + $0x70] sm:$0xff]
        %v2900 = vld [vmem:[%s2884 + $0x78] sm:$0xff]
        %v2901 = vld [vmem:[%s2884 + $0x80] sm:$0xff]
        %v2902 = vld [vmem:[%s2884 + $0x88] sm:$0xff]
        %v2904 = vperm.slane %v2883, 0
        %v2905 = vperm.slane %v2883, 1
        %vm2907 = vcmask 130048
        %v2908 = vsel %vm2907, %v2905, 0
        %2910 = vmatpush.msra.mxu0 %v2900
        %2911 = vmatpush.msra.mxu0 %v2899
        %2912 = vmatpush.msra.mxu0 %v2898
        %2913 = vmatpush.msra.mxu0 %v2897
        %2914 = vmatpush.msra.mxu0 %v2896
        %2915 = vmatpush.msra.mxu0 %v2895
        %2916 = vmatpush.msra.mxu0 %v2894
        %2917 = vmatpush.msra.mxu0 %v2893
        %2918 = vmatpush.msra.mxu0 %v2892
        %2919 = vmatpush.msra.mxu0 %v2891
        %2920 = vmatpush.msra.mxu0 %v2890
        %2921 = vmatpush.msra.mxu0 %v2889
        %2922 = vmatpush.msra.mxu0 %v2888
        %2923 = vmatpush.msra.mxu0 %v2887
        %2924 = vmatpush.msra.mxu0 %v2886
        %2925 = vmatpush.msra.mxu0 %v2885
        %2926 = vmatmul.f32.gmra.mxu0 %v2904
        %v2927 = vpop.f32.mrf.mxu0
        %v2928 = vadd.f32 0.0, %v2927
        %2929 = vdwg.mxu0
        %2930 = vmatpush.msra.mxu0 0.0
        %2931 = vmatpush.msra.mxu0 0.0
        %2932 = vmatpush.msra.mxu0 0.0
        %2933 = vmatpush.msra.mxu0 0.0
        %2934 = vmatpush.msra.mxu0 0.0
        %2935 = vmatpush.msra.mxu0 0.0
        %2936 = vmatpush.msra.mxu0 0.0
        %2937 = vmatpush.msra.mxu0 0.0
        %2938 = vmatpush.msra.mxu0 0.0
        %2939 = vmatpush.msra.mxu0 0.0
        %2940 = vmatpush.msra.mxu0 0.0
        %2941 = vmatpush.msra.mxu0 0.0
        %2942 = vmatpush.msra.mxu0 0.0
        %2943 = vmatpush.msra.mxu0 0.0
        %2944 = vmatpush.msra.mxu0 %v2902
        %2945 = vmatpush.msra.mxu0 %v2901
        %2946 = vmatmul.f32.gmra.mxu0 %v2908
        %v2947 = vpop.f32.mrf.mxu0
        %v2948 = vadd.f32 %v2928, %v2947
        %2949 = vdwg.mxu0
        %v2951 = vperm.slane %v2864, 0
        %v2952 = vperm.slane %v2864, 1
        %v2954 = vsel %vm2907, %v2952, 0
        %2956 = vmatpush.msra.mxu0 %v2880
        %2957 = vmatpush.msra.mxu0 %v2879
        %2958 = vmatpush.msra.mxu0 %v2878
        %2959 = vmatpush.msra.mxu0 %v2877
        %2960 = vmatpush.msra.mxu0 %v2876
        %2961 = vmatpush.msra.mxu0 %v2875
        %2962 = vmatpush.msra.mxu0 %v2874
        %2963 = vmatpush.msra.mxu0 %v2873
        %2964 = vmatpush.msra.mxu0 %v2872
        %2965 = vmatpush.msra.mxu0 %v2871
        %2966 = vmatpush.msra.mxu0 %v2870
        %2967 = vmatpush.msra.mxu0 %v2869
        %2968 = vmatpush.msra.mxu0 %v2868
        %2969 = vmatpush.msra.mxu0 %v2867
        %2970 = vmatpush.msra.mxu0 %v2866
        %2971 = vmatpush.msra.mxu0 %v2865
        %2972 = vmatmul.f32.gmra.mxu0 %v2951
        %v2973 = vpop.f32.mrf.mxu0
        %v2974 = vadd.f32 %v2948, %v2973
        %2975 = vdwg.mxu0
        %2976 = vmatpush.msra.mxu0 0.0
        %2977 = vmatpush.msra.mxu0 0.0
        %2978 = vmatpush.msra.mxu0 0.0
        %2979 = vmatpush.msra.mxu0 0.0
        %2980 = vmatpush.msra.mxu0 0.0
        %2981 = vmatpush.msra.mxu0 0.0
        %2982 = vmatpush.msra.mxu0 0.0
        %2983 = vmatpush.msra.mxu0 0.0
        %2984 = vmatpush.msra.mxu0 0.0
        %2985 = vmatpush.msra.mxu0 0.0
        %2986 = vmatpush.msra.mxu0 0.0
        %2987 = vmatpush.msra.mxu0 0.0
        %2988 = vmatpush.msra.mxu0 0.0
        %2989 = vmatpush.msra.mxu0 0.0
        %2990 = vmatpush.msra.mxu0 %v2882
        %2991 = vmatpush.msra.mxu0 %v2881
        %2992 = vmatmul.f32.gmra.mxu0 %v2954
        %v2993 = vpop.f32.mrf.mxu0
        %v2994 = vadd.f32 %v2974, %v2993
        %2995 = vdwg.mxu0
        %v2996 = vld [vmem:[%s2845] ss:$8 sm:$0x3]
        %s2997 = scalar_lea.vmem %s5, 288
        %v2998 = vld [vmem:[%s2997] sm:$0xff]
        %v2999 = vld [vmem:[%s2997 + $0x8] sm:$0xff]
        %v3000 = vld [vmem:[%s2997 + $0x10] sm:$0xff]
        %v3001 = vld [vmem:[%s2997 + $0x18] sm:$0xff]
        %v3002 = vld [vmem:[%s2997 + $0x20] sm:$0xff]
        %v3003 = vld [vmem:[%s2997 + $0x28] sm:$0xff]
        %v3004 = vld [vmem:[%s2997 + $0x30] sm:$0xff]
        %v3005 = vld [vmem:[%s2997 + $0x38] sm:$0xff]
        %v3006 = vld [vmem:[%s2997 + $0x40] sm:$0xff]
        %v3007 = vld [vmem:[%s2997 + $0x48] sm:$0xff]
        %v3008 = vld [vmem:[%s2997 + $0x50] sm:$0xff]
        %v3009 = vld [vmem:[%s2997 + $0x58] sm:$0xff]
        %v3010 = vld [vmem:[%s2997 + $0x60] sm:$0xff]
        %v3011 = vld [vmem:[%s2997 + $0x68] sm:$0xff]
        %v3012 = vld [vmem:[%s2997 + $0x70] sm:$0xff]
        %v3013 = vld [vmem:[%s2997 + $0x78] sm:$0xff]
        %v3014 = vld [vmem:[%s2997 + $0x80] sm:$0xff]
        %v3015 = vld [vmem:[%s2997 + $0x88] sm:$0xff]
        %v3017 = vperm.slane %v2996, 0
        %v3018 = vperm.slane %v2996, 1
        %v3020 = vsel %vm2907, %v3018, 0
        %3022 = vmatpush.msra.mxu0 %v3013
        %3023 = vmatpush.msra.mxu0 %v3012
        %3024 = vmatpush.msra.mxu0 %v3011
        %3025 = vmatpush.msra.mxu0 %v3010
        %3026 = vmatpush.msra.mxu0 %v3009
        %3027 = vmatpush.msra.mxu0 %v3008
        %3028 = vmatpush.msra.mxu0 %v3007
        %3029 = vmatpush.msra.mxu0 %v3006
        %3030 = vmatpush.msra.mxu0 %v3005
        %3031 = vmatpush.msra.mxu0 %v3004
        %3032 = vmatpush.msra.mxu0 %v3003
        %3033 = vmatpush.msra.mxu0 %v3002
        %3034 = vmatpush.msra.mxu0 %v3001
        %3035 = vmatpush.msra.mxu0 %v3000
        %3036 = vmatpush.msra.mxu0 %v2999
        %3037 = vmatpush.msra.mxu0 %v2998
        %3038 = vmatmul.f32.gmra.mxu0 %v3017
        %v3039 = vpop.f32.mrf.mxu0
        %v3040 = vadd.f32 0.0, %v3039
        %3041 = vdwg.mxu0
        %3042 = vmatpush.msra.mxu0 0.0
        %3043 = vmatpush.msra.mxu0 0.0
        %3044 = vmatpush.msra.mxu0 0.0
        %3045 = vmatpush.msra.mxu0 0.0
        %3046 = vmatpush.msra.mxu0 0.0
        %3047 = vmatpush.msra.mxu0 0.0
        %3048 = vmatpush.msra.mxu0 0.0
        %3049 = vmatpush.msra.mxu0 0.0
        %3050 = vmatpush.msra.mxu0 0.0
        %3051 = vmatpush.msra.mxu0 0.0
        %3052 = vmatpush.msra.mxu0 0.0
        %3053 = vmatpush.msra.mxu0 0.0
        %3054 = vmatpush.msra.mxu0 0.0
        %3055 = vmatpush.msra.mxu0 0.0
        %3056 = vmatpush.msra.mxu0 %v3015
        %3057 = vmatpush.msra.mxu0 %v3014
        %3058 = vmatmul.f32.gmra.mxu0 %v3020
        %v3059 = vpop.f32.mrf.mxu0
        %v3060 = vadd.f32 %v3040, %v3059
        %3061 = vdwg.mxu0
        %v3062 = vadd.f32 %v2994, %v3060
        %v3063 = vld [vmem:[%s2853] ss:$8 sm:$0x3]
        %s3064 = scalar_lea.vmem %s5, 432
        %v3065 = vld [vmem:[%s3064] sm:$0xff]
        %v3066 = vld [vmem:[%s3064 + $0x8] sm:$0xff]
        %v3067 = vld [vmem:[%s3064 + $0x10] sm:$0xff]
        %v3068 = vld [vmem:[%s3064 + $0x18] sm:$0xff]
        %v3069 = vld [vmem:[%s3064 + $0x20] sm:$0xff]
        %v3070 = vld [vmem:[%s3064 + $0x28] sm:$0xff]
        %v3071 = vld [vmem:[%s3064 + $0x30] sm:$0xff]
        %v3072 = vld [vmem:[%s3064 + $0x38] sm:$0xff]
        %v3073 = vld [vmem:[%s3064 + $0x40] sm:$0xff]
        %v3074 = vld [vmem:[%s3064 + $0x48] sm:$0xff]
        %v3075 = vld [vmem:[%s3064 + $0x50] sm:$0xff]
        %v3076 = vld [vmem:[%s3064 + $0x58] sm:$0xff]
        %v3077 = vld [vmem:[%s3064 + $0x60] sm:$0xff]
        %v3078 = vld [vmem:[%s3064 + $0x68] sm:$0xff]
        %v3079 = vld [vmem:[%s3064 + $0x70] sm:$0xff]
        %v3080 = vld [vmem:[%s3064 + $0x78] sm:$0xff]
        %v3081 = vld [vmem:[%s3064 + $0x80] sm:$0xff]
        %v3082 = vld [vmem:[%s3064 + $0x88] sm:$0xff]
        %v3084 = vperm.slane %v3063, 0
        %v3085 = vperm.slane %v3063, 1
        %v3087 = vsel %vm2907, %v3085, 0
        %3089 = vmatpush.msra.mxu0 %v3080
        %3090 = vmatpush.msra.mxu0 %v3079
        %3091 = vmatpush.msra.mxu0 %v3078
        %3092 = vmatpush.msra.mxu0 %v3077
        %3093 = vmatpush.msra.mxu0 %v3076
        %3094 = vmatpush.msra.mxu0 %v3075
        %3095 = vmatpush.msra.mxu0 %v3074
        %3096 = vmatpush.msra.mxu0 %v3073
        %3097 = vmatpush.msra.mxu0 %v3072
        %3098 = vmatpush.msra.mxu0 %v3071
        %3099 = vmatpush.msra.mxu0 %v3070
        %3100 = vmatpush.msra.mxu0 %v3069
        %3101 = vmatpush.msra.mxu0 %v3068
        %3102 = vmatpush.msra.mxu0 %v3067
        %3103 = vmatpush.msra.mxu0 %v3066
        %3104 = vmatpush.msra.mxu0 %v3065
        %3105 = vmatmul.f32.gmra.mxu0 %v3084
        %v3106 = vpop.f32.mrf.mxu0
        %v3107 = vadd.f32 0.0, %v3106
        %3108 = vdwg.mxu0
        %3109 = vmatpush.msra.mxu0 0.0
        %3110 = vmatpush.msra.mxu0 0.0
        %3111 = vmatpush.msra.mxu0 0.0
        %3112 = vmatpush.msra.mxu0 0.0
        %3113 = vmatpush.msra.mxu0 0.0
        %3114 = vmatpush.msra.mxu0 0.0
        %3115 = vmatpush.msra.mxu0 0.0
        %3116 = vmatpush.msra.mxu0 0.0
        %3117 = vmatpush.msra.mxu0 0.0
        %3118 = vmatpush.msra.mxu0 0.0
        %3119 = vmatpush.msra.mxu0 0.0
        %3120 = vmatpush.msra.mxu0 0.0
        %3121 = vmatpush.msra.mxu0 0.0
        %3122 = vmatpush.msra.mxu0 0.0
        %3123 = vmatpush.msra.mxu0 %v3082
        %3124 = vmatpush.msra.mxu0 %v3081
        %3125 = vmatmul.f32.gmra.mxu0 %v3087
        %v3126 = vpop.f32.mrf.mxu0
        %v3127 = vadd.f32 %v3107, %v3126
        %3128 = vdwg.mxu0
        %v3129 = vadd.f32 %v3062, %v3127
        %v3130 = vld [vmem:[%s2861] ss:$8 sm:$0x3]
        %s3131 = scalar_lea.vmem %s5, 576
        %v3132 = vld [vmem:[%s3131] sm:$0xff]
        %v3133 = vld [vmem:[%s3131 + $0x8] sm:$0xff]
        %v3134 = vld [vmem:[%s3131 + $0x10] sm:$0xff]
        %v3135 = vld [vmem:[%s3131 + $0x18] sm:$0xff]
        %v3136 = vld [vmem:[%s3131 + $0x20] sm:$0xff]
        %v3137 = vld [vmem:[%s3131 + $0x28] sm:$0xff]
        %v3138 = vld [vmem:[%s3131 + $0x30] sm:$0xff]
        %v3139 = vld [vmem:[%s3131 + $0x38] sm:$0xff]
        %v3140 = vld [vmem:[%s3131 + $0x40] sm:$0xff]
        %v3141 = vld [vmem:[%s3131 + $0x48] sm:$0xff]
        %v3142 = vld [vmem:[%s3131 + $0x50] sm:$0xff]
        %v3143 = vld [vmem:[%s3131 + $0x58] sm:$0xff]
        %v3144 = vld [vmem:[%s3131 + $0x60] sm:$0xff]
        %v3145 = vld [vmem:[%s3131 + $0x68] sm:$0xff]
        %v3146 = vld [vmem:[%s3131 + $0x70] sm:$0xff]
        %v3147 = vld [vmem:[%s3131 + $0x78] sm:$0xff]
        %v3148 = vld [vmem:[%s3131 + $0x80] sm:$0xff]
        %v3149 = vld [vmem:[%s3131 + $0x88] sm:$0xff]
        %v3151 = vperm.slane %v3130, 0
        %v3152 = vperm.slane %v3130, 1
        %v3154 = vsel %vm2907, %v3152, 0
        %3156 = vmatpush.msra.mxu0 %v3147
        %3157 = vmatpush.msra.mxu0 %v3146
        %3158 = vmatpush.msra.mxu0 %v3145
        %3159 = vmatpush.msra.mxu0 %v3144
        %3160 = vmatpush.msra.mxu0 %v3143
        %3161 = vmatpush.msra.mxu0 %v3142
        %3162 = vmatpush.msra.mxu0 %v3141
        %3163 = vmatpush.msra.mxu0 %v3140
        %3164 = vmatpush.msra.mxu0 %v3139
        %3165 = vmatpush.msra.mxu0 %v3138
        %3166 = vmatpush.msra.mxu0 %v3137
        %3167 = vmatpush.msra.mxu0 %v3136
        %3168 = vmatpush.msra.mxu0 %v3135
        %3169 = vmatpush.msra.mxu0 %v3134
        %3170 = vmatpush.msra.mxu0 %v3133
        %3171 = vmatpush.msra.mxu0 %v3132
        %3172 = vmatmul.f32.gmra.mxu0 %v3151
        %v3173 = vpop.f32.mrf.mxu0
        %v3174 = vadd.f32 0.0, %v3173
        %3175 = vdwg.mxu0
        %3176 = vmatpush.msra.mxu0 0.0
        %3177 = vmatpush.msra.mxu0 0.0
        %3178 = vmatpush.msra.mxu0 0.0
        %3179 = vmatpush.msra.mxu0 0.0
        %3180 = vmatpush.msra.mxu0 0.0
        %3181 = vmatpush.msra.mxu0 0.0
        %3182 = vmatpush.msra.mxu0 0.0
        %3183 = vmatpush.msra.mxu0 0.0
        %3184 = vmatpush.msra.mxu0 0.0
        %3185 = vmatpush.msra.mxu0 0.0
        %3186 = vmatpush.msra.mxu0 0.0
        %3187 = vmatpush.msra.mxu0 0.0
        %3188 = vmatpush.msra.mxu0 0.0
        %3189 = vmatpush.msra.mxu0 0.0
        %3190 = vmatpush.msra.mxu0 %v3149
        %3191 = vmatpush.msra.mxu0 %v3148
        %3192 = vmatmul.f32.gmra.mxu0 %v3154
        %v3193 = vpop.f32.mrf.mxu0
        %v3194 = vadd.f32 %v3174, %v3193
        %3195 = vdwg.mxu0
        %v3196 = vadd.f32 %v3129, %v3194
        %v3197 = vld [vmem:[%s6] sm:$0x1]
        %v3198 = vadd.f32 %v3196, %v3197
        %v3199 = vmax.f32 %v3198, 0.0
        %v3200 = vld [vmem:[%s7] sm:$0xff]
        %v3201 = vld [vmem:[%s7 + $0x8] sm:$0xff]
        %v3202 = vld [vmem:[%s7 + $0x10] sm:$0xff]
        %v3203 = vld [vmem:[%s7 + $0x18] sm:$0xff]
        %v3204 = vld [vmem:[%s7 + $0x20] sm:$0xff]
        %v3205 = vld [vmem:[%s7 + $0x28] sm:$0xff]
        %v3206 = vld [vmem:[%s7 + $0x30] sm:$0xff]
        %v3207 = vld [vmem:[%s7 + $0x38] sm:$0xff]
        %v3208 = vld [vmem:[%s7 + $0x40] sm:$0xff]
        %v3209 = vld [vmem:[%s7 + $0x48] sm:$0xff]
        %v3210 = vld [vmem:[%s7 + $0x50] sm:$0xff]
        %v3211 = vld [vmem:[%s7 + $0x58] sm:$0xff]
        %v3212 = vld [vmem:[%s7 + $0x60] sm:$0xff]
        %v3213 = vld [vmem:[%s7 + $0x68] sm:$0xff]
        %v3214 = vld [vmem:[%s7 + $0x70] sm:$0xff]
        %v3215 = vld [vmem:[%s8] sm:$0x1]
        %vm3216 = vcmask 982016
        %v3218 = vsel %vm3216, %v3199, 0
        %3220 = vmatpush.msra.mxu0 0.0
        %3221 = vmatpush.msra.mxu0 %v3214
        %3222 = vmatpush.msra.mxu0 %v3213
        %3223 = vmatpush.msra.mxu0 %v3212
        %3224 = vmatpush.msra.mxu0 %v3211
        %3225 = vmatpush.msra.mxu0 %v3210
        %3226 = vmatpush.msra.mxu0 %v3209
        %3227 = vmatpush.msra.mxu0 %v3208
        %3228 = vmatpush.msra.mxu0 %v3207
        %3229 = vmatpush.msra.mxu0 %v3206
        %3230 = vmatpush.msra.mxu0 %v3205
        %3231 = vmatpush.msra.mxu0 %v3204
        %3232 = vmatpush.msra.mxu0 %v3203
        %3233 = vmatpush.msra.mxu0 %v3202
        %3234 = vmatpush.msra.mxu0 %v3201
        %3235 = vmatpush.msra.mxu0 %v3200
        %3236 = vmatmul.f32.gmra.mxu0 %v3218
        %v3237 = vpop.f32.mrf.mxu0
        %v3238 = vadd.f32 %v3215, %v3237
        %3239 = vdwg.mxu0
        %v3240 = vmax.f32 %v3238, 0.0
        %v3241 = vld [vmem:[%s9] sm:$0xff]
        %v3242 = vld [vmem:[%s9 + $0x8] sm:$0xff]
        %v3243 = vld [vmem:[%s9 + $0x10] sm:$0xff]
        %v3244 = vld [vmem:[%s9 + $0x18] sm:$0xff]
        %v3245 = vld [vmem:[%s9 + $0x20] sm:$0xff]
        %v3246 = vld [vmem:[%s9 + $0x28] sm:$0xff]
        %v3247 = vld [vmem:[%s9 + $0x30] sm:$0xff]
        %v3248 = vld [vmem:[%s9 + $0x38] sm:$0xff]
        %v3249 = vld [vmem:[%s9 + $0x40] sm:$0xff]
        %v3250 = vld [vmem:[%s9 + $0x48] sm:$0xff]
        %v3251 = vld [vmem:[%s9 + $0x50] sm:$0xf]
        %v3252 = vld [vmem:[%s10] sm:$0x1]
        %vm3253 = vcmask 687104
        %v3255 = vsel %vm3253, %v3240, 0
        %v3258 = vsel %vm2653, %v3251, 0
        %3260 = vmatpush.msra.mxu0 0.0
        %3261 = vmatpush.msra.mxu0 0.0
        %3262 = vmatpush.msra.mxu0 0.0
        %3263 = vmatpush.msra.mxu0 0.0
        %3264 = vmatpush.msra.mxu0 0.0
        %3265 = vmatpush.msra.mxu0 %v3258
        %3266 = vmatpush.msra.mxu0 %v3250
        %3267 = vmatpush.msra.mxu0 %v3249
        %3268 = vmatpush.msra.mxu0 %v3248
        %3269 = vmatpush.msra.mxu0 %v3247
        %3270 = vmatpush.msra.mxu0 %v3246
        %3271 = vmatpush.msra.mxu0 %v3245
        %3272 = vmatpush.msra.mxu0 %v3244
        %3273 = vmatpush.msra.mxu0 %v3243
        %3274 = vmatpush.msra.mxu0 %v3242
        %3275 = vmatpush.msra.mxu0 %v3241
        %3276 = vmatmul.f32.gmra.mxu0 %v3255
        %v3277 = vpop.f32.mrf.mxu0
        %v3278 = vadd.f32 %v3252, %v3277
        %3279 = vdwg.mxu0
        %vm3280 = vcmask 73728
        %3281 = vst.msk [vmem:[%s378] sm:$0x1] %vm3280, %v3278
        %s3282 = sand.u32 %s269, 1
        %s3283 = scalar_lea.sflag [#allocation5], %s3282
        %s3284 = sand.u32 %s269, 1
        %s3285 = scalar_lea.vmem [#allocation4], %s3284
        // Predicated region
        $region65: #{net_forward.1} parent=63 // pred_check
          %p3286 = pneg %p279
        $region66: #{net_forward.1} parent=63 // pred_check_branch
          %3288 = sbr.rel (%p3286) target = $region68
        $region67: #{net_forward.1} parent=63 // pred_region
          %3290 = vsyncadd %s3283, 0
          %s3291 = scalar_lea.hbm %s11, %s25
          %s3293 = sshll.u32 %s3285, 4
          %s3294 = int_to_ptr.vmem [resolvable:$true] %s3293
          %s3295 = sshll.u32 %s3291, 4
          %s3296 = int_to_ptr.hbm [resolvable:$true] %s3295
          %3298 = dma.vmem_to_hbm [thread:$0]  %s3294, 16, %s3296, %s3283
        $region68: #{net_forward.1} parent=63 // pred_fallthru
          _
      $region64: #{net_forward.1} parent=5 // pred_fallthru
        _
      %p3299 = scmp.le.s32.totalorder 2, %s20
      // Predicated region
      $region69: #{net_forward.1} parent=5 // pred_check
        %p3300 = pneg %p3299
      $region70: #{net_forward.1} parent=5 // pred_check_branch
        %3302 = sbr.rel (%p3300) target = $region72
      $region71: #{net_forward.1} parent=5 // pred_region
        %s3303 = ssub.s32 %s20, 2
        // Predicated region
        $region73: #{net_forward.1} parent=71 // pred_check
          %p3304 = pneg %p285
        $region74: #{net_forward.1} parent=71 // pred_check_branch
          %3306 = sbr.rel (%p3304) target = $region76
        $region75: #{net_forward.1} parent=71 // pred_region
          %s3307 = sand.u32 %s270, 1
          %s3308 = scalar_lea.sflag [#allocation5], %s3307
          %s3309 = sand.u32 %s270, 1
          %s3310 = scalar_lea.vmem [#allocation4], %s3309
          %3312 = dma.done %s3308, 16
        $region76: #{net_forward.1} parent=71 // pred_fallthru
          _
      $region72: #{net_forward.1} parent=5 // pred_fallthru
        _
    $region6: #{net_forward.1} parent=1 // loop_footer
      %s24 = sadd.s32 1, %s20
    $region7: #{net_forward.1} parent=1 // loop_footer_branch
      %19 = sbr.rel target = $region3
    $region8: #{net_forward.1} parent=1 // loop_exit
      _
    %3313 = vsyncpa [#allocation5], 1
    %s3314 = scalar_lea.sflag [#allocation5], 1
    %3315 = vsyncpa %s3314, 1

</llo_original>
